<compile_context>
chip_gen: v7x
topology: tpu7x:2x2x1
jax: 0.10.0
libtpu: 0.0.40
codegen_flags: <defaults>
</compile_context>

<pallas_src>
import functools

import jax
import jax.numpy as jnp
from jax import lax
from jax.experimental import pallas as pl
from jax.experimental.pallas import tpu as pltpu


def _pick_strip_h(h_out, w_out, target_m=256, max_m=512):
    """Output rows per strip: smallest divisor of h_out with M = strip_h*w_out
    >= target_m (MXU-native rows), capped so the f32 acc tile stays small."""
    divisors = [d for d in range(1, h_out + 1) if h_out % d == 0]
    ok = [d for d in divisors if target_m <= d * w_out <= max_m]
    if ok:
        return min(ok)
    ok = [d for d in divisors if d * w_out <= max_m]
    if ok:
        return max(ok)
    return 1  # TODO(synk): pad h_out instead of degrading to 1-row strips.


def _block_kernel(x_hbm, wdw_ref, wpw_ref, o_ref, xbuf, sem, *,
                  stride, strip_h, group_strips):
    """One (batch, row-group) tile per grid step.

    x_hbm:   (N, Hp, Wp, Cin)  padded input, left in HBM (pl.ANY)
    wdw_ref: (3, 3, Cin)       depthwise weights, VMEM-resident across the grid
    wpw_ref: (Cin, Cout)       pointwise weights, VMEM-resident across the grid
    o_ref:   (1, group_h_out, w_out, Cout) output block for this grid step
    xbuf:    (2, rows_in, Wp, Cin) VMEM double buffer for input row-strips
    sem:     (2,) DMA semaphores
    """
    b = pl.program_id(0)
    g = pl.program_id(1)
    w_out, c_out = o_ref.shape[2], o_ref.shape[3]
    c_in = wdw_ref.shape[2]
    rows_in = xbuf.shape[1]

    def strip_copy(s, slot):
        # First padded-input row of strip s of this group.
        row0 = (g * group_strips + s) * (strip_h * stride)
        return pltpu.make_async_copy(
            x_hbm.at[b, pl.ds(row0, rows_in)],   # (rows_in, Wp, Cin)
            xbuf.at[slot],
            sem.at[slot])

    # Prime the pipeline with strip 0 of this group.
    strip_copy(0, 0).start()

    # Hoist the 9 depthwise taps out of the strip loop (loop-invariant;
    # JAX does not CSE these loads/casts).
    taps = [[wdw_ref[ki, kj, :].astype(jnp.float32) for kj in range(3)]
            for ki in range(3)]

    # Statically unrolled strip loop (trip count is a Python constant).
    for s in range(group_strips):
        slot = s & 1
        strip_copy(s, slot).wait()
        if s + 1 < group_strips:
            strip_copy(s + 1, 1 - slot).start()   # prefetch next strip

        buf = xbuf.at[slot]                       # (rows_in, Wp, Cin) view

        # ---- depthwise 3x3 + ReLU (VPU, f32 accumulation) ----
        acc = jnp.zeros((strip_h, w_out, c_in), jnp.float32)
        if stride == 1:
            # One W-shifted read per kj; ki offsets are cheap slices along the
            # untiled row axis of the loaded value.
            # TODO(synk): move the kj shifts onto the XLU with pltpu.roll.
            for kj in range(3):
                col = buf[:, kj:kj + w_out, :].astype(jnp.float32)
                for ki in range(3):
                    acc = acc + col[ki:ki + strip_h] * taps[ki][kj]
        else:
            # TODO(synk): de-interleave even/odd W columns once per strip
            # instead of 9 strided sublane reads.
            for ki in range(3):
                for kj in range(3):
                    patch = buf[pl.ds(ki, strip_h, stride),
                                pl.ds(kj, w_out, stride), :]
                    acc = acc + patch.astype(jnp.float32) * taps[ki][kj]
        dw = jnp.maximum(acc, 0.0)

        # ---- pointwise 1x1 conv == channel matmul (MXU) ----
        # M = strip_h * w_out (>= 256 by construction), K = Cin, N = Cout.
        flat = dw.astype(wpw_ref.dtype).reshape(strip_h * w_out, c_in)
        pw = jnp.dot(flat, wpw_ref[...], preferred_element_type=jnp.float32)
        pw = jnp.maximum(pw, 0.0)

        o_ref[0, pl.ds(s * strip_h, strip_h), :, :] = (
            pw.reshape(strip_h, w_out, c_out).astype(o_ref.dtype))


def mobilenet_block_nhwc(x_nhwc, w_dw, w_pw, *, stride=1, strip_h=None,
                         n_groups=None, compute_dtype=None):
    """Forward pass of the PyTorch `Block`, NHWC activations.

    x_nhwc: (N, H, W, Cin) float32/bf16
    w_dw:   (Cin, 1, 3, 3)    PyTorch depthwise weight layout (groups=Cin)
    w_pw:   (Cout, Cin, 1, 1) PyTorch pointwise weight layout
    compute_dtype: e.g. jnp.bfloat16 to feed bf16 MXU/DMA operands
                   (accumulation stays f32); None keeps the input dtype.
    returns (N, H_out, W_out, Cout) in the input dtype.
    """
    n, h, w, c_in = x_nhwc.shape
    assert w_dw.shape == (c_in, 1, 3, 3), w_dw.shape
    c_out = w_pw.shape[0]
    out_dtype = x_nhwc.dtype
    h_out = (h + 2 - 3) // stride + 1
    w_out = (w + 2 - 3) // stride + 1

    if strip_h is None:
        strip_h = _pick_strip_h(h_out, w_out)
    assert h_out % strip_h == 0, (h_out, strip_h)
    n_strips = h_out // strip_h
    if n_groups is None:
        # >=2 parallel row-groups keeps both v7x TensorCores busy at small batch.
        n_groups = 2 if (n_strips % 2 == 0 and n_strips >= 2) else 1
    assert n_strips % n_groups == 0, (n_strips, n_groups)
    group_strips = n_strips // n_groups
    group_h_out = group_strips * strip_h
    rows_in = stride * (strip_h - 1) + 3

    # MXU/DMA operand dtype (f32 accumulation regardless).
    k_dtype = jnp.dtype(compute_dtype) if compute_dtype is not None else jnp.dtype(out_dtype)

    # Weight re-layout (tiny, one-time): depthwise -> (3,3,Cin), pointwise -> (Cin,Cout).
    wdw_k = jnp.transpose(w_dw[:, 0, :, :], (1, 2, 0)).astype(k_dtype)
    wpw_k = jnp.transpose(w_pw[:, :, 0, 0], (1, 0)).astype(k_dtype)

    # Halo + sublane padding: pad W+2 up to a multiple of 8 so tap slices and
    # the pre-matmul reshape stay free re-tilings.
    # TODO(synk): handle the halo in-kernel instead of padding in HBM.
    wp = ((w + 2 + 7) // 8) * 8
    x_pad = jnp.pad(x_nhwc.astype(k_dtype),
                    ((0, 0), (1, 1), (1, wp - w - 1), (0, 0)))

    # VMEM budget from the actual buffer footprint (+ headroom), not the
    # physical size (v7x only has 64 MiB per TensorCore).
    k_isz = jnp.dtype(k_dtype).itemsize
    o_isz = jnp.dtype(out_dtype).itemsize
    xbuf_bytes = 2 * rows_in * wp * c_in * k_isz
    out_bytes = 2 * group_h_out * w_out * c_out * o_isz            # double-buffered
    w_bytes = 2 * (9 * c_in + c_in * c_out) * k_isz
    tmp_bytes = strip_h * w_out * (3 * c_in + c_out) * 4           # f32 temporaries
    vmem_limit = int(1.5 * (xbuf_bytes + out_bytes + w_bytes + tmp_bytes)) + (8 << 20)
    vmem_limit = max(16 << 20, min(vmem_limit, 96 << 20))

    kernel = functools.partial(_block_kernel, stride=stride, strip_h=strip_h,
                               group_strips=group_strips)

    return pl.pallas_call(
        kernel,
        out_shape=jax.ShapeDtypeStruct((n, h_out, w_out, c_out), out_dtype),
        grid_spec=pltpu.PrefetchScalarGridSpec(
            num_scalar_prefetch=0,
            grid=(n, n_groups),
            in_specs=[
                pl.BlockSpec(memory_space=pl.ANY),                    # x stays in HBM
                pl.BlockSpec((3, 3, c_in), lambda b, g: (0, 0, 0)),    # resident
                pl.BlockSpec((c_in, c_out), lambda b, g: (0, 0)),      # resident
            ],
            out_specs=pl.BlockSpec((1, group_h_out, w_out, c_out),
                                   lambda b, g: (b, g, 0, 0)),
            scratch_shapes=[
                pltpu.VMEM((2, rows_in, wp, c_in), k_dtype),           # strip dbl-buffer
                pltpu.SemaphoreType.DMA((2,)),
            ]),
        compiler_params=pltpu.CompilerParams(
            dimension_semantics=("parallel", "parallel"),
            vmem_limit_bytes=vmem_limit),
    )(x_pad, wdw_k, wpw_k)


def mobilenet_block(x_nchw, w_dw, w_pw, stride=1, strip_h=None, n_groups=None,
                    compute_dtype=None):
    """PyTorch-layout (NCHW) boundary wrapper.

    In a full network keep activations NHWC end-to-end and do this transpose
    once at model ingress/egress, not per Block.
    """
    x_nhwc = jnp.transpose(x_nchw, (0, 2, 3, 1))
    out = mobilenet_block_nhwc(x_nhwc, w_dw, w_pw, stride=stride,
                               strip_h=strip_h, n_groups=n_groups,
                               compute_dtype=compute_dtype)
    return jnp.transpose(out, (0, 3, 1, 2))


def _reference_block(x_nchw, w_dw, w_pw, stride=1):
    """Pure-JAX reference matching torch semantics (correctness check)."""
    c_in = x_nchw.shape[1]
    dn = ("NCHW", "OIHW", "NCHW")
    out = lax.conv_general_dilated(
        x_nchw, w_dw, window_strides=(stride, stride),
        padding=((1, 1), (1, 1)), dimension_numbers=dn,
        feature_group_count=c_in, precision=lax.Precision.HIGHEST)
    out = jnp.maximum(out, 0.0)
    out = lax.conv_general_dilated(
        out, w_pw, window_strides=(1, 1),
        padding=((0, 0), (0, 0)), dimension_numbers=dn,
        precision=lax.Precision.HIGHEST)
    return jnp.maximum(out, 0.0)


if __name__ == "__main__":
    key = jax.random.PRNGKey(0)

    def make_case(case_key, batch, cin, cout, hw):
        kx, kdw, kpw = jax.random.split(case_key, 3)
        x = jax.random.normal(kx, (batch, cin, hw, hw), dtype=jnp.float32)
        w_dw = jax.random.normal(kdw, (cin, 1, 3, 3), dtype=jnp.float32) * 0.1
        w_pw = jax.random.normal(kpw, (cout, cin, 1, 1), dtype=jnp.float32) * 0.1
        return x, w_dw, w_pw

    cases = [
        # (batch, cin, cout, hw, stride, compute_dtype, tol)
        (2, 128, 256, 32, 1, None,         2e-3),  # strip+group pipeline, f32 (M=256)
        (2, 128, 256, 16, 1, jnp.bfloat16, 5e-2),  # bf16 MXU/DMA operands (M=256)
        (2,  64, 128, 16, 2, None,         2e-3),  # stride-2 block
        (1,   8,  16,  8, 1, None,         2e-3),  # tiny-channel sanity case
    ]

    for (batch, cin, cout, hw, stride, cdtype, tol) in cases:
        key, sub = jax.random.split(key)
        x, w_dw, w_pw = make_case(sub, batch, cin, cout, hw)
        out = jax.block_until_ready(
            mobilenet_block(x, w_dw, w_pw, stride=stride, compute_dtype=cdtype))
        ref = jax.block_until_ready(_reference_block(x, w_dw, w_pw, stride=stride))
        assert out.shape == ref.shape, (out.shape, ref.shape)
        err = float(jnp.max(jnp.abs(out - ref)))
        assert jnp.allclose(out, ref, atol=tol, rtol=tol), (
            f"mismatch vs reference for case "
            f"{(batch, cin, cout, hw, stride, cdtype)}: max abs err {err}")

    print("KERNEL_OK")
</pallas_src>

<mosaic_0001>
module attributes {stable_mosaic.version = 11 : i64} {
  func.func @_block_kernel(%arg0: i32, %arg1: i32, %arg2: memref<2x34x40x128xf32, #tpu.memory_space<any>>, %arg3: memref<3x3x128xf32, #tpu.memory_space<vmem>>, %arg4: memref<128x256xf32, #tpu.memory_space<vmem>>, %arg5: memref<1x16x32x256xf32, #tpu.memory_space<vmem>>, %arg6: memref<2x10x40x128xf32, #tpu.memory_space<vmem>>, %arg7: memref<2x!tpu.dma_semaphore, #tpu.memory_space<semaphore_mem>>) attributes {dimension_semantics = [#tpu.dimension_semantics<parallel>, #tpu.dimension_semantics<parallel>], iteration_bounds = array<i64: 2, 2>, scalar_prefetch = 0 : i64, scratch_operands = 2 : i64, tpu.core_type = #tpu.core_type<tc>, window_params = [{}, {pipeline_mode = #tpu.pipeline_mode<synchronous>, transform_indices = @transform_1, window_bounds = array<i64: 3, 3, 128>}, {pipeline_mode = #tpu.pipeline_mode<synchronous>, transform_indices = @transform_2, window_bounds = array<i64: 128, 256>}, {transform_indices = @transform_3, window_bounds = array<i64: 1, 16, 32, 256>}]} {
    %c2_i32 = arith.constant 2 : i32
    %0 = arith.muli %arg1, %c2_i32 : i32
    %c0_i32 = arith.constant 0 : i32
    %1 = arith.addi %0, %c0_i32 : i32
    %c8_i32 = arith.constant 8 : i32
    %2 = arith.muli %1, %c8_i32 : i32
    %c0_i32_0 = arith.constant 0 : i32
    %c0_i32_1 = arith.constant 0 : i32
    %c0_i32_2 = arith.constant 0 : i32
    %c0_i32_3 = arith.constant 0 : i32
    %3 = tpu.memref_slice %arg2[%arg0, %2, %c0_i32_2, %c0_i32_3] : memref<2x34x40x128xf32, #tpu.memory_space<any>> -> memref<1x10x40x128xf32, #tpu.memory_space<any>>
    %4 = tpu.memref_squeeze %3 : memref<1x10x40x128xf32, #tpu.memory_space<any>> -> memref<10x40x128xf32, #tpu.memory_space<any>>
    %c0_i32_4 = arith.constant 0 : i32
    %c0_i32_5 = arith.constant 0 : i32
    %c0_i32_6 = arith.constant 0 : i32
    %5 = tpu.memref_slice %arg6[%c0_i32_0, %c0_i32_4, %c0_i32_5, %c0_i32_6] : memref<2x10x40x128xf32, #tpu.memory_space<vmem>> -> memref<1x10x40x128xf32, #tpu.memory_space<vmem>>
    %6 = tpu.memref_squeeze %5 : memref<1x10x40x128xf32, #tpu.memory_space<vmem>> -> memref<10x40x128xf32, #tpu.memory_space<vmem>>
    %7 = tpu.memref_slice %arg7[%c0_i32_1] : memref<2x!tpu.dma_semaphore, #tpu.memory_space<semaphore_mem>> -> memref<1x!tpu.dma_semaphore, #tpu.memory_space<semaphore_mem>>
    %8 = tpu.memref_squeeze %7 : memref<1x!tpu.dma_semaphore, #tpu.memory_space<semaphore_mem>> -> memref<!tpu.dma_semaphore, #tpu.memory_space<semaphore_mem>>
    tpu.enqueue_dma source(%4 : memref<10x40x128xf32, #tpu.memory_space<any>>) target(%6 : memref<10x40x128xf32, #tpu.memory_space<vmem>>) target_semaphore(%8 : memref<!tpu.dma_semaphore, #tpu.memory_space<semaphore_mem>>)
    %c0 = arith.constant 0 : index
    %c0_7 = arith.constant 0 : index
    %c0_8 = arith.constant 0 : index
    %9 = vector.load %arg3[%c0, %c0_7, %c0_8] : memref<3x3x128xf32, #tpu.memory_space<vmem>>, vector<1x1x128xf32>
    %10 = vector.shape_cast %9 : vector<1x1x128xf32> to vector<128xf32>
    %c0_9 = arith.constant 0 : index
    %c1 = arith.constant 1 : index
    %c0_10 = arith.constant 0 : index
    %11 = vector.load %arg3[%c0_9, %c1, %c0_10] : memref<3x3x128xf32, #tpu.memory_space<vmem>>, vector<1x1x128xf32>
    %12 = vector.shape_cast %11 : vector<1x1x128xf32> to vector<128xf32>
    %c0_11 = arith.constant 0 : index
    %c2 = arith.constant 2 : index
    %c0_12 = arith.constant 0 : index
    %13 = vector.load %arg3[%c0_11, %c2, %c0_12] : memref<3x3x128xf32, #tpu.memory_space<vmem>>, vector<1x1x128xf32>
    %14 = vector.shape_cast %13 : vector<1x1x128xf32> to vector<128xf32>
    %c1_13 = arith.constant 1 : index
    %c0_14 = arith.constant 0 : index
    %c0_15 = arith.constant 0 : index
    %15 = vector.load %arg3[%c1_13, %c0_14, %c0_15] : memref<3x3x128xf32, #tpu.memory_space<vmem>>, vector<1x1x128xf32>
    %16 = vector.shape_cast %15 : vector<1x1x128xf32> to vector<128xf32>
    %c1_16 = arith.constant 1 : index
    %c1_17 = arith.constant 1 : index
    %c0_18 = arith.constant 0 : index
    %17 = vector.load %arg3[%c1_16, %c1_17, %c0_18] : memref<3x3x128xf32, #tpu.memory_space<vmem>>, vector<1x1x128xf32>
    %18 = vector.shape_cast %17 : vector<1x1x128xf32> to vector<128xf32>
    %c1_19 = arith.constant 1 : index
    %c2_20 = arith.constant 2 : index
    %c0_21 = arith.constant 0 : index
    %19 = vector.load %arg3[%c1_19, %c2_20, %c0_21] : memref<3x3x128xf32, #tpu.memory_space<vmem>>, vector<1x1x128xf32>
    %20 = vector.shape_cast %19 : vector<1x1x128xf32> to vector<128xf32>
    %c2_22 = arith.constant 2 : index
    %c0_23 = arith.constant 0 : index
    %c0_24 = arith.constant 0 : index
    %21 = vector.load %arg3[%c2_22, %c0_23, %c0_24] : memref<3x3x128xf32, #tpu.memory_space<vmem>>, vector<1x1x128xf32>
    %22 = vector.shape_cast %21 : vector<1x1x128xf32> to vector<128xf32>
    %c2_25 = arith.constant 2 : index
    %c1_26 = arith.constant 1 : index
    %c0_27 = arith.constant 0 : index
    %23 = vector.load %arg3[%c2_25, %c1_26, %c0_27] : memref<3x3x128xf32, #tpu.memory_space<vmem>>, vector<1x1x128xf32>
    %24 = vector.shape_cast %23 : vector<1x1x128xf32> to vector<128xf32>
    %c2_28 = arith.constant 2 : index
    %c2_29 = arith.constant 2 : index
    %c0_30 = arith.constant 0 : index
    %25 = vector.load %arg3[%c2_28, %c2_29, %c0_30] : memref<3x3x128xf32, #tpu.memory_space<vmem>>, vector<1x1x128xf32>
    %26 = vector.shape_cast %25 : vector<1x1x128xf32> to vector<128xf32>
    %c2_i32_31 = arith.constant 2 : i32
    %27 = arith.muli %arg1, %c2_i32_31 : i32
    %c0_i32_32 = arith.constant 0 : i32
    %28 = arith.addi %27, %c0_i32_32 : i32
    %c8_i32_33 = arith.constant 8 : i32
    %29 = arith.muli %28, %c8_i32_33 : i32
    %c0_i32_34 = arith.constant 0 : i32
    %c0_i32_35 = arith.constant 0 : i32
    %c0_i32_36 = arith.constant 0 : i32
    %c0_i32_37 = arith.constant 0 : i32
    %30 = tpu.memref_slice %arg2[%arg0, %29, %c0_i32_36, %c0_i32_37] : memref<2x34x40x128xf32, #tpu.memory_space<any>> -> memref<1x10x40x128xf32, #tpu.memory_space<any>>
    %31 = tpu.memref_squeeze %30 : memref<1x10x40x128xf32, #tpu.memory_space<any>> -> memref<10x40x128xf32, #tpu.memory_space<any>>
    %c0_i32_38 = arith.constant 0 : i32
    %c0_i32_39 = arith.constant 0 : i32
    %c0_i32_40 = arith.constant 0 : i32
    %32 = tpu.memref_slice %arg6[%c0_i32_34, %c0_i32_38, %c0_i32_39, %c0_i32_40] : memref<2x10x40x128xf32, #tpu.memory_space<vmem>> -> memref<1x10x40x128xf32, #tpu.memory_space<vmem>>
    %33 = tpu.memref_squeeze %32 : memref<1x10x40x128xf32, #tpu.memory_space<vmem>> -> memref<10x40x128xf32, #tpu.memory_space<vmem>>
    %34 = tpu.memref_slice %arg7[%c0_i32_35] : memref<2x!tpu.dma_semaphore, #tpu.memory_space<semaphore_mem>> -> memref<1x!tpu.dma_semaphore, #tpu.memory_space<semaphore_mem>>
    %35 = tpu.memref_squeeze %34 : memref<1x!tpu.dma_semaphore, #tpu.memory_space<semaphore_mem>> -> memref<!tpu.dma_semaphore, #tpu.memory_space<semaphore_mem>>
    tpu.wait_dma2 semaphore(%35 : memref<!tpu.dma_semaphore, #tpu.memory_space<semaphore_mem>>) src(%31 : memref<10x40x128xf32, #tpu.memory_space<any>>) dst(%33 : memref<10x40x128xf32, #tpu.memory_space<vmem>>)
    %c2_i32_41 = arith.constant 2 : i32
    %36 = arith.muli %arg1, %c2_i32_41 : i32
    %c1_i32 = arith.constant 1 : i32
    %37 = arith.addi %36, %c1_i32 : i32
    %c8_i32_42 = arith.constant 8 : i32
    %38 = arith.muli %37, %c8_i32_42 : i32
    %c1_i32_43 = arith.constant 1 : i32
    %c1_i32_44 = arith.constant 1 : i32
    %c0_i32_45 = arith.constant 0 : i32
    %c0_i32_46 = arith.constant 0 : i32
    %39 = tpu.memref_slice %arg2[%arg0, %38, %c0_i32_45, %c0_i32_46] : memref<2x34x40x128xf32, #tpu.memory_space<any>> -> memref<1x10x40x128xf32, #tpu.memory_space<any>>
    %40 = tpu.memref_squeeze %39 : memref<1x10x40x128xf32, #tpu.memory_space<any>> -> memref<10x40x128xf32, #tpu.memory_space<any>>
    %c0_i32_47 = arith.constant 0 : i32
    %c0_i32_48 = arith.constant 0 : i32
    %c0_i32_49 = arith.constant 0 : i32
    %41 = tpu.memref_slice %arg6[%c1_i32_43, %c0_i32_47, %c0_i32_48, %c0_i32_49] : memref<2x10x40x128xf32, #tpu.memory_space<vmem>> -> memref<1x10x40x128xf32, #tpu.memory_space<vmem>>
    %42 = tpu.memref_squeeze %41 : memref<1x10x40x128xf32, #tpu.memory_space<vmem>> -> memref<10x40x128xf32, #tpu.memory_space<vmem>>
    %43 = tpu.memref_slice %arg7[%c1_i32_44] : memref<2x!tpu.dma_semaphore, #tpu.memory_space<semaphore_mem>> -> memref<1x!tpu.dma_semaphore, #tpu.memory_space<semaphore_mem>>
    %44 = tpu.memref_squeeze %43 : memref<1x!tpu.dma_semaphore, #tpu.memory_space<semaphore_mem>> -> memref<!tpu.dma_semaphore, #tpu.memory_space<semaphore_mem>>
    tpu.enqueue_dma source(%40 : memref<10x40x128xf32, #tpu.memory_space<any>>) target(%42 : memref<10x40x128xf32, #tpu.memory_space<vmem>>) target_semaphore(%44 : memref<!tpu.dma_semaphore, #tpu.memory_space<semaphore_mem>>)
    %cst = arith.constant 0.000000e+00 : f32
    %45 = vector.broadcast %cst : f32 to vector<8x32x128xf32>
    %c0_i32_50 = arith.constant 0 : i32
    %c0_i32_51 = arith.constant 0 : i32
    %c0_i32_52 = arith.constant 0 : i32
    %c0_i32_53 = arith.constant 0 : i32
    %46 = tpu.memref_slice %arg6[%c0_i32_50, %c0_i32_51, %c0_i32_52, %c0_i32_53] : memref<2x10x40x128xf32, #tpu.memory_space<vmem>> -> memref<1x10x40x128xf32, #tpu.memory_space<vmem>>
    %47 = tpu.memref_squeeze %46 : memref<1x10x40x128xf32, #tpu.memory_space<vmem>> -> memref<10x40x128xf32, #tpu.memory_space<vmem>>
    %c0_54 = arith.constant 0 : index
    %c0_55 = arith.constant 0 : index
    %c0_56 = arith.constant 0 : index
    %48 = vector.load %47[%c0_54, %c0_55, %c0_56] : memref<10x40x128xf32, #tpu.memory_space<vmem>>, vector<10x32x128xf32>
    %49 = vector.extract_strided_slice %48 {offsets = [0, 0, 0], sizes = [8, 32, 128], strides = [1, 1, 1]} : vector<10x32x128xf32> to vector<8x32x128xf32>
    %50 = vector.shape_cast %10 : vector<128xf32> to vector<1x1x128xf32>
    %51 = vector.broadcast %50 : vector<1x1x128xf32> to vector<8x32x128xf32>
    %52 = arith.mulf %49, %51 : vector<8x32x128xf32>
    %53 = arith.addf %45, %52 : vector<8x32x128xf32>
    %54 = vector.extract_strided_slice %48 {offsets = [1, 0, 0], sizes = [8, 32, 128], strides = [1, 1, 1]} : vector<10x32x128xf32> to vector<8x32x128xf32>
    %55 = vector.shape_cast %16 : vector<128xf32> to vector<1x1x128xf32>
    %56 = vector.broadcast %55 : vector<1x1x128xf32> to vector<8x32x128xf32>
    %57 = arith.mulf %54, %56 : vector<8x32x128xf32>
    %58 = arith.addf %53, %57 : vector<8x32x128xf32>
    %59 = vector.extract_strided_slice %48 {offsets = [2, 0, 0], sizes = [8, 32, 128], strides = [1, 1, 1]} : vector<10x32x128xf32> to vector<8x32x128xf32>
    %60 = vector.shape_cast %22 : vector<128xf32> to vector<1x1x128xf32>
    %61 = vector.broadcast %60 : vector<1x1x128xf32> to vector<8x32x128xf32>
    %62 = arith.mulf %59, %61 : vector<8x32x128xf32>
    %63 = arith.addf %58, %62 : vector<8x32x128xf32>
    %c0_i32_57 = arith.constant 0 : i32
    %c0_i32_58 = arith.constant 0 : i32
    %c0_i32_59 = arith.constant 0 : i32
    %c0_i32_60 = arith.constant 0 : i32
    %64 = tpu.memref_slice %arg6[%c0_i32_57, %c0_i32_58, %c0_i32_59, %c0_i32_60] : memref<2x10x40x128xf32, #tpu.memory_space<vmem>> -> memref<1x10x40x128xf32, #tpu.memory_space<vmem>>
    %65 = tpu.memref_squeeze %64 : memref<1x10x40x128xf32, #tpu.memory_space<vmem>> -> memref<10x40x128xf32, #tpu.memory_space<vmem>>
    %c0_61 = arith.constant 0 : index
    %c1_62 = arith.constant 1 : index
    %c0_63 = arith.constant 0 : index
    %66 = vector.load %65[%c0_61, %c1_62, %c0_63] : memref<10x40x128xf32, #tpu.memory_space<vmem>>, vector<10x32x128xf32>
    %67 = vector.extract_strided_slice %66 {offsets = [0, 0, 0], sizes = [8, 32, 128], strides = [1, 1, 1]} : vector<10x32x128xf32> to vector<8x32x128xf32>
    %68 = vector.shape_cast %12 : vector<128xf32> to vector<1x1x128xf32>
    %69 = vector.broadcast %68 : vector<1x1x128xf32> to vector<8x32x128xf32>
    %70 = arith.mulf %67, %69 : vector<8x32x128xf32>
    %71 = arith.addf %63, %70 : vector<8x32x128xf32>
    %72 = vector.extract_strided_slice %66 {offsets = [1, 0, 0], sizes = [8, 32, 128], strides = [1, 1, 1]} : vector<10x32x128xf32> to vector<8x32x128xf32>
    %73 = vector.shape_cast %18 : vector<128xf32> to vector<1x1x128xf32>
    %74 = vector.broadcast %73 : vector<1x1x128xf32> to vector<8x32x128xf32>
    %75 = arith.mulf %72, %74 : vector<8x32x128xf32>
    %76 = arith.addf %71, %75 : vector<8x32x128xf32>
    %77 = vector.extract_strided_slice %66 {offsets = [2, 0, 0], sizes = [8, 32, 128], strides = [1, 1, 1]} : vector<10x32x128xf32> to vector<8x32x128xf32>
    %78 = vector.shape_cast %24 : vector<128xf32> to vector<1x1x128xf32>
    %79 = vector.broadcast %78 : vector<1x1x128xf32> to vector<8x32x128xf32>
    %80 = arith.mulf %77, %79 : vector<8x32x128xf32>
    %81 = arith.addf %76, %80 : vector<8x32x128xf32>
    %c0_i32_64 = arith.constant 0 : i32
    %c0_i32_65 = arith.constant 0 : i32
    %c0_i32_66 = arith.constant 0 : i32
    %c0_i32_67 = arith.constant 0 : i32
    %82 = tpu.memref_slice %arg6[%c0_i32_64, %c0_i32_65, %c0_i32_66, %c0_i32_67] : memref<2x10x40x128xf32, #tpu.memory_space<vmem>> -> memref<1x10x40x128xf32, #tpu.memory_space<vmem>>
    %83 = tpu.memref_squeeze %82 : memref<1x10x40x128xf32, #tpu.memory_space<vmem>> -> memref<10x40x128xf32, #tpu.memory_space<vmem>>
    %c0_68 = arith.constant 0 : index
    %c2_69 = arith.constant 2 : index
    %c0_70 = arith.constant 0 : index
    %84 = vector.load %83[%c0_68, %c2_69, %c0_70] : memref<10x40x128xf32, #tpu.memory_space<vmem>>, vector<10x32x128xf32>
    %85 = vector.extract_strided_slice %84 {offsets = [0, 0, 0], sizes = [8, 32, 128], strides = [1, 1, 1]} : vector<10x32x128xf32> to vector<8x32x128xf32>
    %86 = vector.shape_cast %14 : vector<128xf32> to vector<1x1x128xf32>
    %87 = vector.broadcast %86 : vector<1x1x128xf32> to vector<8x32x128xf32>
    %88 = arith.mulf %85, %87 : vector<8x32x128xf32>
    %89 = arith.addf %81, %88 : vector<8x32x128xf32>
    %90 = vector.extract_strided_slice %84 {offsets = [1, 0, 0], sizes = [8, 32, 128], strides = [1, 1, 1]} : vector<10x32x128xf32> to vector<8x32x128xf32>
    %91 = vector.shape_cast %20 : vector<128xf32> to vector<1x1x128xf32>
    %92 = vector.broadcast %91 : vector<1x1x128xf32> to vector<8x32x128xf32>
    %93 = arith.mulf %90, %92 : vector<8x32x128xf32>
    %94 = arith.addf %89, %93 : vector<8x32x128xf32>
    %95 = vector.extract_strided_slice %84 {offsets = [2, 0, 0], sizes = [8, 32, 128], strides = [1, 1, 1]} : vector<10x32x128xf32> to vector<8x32x128xf32>
    %96 = vector.shape_cast %26 : vector<128xf32> to vector<1x1x128xf32>
    %97 = vector.broadcast %96 : vector<1x1x128xf32> to vector<8x32x128xf32>
    %98 = arith.mulf %95, %97 : vector<8x32x128xf32>
    %99 = arith.addf %94, %98 : vector<8x32x128xf32>
    %cst_71 = arith.constant 0.000000e+00 : f32
    %100 = vector.broadcast %cst_71 : f32 to vector<8x32x128xf32>
    %101 = arith.maximumf %99, %100 : vector<8x32x128xf32>
    %102 = vector.shape_cast %101 : vector<8x32x128xf32> to vector<256x128xf32>
    %c0_72 = arith.constant 0 : index
    %c0_73 = arith.constant 0 : index
    %103 = vector.load %arg4[%c0_72, %c0_73] : memref<128x256xf32, #tpu.memory_space<vmem>>, vector<128x256xf32>
    %cst_74 = arith.constant dense<0.000000e+00> : vector<256x256xf32>
    %104 = tpu.matmul %102, %103, %cst_74 {dimension_numbers = #tpu.dot_dimension_numbers<[1], [0], [0], [1], [0, 0, 1, 1], [], []>} : vector<256x128xf32>, vector<128x256xf32>, vector<256x256xf32> -> vector<256x256xf32>
    %cst_75 = arith.constant 0.000000e+00 : f32
    %105 = vector.broadcast %cst_75 : f32 to vector<256x256xf32>
    %106 = arith.maximumf %104, %105 : vector<256x256xf32>
    %107 = vector.shape_cast %106 : vector<256x256xf32> to vector<8x32x256xf32>
    %c0_76 = arith.constant 0 : index
    %c0_77 = arith.constant 0 : index
    %c0_78 = arith.constant 0 : index
    %c0_79 = arith.constant 0 : index
    %108 = vector.load %arg5[%c0_76, %c0_77, %c0_78, %c0_79] : memref<1x16x32x256xf32, #tpu.memory_space<vmem>>, vector<1x8x32x256xf32>
    %109 = vector.shape_cast %108 : vector<1x8x32x256xf32> to vector<8x32x256xf32>
    %110 = vector.shape_cast %107 : vector<8x32x256xf32> to vector<1x8x32x256xf32>
    tpu.vector_store %arg5[%c0_76, %c0_77, %c0_78, %c0_79], %110 {strides = array<i32>} : memref<1x16x32x256xf32, #tpu.memory_space<vmem>>, vector<1x8x32x256xf32>,
    %c2_i32_80 = arith.constant 2 : i32
    %111 = arith.muli %arg1, %c2_i32_80 : i32
    %c1_i32_81 = arith.constant 1 : i32
    %112 = arith.addi %111, %c1_i32_81 : i32
    %c8_i32_82 = arith.constant 8 : i32
    %113 = arith.muli %112, %c8_i32_82 : i32
    %c1_i32_83 = arith.constant 1 : i32
    %c1_i32_84 = arith.constant 1 : i32
    %c0_i32_85 = arith.constant 0 : i32
    %c0_i32_86 = arith.constant 0 : i32
    %114 = tpu.memref_slice %arg2[%arg0, %113, %c0_i32_85, %c0_i32_86] : memref<2x34x40x128xf32, #tpu.memory_space<any>> -> memref<1x10x40x128xf32, #tpu.memory_space<any>>
    %115 = tpu.memref_squeeze %114 : memref<1x10x40x128xf32, #tpu.memory_space<any>> -> memref<10x40x128xf32, #tpu.memory_space<any>>
    %c0_i32_87 = arith.constant 0 : i32
    %c0_i32_88 = arith.constant 0 : i32
    %c0_i32_89 = arith.constant 0 : i32
    %116 = tpu.memref_slice %arg6[%c1_i32_83, %c0_i32_87, %c0_i32_88, %c0_i32_89] : memref<2x10x40x128xf32, #tpu.memory_space<vmem>> -> memref<1x10x40x128xf32, #tpu.memory_space<vmem>>
    %117 = tpu.memref_squeeze %116 : memref<1x10x40x128xf32, #tpu.memory_space<vmem>> -> memref<10x40x128xf32, #tpu.memory_space<vmem>>
    %118 = tpu.memref_slice %arg7[%c1_i32_84] : memref<2x!tpu.dma_semaphore, #tpu.memory_space<semaphore_mem>> -> memref<1x!tpu.dma_semaphore, #tpu.memory_space<semaphore_mem>>
    %119 = tpu.memref_squeeze %118 : memref<1x!tpu.dma_semaphore, #tpu.memory_space<semaphore_mem>> -> memref<!tpu.dma_semaphore, #tpu.memory_space<semaphore_mem>>
    tpu.wait_dma2 semaphore(%119 : memref<!tpu.dma_semaphore, #tpu.memory_space<semaphore_mem>>) src(%115 : memref<10x40x128xf32, #tpu.memory_space<any>>) dst(%117 : memref<10x40x128xf32, #tpu.memory_space<vmem>>)
    %cst_90 = arith.constant 0.000000e+00 : f32
    %120 = vector.broadcast %cst_90 : f32 to vector<8x32x128xf32>
    %c1_i32_91 = arith.constant 1 : i32
    %c0_i32_92 = arith.constant 0 : i32
    %c0_i32_93 = arith.constant 0 : i32
    %c0_i32_94 = arith.constant 0 : i32
    %121 = tpu.memref_slice %arg6[%c1_i32_91, %c0_i32_92, %c0_i32_93, %c0_i32_94] : memref<2x10x40x128xf32, #tpu.memory_space<vmem>> -> memref<1x10x40x128xf32, #tpu.memory_space<vmem>>
    %122 = tpu.memref_squeeze %121 : memref<1x10x40x128xf32, #tpu.memory_space<vmem>> -> memref<10x40x128xf32, #tpu.memory_space<vmem>>
    %c0_95 = arith.constant 0 : index
    %c0_96 = arith.constant 0 : index
    %c0_97 = arith.constant 0 : index
    %123 = vector.load %122[%c0_95, %c0_96, %c0_97] : memref<10x40x128xf32, #tpu.memory_space<vmem>>, vector<10x32x128xf32>
    %124 = vector.extract_strided_slice %123 {offsets = [0, 0, 0], sizes = [8, 32, 128], strides = [1, 1, 1]} : vector<10x32x128xf32> to vector<8x32x128xf32>
    %125 = vector.shape_cast %10 : vector<128xf32> to vector<1x1x128xf32>
    %126 = vector.broadcast %125 : vector<1x1x128xf32> to vector<8x32x128xf32>
    %127 = arith.mulf %124, %126 : vector<8x32x128xf32>
    %128 = arith.addf %120, %127 : vector<8x32x128xf32>
    %129 = vector.extract_strided_slice %123 {offsets = [1, 0, 0], sizes = [8, 32, 128], strides = [1, 1, 1]} : vector<10x32x128xf32> to vector<8x32x128xf32>
    %130 = vector.shape_cast %16 : vector<128xf32> to vector<1x1x128xf32>
    %131 = vector.broadcast %130 : vector<1x1x128xf32> to vector<8x32x128xf32>
    %132 = arith.mulf %129, %131 : vector<8x32x128xf32>
    %133 = arith.addf %128, %132 : vector<8x32x128xf32>
    %134 = vector.extract_strided_slice %123 {offsets = [2, 0, 0], sizes = [8, 32, 128], strides = [1, 1, 1]} : vector<10x32x128xf32> to vector<8x32x128xf32>
    %135 = vector.shape_cast %22 : vector<128xf32> to vector<1x1x128xf32>
    %136 = vector.broadcast %135 : vector<1x1x128xf32> to vector<8x32x128xf32>
    %137 = arith.mulf %134, %136 : vector<8x32x128xf32>
    %138 = arith.addf %133, %137 : vector<8x32x128xf32>
    %c1_i32_98 = arith.constant 1 : i32
    %c0_i32_99 = arith.constant 0 : i32
    %c0_i32_100 = arith.constant 0 : i32
    %c0_i32_101 = arith.constant 0 : i32
    %139 = tpu.memref_slice %arg6[%c1_i32_98, %c0_i32_99, %c0_i32_100, %c0_i32_101] : memref<2x10x40x128xf32, #tpu.memory_space<vmem>> -> memref<1x10x40x128xf32, #tpu.memory_space<vmem>>
    %140 = tpu.memref_squeeze %139 : memref<1x10x40x128xf32, #tpu.memory_space<vmem>> -> memref<10x40x128xf32, #tpu.memory_space<vmem>>
    %c0_102 = arith.constant 0 : index
    %c1_103 = arith.constant 1 : index
    %c0_104 = arith.constant 0 : index
    %141 = vector.load %140[%c0_102, %c1_103, %c0_104] : memref<10x40x128xf32, #tpu.memory_space<vmem>>, vector<10x32x128xf32>
    %142 = vector.extract_strided_slice %141 {offsets = [0, 0, 0], sizes = [8, 32, 128], strides = [1, 1, 1]} : vector<10x32x128xf32> to vector<8x32x128xf32>
    %143 = vector.shape_cast %12 : vector<128xf32> to vector<1x1x128xf32>
    %144 = vector.broadcast %143 : vector<1x1x128xf32> to vector<8x32x128xf32>
    %145 = arith.mulf %142, %144 : vector<8x32x128xf32>
    %146 = arith.addf %138, %145 : vector<8x32x128xf32>
    %147 = vector.extract_strided_slice %141 {offsets = [1, 0, 0], sizes = [8, 32, 128], strides = [1, 1, 1]} : vector<10x32x128xf32> to vector<8x32x128xf32>
    %148 = vector.shape_cast %18 : vector<128xf32> to vector<1x1x128xf32>
    %149 = vector.broadcast %148 : vector<1x1x128xf32> to vector<8x32x128xf32>
    %150 = arith.mulf %147, %149 : vector<8x32x128xf32>
    %151 = arith.addf %146, %150 : vector<8x32x128xf32>
    %152 = vector.extract_strided_slice %141 {offsets = [2, 0, 0], sizes = [8, 32, 128], strides = [1, 1, 1]} : vector<10x32x128xf32> to vector<8x32x128xf32>
    %153 = vector.shape_cast %24 : vector<128xf32> to vector<1x1x128xf32>
    %154 = vector.broadcast %153 : vector<1x1x128xf32> to vector<8x32x128xf32>
    %155 = arith.mulf %152, %154 : vector<8x32x128xf32>
    %156 = arith.addf %151, %155 : vector<8x32x128xf32>
    %c1_i32_105 = arith.constant 1 : i32
    %c0_i32_106 = arith.constant 0 : i32
    %c0_i32_107 = arith.constant 0 : i32
    %c0_i32_108 = arith.constant 0 : i32
    %157 = tpu.memref_slice %arg6[%c1_i32_105, %c0_i32_106, %c0_i32_107, %c0_i32_108] : memref<2x10x40x128xf32, #tpu.memory_space<vmem>> -> memref<1x10x40x128xf32, #tpu.memory_space<vmem>>
    %158 = tpu.memref_squeeze %157 : memref<1x10x40x128xf32, #tpu.memory_space<vmem>> -> memref<10x40x128xf32, #tpu.memory_space<vmem>>
    %c0_109 = arith.constant 0 : index
    %c2_110 = arith.constant 2 : index
    %c0_111 = arith.constant 0 : index
    %159 = vector.load %158[%c0_109, %c2_110, %c0_111] : memref<10x40x128xf32, #tpu.memory_space<vmem>>, vector<10x32x128xf32>
    %160 = vector.extract_strided_slice %159 {offsets = [0, 0, 0], sizes = [8, 32, 128], strides = [1, 1, 1]} : vector<10x32x128xf32> to vector<8x32x128xf32>
    %161 = vector.shape_cast %14 : vector<128xf32> to vector<1x1x128xf32>
    %162 = vector.broadcast %161 : vector<1x1x128xf32> to vector<8x32x128xf32>
    %163 = arith.mulf %160, %162 : vector<8x32x128xf32>
    %164 = arith.addf %156, %163 : vector<8x32x128xf32>
    %165 = vector.extract_strided_slice %159 {offsets = [1, 0, 0], sizes = [8, 32, 128], strides = [1, 1, 1]} : vector<10x32x128xf32> to vector<8x32x128xf32>
    %166 = vector.shape_cast %20 : vector<128xf32> to vector<1x1x128xf32>
    %167 = vector.broadcast %166 : vector<1x1x128xf32> to vector<8x32x128xf32>
    %168 = arith.mulf %165, %167 : vector<8x32x128xf32>
    %169 = arith.addf %164, %168 : vector<8x32x128xf32>
    %170 = vector.extract_strided_slice %159 {offsets = [2, 0, 0], sizes = [8, 32, 128], strides = [1, 1, 1]} : vector<10x32x128xf32> to vector<8x32x128xf32>
    %171 = vector.shape_cast %26 : vector<128xf32> to vector<1x1x128xf32>
    %172 = vector.broadcast %171 : vector<1x1x128xf32> to vector<8x32x128xf32>
    %173 = arith.mulf %170, %172 : vector<8x32x128xf32>
    %174 = arith.addf %169, %173 : vector<8x32x128xf32>
    %cst_112 = arith.constant 0.000000e+00 : f32
    %175 = vector.broadcast %cst_112 : f32 to vector<8x32x128xf32>
    %176 = arith.maximumf %174, %175 : vector<8x32x128xf32>
    %177 = vector.shape_cast %176 : vector<8x32x128xf32> to vector<256x128xf32>
    %c0_113 = arith.constant 0 : index
    %c0_114 = arith.constant 0 : index
    %178 = vector.load %arg4[%c0_113, %c0_114] : memref<128x256xf32, #tpu.memory_space<vmem>>, vector<128x256xf32>
    %cst_115 = arith.constant dense<0.000000e+00> : vector<256x256xf32>
    %179 = tpu.matmul %177, %178, %cst_115 {dimension_numbers = #tpu.dot_dimension_numbers<[1], [0], [0], [1], [0, 0, 1, 1], [], []>} : vector<256x128xf32>, vector<128x256xf32>, vector<256x256xf32> -> vector<256x256xf32>
    %cst_116 = arith.constant 0.000000e+00 : f32
    %180 = vector.broadcast %cst_116 : f32 to vector<256x256xf32>
    %181 = arith.maximumf %179, %180 : vector<256x256xf32>
    %182 = vector.shape_cast %181 : vector<256x256xf32> to vector<8x32x256xf32>
    %c0_117 = arith.constant 0 : index
    %c8 = arith.constant 8 : index
    %c0_118 = arith.constant 0 : index
    %c0_119 = arith.constant 0 : index
    %183 = vector.load %arg5[%c0_117, %c8, %c0_118, %c0_119] : memref<1x16x32x256xf32, #tpu.memory_space<vmem>>, vector<1x8x32x256xf32>
    %184 = vector.shape_cast %183 : vector<1x8x32x256xf32> to vector<8x32x256xf32>
    %185 = vector.shape_cast %182 : vector<8x32x256xf32> to vector<1x8x32x256xf32>
    tpu.vector_store %arg5[%c0_117, %c8, %c0_118, %c0_119], %185 {strides = array<i32>} : memref<1x16x32x256xf32, #tpu.memory_space<vmem>>, vector<1x8x32x256xf32>,
    return
  }
  func.func @transform_1(%arg0: i32, %arg1: i32) -> (i32, i32, i32) {
    %c0_i32 = arith.constant 0 : i32
    %c0_i32_0 = arith.constant 0 : i32
    %c0_i32_1 = arith.constant 0 : i32
    %c0_i32_2 = arith.constant 0 : i32
    return %c0_i32, %c0_i32_0, %c0_i32_1 : i32, i32, i32
  }
  func.func @transform_2(%arg0: i32, %arg1: i32) -> (i32, i32) {
    %c0_i32 = arith.constant 0 : i32
    %c0_i32_0 = arith.constant 0 : i32
    %c0_i32_1 = arith.constant 0 : i32
    return %c0_i32, %c0_i32_0 : i32, i32
  }
  func.func @transform_3(%arg0: i32, %arg1: i32) -> (i32, i32, i32, i32) {
    %c0_i32 = arith.constant 0 : i32
    %c0_i32_0 = arith.constant 0 : i32
    %c0_i32_1 = arith.constant 0 : i32
    return %arg0, %arg1, %c0_i32, %c0_i32_0 : i32, i32, i32, i32
  }
}

</mosaic_0001>

<llo_original>
// kernel: tpu_custom_call.1
$region0: #{tpu_custom_call.1}
  #allocation0 [shape = 'u32[]', space=smem, size = 0x4, offset = 0x4, fixed_abs, tag = 'smem constant byte address 0x4 - core index']
  #allocation1 [shape = 'u32[144,128]{1,0:T(1,128)}', space=vmem, size = 0x12000, scoped, tag = 'internal scratch']
  #allocation2 [shape = 'f32[2,10,40,128]{3,2,1,0:T(8,128)}', space=vmem, size = 0x64000, scoped, tag = 'scratch operand']
  #allocation3 [shape = 's32[2]{0}', space=sflag, size = 0x8, scoped, tag = 'scratch operand']
  #allocation10 [shape = 's32[]', space=sflag, size = 0x4, offset = 0, fixed_abs, tag = 'sflag constant byte address 0x0 - dummy sync flag']
  #allocation11 [shape = 's32[]', space=sflag, size = 0x4, offset = 0, fixed_abs, tag = 'sflag constant byte address 0x0 - dummy sync flag']
  #allocation12 [shape = 'u32[]', space=smem, size = 0x4, offset = 0x44, fixed_abs, tag = 'smem constant byte address 0x44 - assertion arg 0']
  #allocation13 [shape = 'u32[]', space=smem, size = 0x4, offset = 0x48, fixed_abs, tag = 'smem constant byte address 0x48 - assertion arg 1']
  #allocation14 [shape = 's32[]', space=sflag, size = 0x4, offset = 0, fixed_abs, tag = 'sflag constant byte address 0x0 - dummy sync flag']
  #allocation15 [shape = 's32[]', space=sflag, size = 0x4, offset = 0, fixed_abs, tag = 'sflag constant byte address 0x0 - dummy sync flag']
  %s0 = inlined_call_operand.hbm [shape: f32[2,34,40,128], index: 0, kind: input, shape index: {}]
  %s1 = inlined_call_operand.hbm [shape: f32[3,3,128], index: 1, kind: input, shape index: {}]
  %s2 = inlined_call_operand.hbm [shape: f32[128,256], index: 2, kind: input, shape index: {}]
  %s3 = inlined_call_operand.hbm [shape: f32[2,32,32,256], index: 3, kind: output, shape index: {}]
  %s4 = sld [smem:[#allocation0]]
  $region57: #{tpu_custom_call.1} parent=0
    _
  %s6 = ssub.s32 1, %s4
  %s7 = scalar_select 0, %s6, %s4
  $region1: #{tpu_custom_call.1} parent=0
    #allocation4 [shape = 'u8[6144]{0}', space=vmem, size = 0x1800, scoped, tag = 'input window, operand 1, single buffered']
    #allocation5 [shape = 's32[2]{0}', space=sflag, size = 0x8, scoped, tag = 'scoped memory for tpu_custom_call.1']
    #allocation6 [shape = 's32[2]{0}', space=sflag, size = 0x8, scoped, tag = 'scoped memory for tpu_custom_call.1']
    #allocation7 [shape = 'u8[131072]{0}', space=vmem, size = 0x20000, scoped, tag = 'input window, operand 2, single buffered']
    #allocation8 [shape = 's32[1]{0}', space=sflag, size = 0x4, scoped, tag = 'scoped memory for tpu_custom_call.1']
    #allocation9 [shape = 'u8[1048576]{0}', space=vmem, size = 0x100000, scoped, tag = 'output window, operand 0']
    %8 = vsyncpa [#allocation5], 0
    %9 = vsyncpa [#allocation8], 0
    %10 = vsyncpa [#allocation6], 0
    %s11 = scalar_lea.sflag [#allocation6], 1
    %12 = vsyncpa %s11, 0
    loop: start=0, step=1, limit=6
    $region2: #{tpu_custom_call.1} parent=1 // loop_pre_header
      _
    $region3: #{tpu_custom_call.1} parent=1 // loop_header
      %s14 = sphi 0, %s18
      %p15 = scmp.ge.s32.totalorder %s14, 6
      %s21 = sphi 0, %s33
      %s22 = sphi 0, %s29
      %s23 = sphi 0, %s21
      %s24 = sphi 0, %s22
      %s25 = sphi 0, %s23
      %s26 = sphi 0, %s24
      %s34 = sphi 0, %s34
      %s36 = sphi 0, %s34
      %s37 = sphi 0, %s36
      %s51 = sphi 0, %s37
      %s55 = sphi 0, %s55
      %s57 = sphi 0, %s55
      %s58 = sphi 0, %s57
      %s72 = sphi 0, %s58
      %s80 = sphi 0, %s82
      %s83 = sphi 0, %s80
      %s84 = sphi 0, %s83
      %s100 = sphi 0, %s84
    $region4: #{tpu_custom_call.1} parent=1 // loop_header_branch
      %17 = sbr.rel (%p15) target = $region8
    $region5: #{tpu_custom_call.1} parent=1 // loop_body
      %s19 = ssub.s32 %s14, 1
      %s20 = ssub.s32 %s14, 2
      %s27 = sadd.s32 1, %s22
      %p28 = scmp.ge.s32.totalorder %s27, 2
      %s29 = scalar_select %p28, 0, %s27
      %s30 = sadd.s32 1, %s21
      %s31 = scalar_select %p28, %s30, %s21
      %p32 = scmp.ge.s32.totalorder %s31, 2
      %s33 = scalar_select %p32, 0, %s31
      %s35 = sadd.s32 %s34, 1
      %p38 = scmp.eq.s32.totalorder %s14, 3
      %p39 = scmp.ne.s32.totalorder %s34, %s36
      %p40 = scmp.eq.s32.totalorder %s14, 0
      %p41 = por %p39, %p40
      %p42 = scmp.ne.s32.totalorder %s34, %s36
      %p43 = scmp.eq.s32.totalorder %s19, 3
      %p44 = por %p42, %p43
      %p45 = scmp.ne.s32.totalorder %s36, %s37
      %p46 = scmp.eq.s32.totalorder %s19, 0
      %p47 = por %p45, %p46
      %p48 = scmp.ne.s32.totalorder %s36, %s37
      %p49 = scmp.eq.s32.totalorder %s20, 3
      %p50 = por %p48, %p49
      %p52 = scmp.ne.s32.totalorder %s37, %s51
      %p53 = scmp.eq.s32.totalorder %s20, 0
      %p54 = por %p52, %p53
      %s56 = sadd.s32 %s55, 1
      %p59 = scmp.eq.s32.totalorder %s14, 3
      %p60 = scmp.ne.s32.totalorder %s55, %s57
      %p61 = scmp.eq.s32.totalorder %s14, 0
      %p62 = por %p60, %p61
      %p63 = scmp.ne.s32.totalorder %s55, %s57
      %p64 = scmp.eq.s32.totalorder %s19, 3
      %p65 = por %p63, %p64
      %p66 = scmp.ne.s32.totalorder %s57, %s58
      %p67 = scmp.eq.s32.totalorder %s19, 0
      %p68 = por %p66, %p67
      %p69 = scmp.ne.s32.totalorder %s57, %s58
      %p70 = scmp.eq.s32.totalorder %s20, 3
      %p71 = por %p69, %p70
      %p73 = scmp.ne.s32.totalorder %s58, %s72
      %p74 = scmp.eq.s32.totalorder %s20, 0
      %p75 = por %p73, %p74
      %s76 = ssub.s32 %s21, %s33
      %s77 = ssub.s32 %s22, %s29
      %s78 = sor.u32 %s76, %s77
      %p79 = scmp.eq.s32.totalorder %s78, 0
      %s81 = sadd.s32 %s80, 1
      %s82 = scalar_select %p79, %s80, %s81
      %p85 = pneg %p79
      %p86 = scmp.eq.s32.totalorder %s14, 3
      %p87 = por %p85, %p86
      %p88 = scmp.ne.s32.totalorder %s80, %s83
      %p89 = scmp.eq.s32.totalorder %s14, 0
      %p90 = por %p88, %p89
      %p91 = scmp.ne.s32.totalorder %s80, %s83
      %p92 = scmp.eq.s32.totalorder %s19, 3
      %p93 = por %p91, %p92
      %p94 = scmp.ne.s32.totalorder %s83, %s84
      %p95 = scmp.eq.s32.totalorder %s19, 0
      %p96 = por %p94, %p95
      %p97 = scmp.ne.s32.totalorder %s83, %s84
      %p98 = scmp.eq.s32.totalorder %s20, 3
      %p99 = por %p97, %p98
      %p101 = scmp.ne.s32.totalorder %s84, %s100
      %p102 = scmp.eq.s32.totalorder %s20, 0
      %p103 = por %p101, %p102
      %p104 = scmp.le.s32.totalorder 1, %s14
      %p105 = scmp.lt.s32.totalorder %s14, 5
      %p106 = pnand %p104, %p105
      %p107 = pneg %p106
      // Predicated region
      $region9: #{tpu_custom_call.1} parent=5 // pred_check
        _
      $region10: #{tpu_custom_call.1} parent=5 // pred_check_branch
        %109 = sbr.rel (%p106) target = $region12
      $region11: #{tpu_custom_call.1} parent=5 // pred_region
        %s110 = ssub.s32 %s14, 1
        // Predicated region
        $region13: #{tpu_custom_call.1} parent=11 // pred_check
          %p111 = pneg %p47
        $region14: #{tpu_custom_call.1} parent=11 // pred_check_branch
          %113 = sbr.rel (%p111) target = $region16
        $region15: #{tpu_custom_call.1} parent=11 // pred_region
          %s115 = ssub.s32 192, 192
          %116 = vsyncadd [#allocation5], %s115
          %s117 = sshll.u32 [#allocation4], 4
          %s118 = int_to_ptr.vmem [resolvable:$true] %s117
          %123 = dma.hbm_to_vmem [thread:$0]  %s1, 192, %s118, [#allocation5], 64, 64, 4
        $region16: #{tpu_custom_call.1} parent=11 // pred_fallthru
          _
        // Predicated region
        $region17: #{tpu_custom_call.1} parent=11 // pred_check
          %p124 = pneg %p68
        $region18: #{tpu_custom_call.1} parent=11 // pred_check_branch
          %126 = sbr.rel (%p124) target = $region20
        $region19: #{tpu_custom_call.1} parent=11 // pred_region
          %s128 = ssub.s32 4096, 4096
          %129 = vsyncadd [#allocation8], %s128
          %s130 = sshll.u32 [#allocation7], 4
          %s131 = int_to_ptr.vmem [resolvable:$true] %s130
          %136 = dma.hbm_to_vmem [thread:$0]  %s2, 4096, %s131, [#allocation8], 256, 256, 16
        $region20: #{tpu_custom_call.1} parent=11 // pred_fallthru
          _
      $region12: #{tpu_custom_call.1} parent=5 // pred_fallthru
        _
      %p137 = scmp.lt.s32.totalorder %s14, 4
      // Predicated region
      $region21: #{tpu_custom_call.1} parent=5 // pred_check
        %p138 = pneg %p137
      $region22: #{tpu_custom_call.1} parent=5 // pred_check_branch
        %140 = sbr.rel (%p138) target = $region24
      $region23: #{tpu_custom_call.1} parent=5 // pred_region
        _
      $region24: #{tpu_custom_call.1} parent=5 // pred_fallthru
        _
      %p141 = scmp.le.s32.totalorder 1, %s14
      %p142 = scmp.lt.s32.totalorder %s14, 5
      %p143 = pnand %p141, %p142
      %p144 = pneg %p143
      // Predicated region
      $region25: #{tpu_custom_call.1} parent=5 // pred_check
        _
      $region26: #{tpu_custom_call.1} parent=5 // pred_check_branch
        %146 = sbr.rel (%p143) target = $region28
      $region27: #{tpu_custom_call.1} parent=5 // pred_region
        %s147 = ssub.s32 %s14, 1
        // Predicated region
        $region29: #{tpu_custom_call.1} parent=27 // pred_check
          %p148 = pneg %p47
        $region30: #{tpu_custom_call.1} parent=27 // pred_check_branch
          %150 = sbr.rel (%p148) target = $region32
        $region31: #{tpu_custom_call.1} parent=27 // pred_region
          %151 = dma.done [#allocation5], 192
        $region32: #{tpu_custom_call.1} parent=27 // pred_fallthru
          _
        // Predicated region
        $region33: #{tpu_custom_call.1} parent=27 // pred_check
          %p152 = pneg %p68
        $region34: #{tpu_custom_call.1} parent=27 // pred_check_branch
          %154 = sbr.rel (%p152) target = $region36
        $region35: #{tpu_custom_call.1} parent=27 // pred_region
          %155 = dma.done [#allocation8], 4096
        $region36: #{tpu_custom_call.1} parent=27 // pred_fallthru
          _
        %p156 = pneg %p47
        %p157 = pneg %p44
        %p158 = pneg %p68
        %p159 = pneg %p65
        %p160 = pneg %p96
        %p161 = pneg %p93
        %s162 = sand.u32 %s83, 1
        %s163 = scalar_lea.sflag [#allocation6], %s162
        %s164 = sand.u32 %s83, 1
        %s165 = smul.addr %s164, 1024
        %s166 = scalar_lea.vmem [#allocation9], %s165
        %s167 = smul.u32 16, %s24
        %s168 = smul.u32 %s24, 16
        %s169 = smul.u32 %s168, 40
        %s170 = smul.u32 %s23, 1360
        %s171 = sadd.s32 %s169, %s170
        %s172 = smul.addr %s171, 16
        %s173 = scalar_lea.hbm %s0, %s172
        // Predicated region
        $region37: #{tpu_custom_call.1} parent=27 // pred_check
          _
        $region38: #{tpu_custom_call.1} parent=27 // pred_check_branch
          %175 = sbr.rel target = $region40
        $region39: #{tpu_custom_call.1} parent=27 // pred_region
          %176 = sst [smem:[#allocation12]] [#allocation11]
          %177 = sst [smem:[#allocation13]] [#allocation10]
        $region40: #{tpu_custom_call.1} parent=27 // pred_fallthru
          _
        %179 = shalt.err (0)
        %s181 = sshll.u32 [#allocation2], 4
        %s182 = int_to_ptr.vmem [resolvable:$true] %s181
        %184 = dma.hbm_to_vmem [thread:$0]  %s173, 6400, %s182, [#allocation3]
        %v185 = vld [vmem:[#allocation4] sm:$0x1]
        %v186 = vld [vmem:[#allocation4 + $0x1] sm:$0x1]
        %v187 = vld [vmem:[#allocation4 + $0x2] sm:$0x1]
        %s188 = scalar_lea.vmem [#allocation4], 4
        %v189 = vld [vmem:[%s188] sm:$0x1]
        %v190 = vld [vmem:[%s188 + $0x1] sm:$0x1]
        %v191 = vld [vmem:[%s188 + $0x2] sm:$0x1]
        %s192 = scalar_lea.vmem [#allocation4], 8
        %v193 = vld [vmem:[%s192] sm:$0x1]
        %v194 = vld [vmem:[%s192 + $0x1] sm:$0x1]
        %v195 = vld [vmem:[%s192 + $0x2] sm:$0x1]
        %s196 = smul.u32 10, 40
        %s197 = smul.u32 %s196, 1
        %s198 = sshll.u32 %s197, 4
        %199 = dma.done [#allocation3], %s198
        %s200 = smul.u32 %s24, 2
        %s201 = sadd.s32 %s200, 1
        %s202 = smul.u32 %s201, 8
        %s203 = smul.u32 %s202, 40
        %s204 = sadd.s32 %s203, %s170
        %s205 = smul.addr %s204, 16
        %s206 = scalar_lea.hbm %s0, %s205
        %s207 = scalar_lea.vmem [#allocation2], 400
        %s208 = scalar_lea.sflag [#allocation3], 1
        // Predicated region
        $region41: #{tpu_custom_call.1} parent=27 // pred_check
          _
        $region42: #{tpu_custom_call.1} parent=27 // pred_check_branch
          %210 = sbr.rel target = $region44
        $region43: #{tpu_custom_call.1} parent=27 // pred_region
          %211 = sst [smem:[#allocation12]] [#allocation15]
          %212 = sst [smem:[#allocation13]] [#allocation14]
        $region44: #{tpu_custom_call.1} parent=27 // pred_fallthru
          _
        %214 = shalt.err (0)
        %s216 = sshll.u32 %s207, 4
        %s217 = int_to_ptr.vmem [resolvable:$true] %s216
        %219 = dma.hbm_to_vmem [thread:$0]  %s206, 6400, %s217, %s208
        %v220 = vld [vmem:[#allocation2] sm:$0xff]
        %v221 = vld [vmem:[#allocation2 + $0x8] sm:$0xff]
        %v222 = vld [vmem:[#allocation2 + $0x10] sm:$0xff]
        %v223 = vld [vmem:[#allocation2 + $0x18] sm:$0xff]
        %v224 = vld [vmem:[#allocation2 + $0x28] sm:$0xff]
        %v225 = vld [vmem:[#allocation2 + $0x30] sm:$0xff]
        %v226 = vld [vmem:[#allocation2 + $0x38] sm:$0xff]
        %v227 = vld [vmem:[#allocation2 + $0x40] sm:$0xff]
        %v228 = vld [vmem:[#allocation2 + $0x50] sm:$0xff]
        %v229 = vld [vmem:[#allocation2 + $0x58] sm:$0xff]
        %v230 = vld [vmem:[#allocation2 + $0x60] sm:$0xff]
        %v231 = vld [vmem:[#allocation2 + $0x68] sm:$0xff]
        %v232 = vld [vmem:[#allocation2 + $0x78] sm:$0xff]
        %v233 = vld [vmem:[#allocation2 + $0x80] sm:$0xff]
        %v234 = vld [vmem:[#allocation2 + $0x88] sm:$0xff]
        %v235 = vld [vmem:[#allocation2 + $0x90] sm:$0xff]
        %v236 = vld [vmem:[#allocation2 + $0xa0] sm:$0xff]
        %v237 = vld [vmem:[#allocation2 + $0xa8] sm:$0xff]
        %v238 = vld [vmem:[#allocation2 + $0xb0] sm:$0xff]
        %v239 = vld [vmem:[#allocation2 + $0xb8] sm:$0xff]
        %v240 = vld [vmem:[#allocation2 + $0xc8] sm:$0xff]
        %v241 = vld [vmem:[#allocation2 + $0xd0] sm:$0xff]
        %v242 = vld [vmem:[#allocation2 + $0xd8] sm:$0xff]
        %v243 = vld [vmem:[#allocation2 + $0xe0] sm:$0xff]
        %v244 = vld [vmem:[#allocation2 + $0xf0] sm:$0xff]
        %v245 = vld [vmem:[#allocation2 + $0xf8] sm:$0xff]
        %v246 = vld [vmem:[#allocation2 + $0x100] sm:$0xff]
        %v247 = vld [vmem:[#allocation2 + $0x108] sm:$0xff]
        %v248 = vld [vmem:[#allocation2 + $0x118] sm:$0xff]
        %v249 = vld [vmem:[#allocation2 + $0x120] sm:$0xff]
        %v250 = vld [vmem:[#allocation2 + $0x128] sm:$0xff]
        %v251 = vld [vmem:[#allocation2 + $0x130] sm:$0xff]
        %v252 = vld [vmem:[#allocation2 + $0x140] sm:$0xff]
        %v253 = vld [vmem:[#allocation2 + $0x148] sm:$0xff]
        %v254 = vld [vmem:[#allocation2 + $0x150] sm:$0xff]
        %v255 = vld [vmem:[#allocation2 + $0x158] sm:$0xff]
        %v256 = vld [vmem:[#allocation2 + $0x168] sm:$0xff]
        %v257 = vld [vmem:[#allocation2 + $0x170] sm:$0xff]
        %v258 = vld [vmem:[#allocation2 + $0x178] sm:$0xff]
        %v259 = vld [vmem:[#allocation2 + $0x180] sm:$0xff]
        %v260 = vlaneseq
        %v261 = vshrl.u32 %v260, 7
        %v262 = vsub.s32 0, %v261
        %v263 = vrot.slane %v185, %v262
        %v264 = vmul.f32 %v220, %v263
        %v265 = vmul.f32 %v221, %v263
        %v266 = vmul.f32 %v222, %v263
        %v267 = vmul.f32 %v223, %v263
        %v268 = vmul.f32 %v224, %v263
        %v269 = vmul.f32 %v225, %v263
        %v270 = vmul.f32 %v226, %v263
        %v271 = vmul.f32 %v227, %v263
        %v272 = vmul.f32 %v228, %v263
        %v273 = vmul.f32 %v229, %v263
        %v274 = vmul.f32 %v230, %v263
        %v275 = vmul.f32 %v231, %v263
        %v276 = vmul.f32 %v232, %v263
        %v277 = vmul.f32 %v233, %v263
        %v278 = vmul.f32 %v234, %v263
        %v279 = vmul.f32 %v235, %v263
        %v280 = vmul.f32 %v236, %v263
        %v281 = vmul.f32 %v237, %v263
        %v282 = vmul.f32 %v238, %v263
        %v283 = vmul.f32 %v239, %v263
        %v284 = vmul.f32 %v240, %v263
        %v285 = vmul.f32 %v241, %v263
        %v286 = vmul.f32 %v242, %v263
        %v287 = vmul.f32 %v243, %v263
        %v288 = vmul.f32 %v244, %v263
        %v289 = vmul.f32 %v245, %v263
        %v290 = vmul.f32 %v246, %v263
        %v291 = vmul.f32 %v247, %v263
        %v292 = vmul.f32 %v248, %v263
        %v293 = vmul.f32 %v249, %v263
        %v294 = vmul.f32 %v250, %v263
        %v295 = vmul.f32 %v251, %v263
        %v296 = vadd.f32 %v264, 0.0
        %v297 = vadd.f32 %v265, 0.0
        %v298 = vadd.f32 %v266, 0.0
        %v299 = vadd.f32 %v267, 0.0
        %v300 = vadd.f32 %v268, 0.0
        %v301 = vadd.f32 %v269, 0.0
        %v302 = vadd.f32 %v270, 0.0
        %v303 = vadd.f32 %v271, 0.0
        %v304 = vadd.f32 %v272, 0.0
        %v305 = vadd.f32 %v273, 0.0
        %v306 = vadd.f32 %v274, 0.0
        %v307 = vadd.f32 %v275, 0.0
        %v308 = vadd.f32 %v276, 0.0
        %v309 = vadd.f32 %v277, 0.0
        %v310 = vadd.f32 %v278, 0.0
        %v311 = vadd.f32 %v279, 0.0
        %v312 = vadd.f32 %v280, 0.0
        %v313 = vadd.f32 %v281, 0.0
        %v314 = vadd.f32 %v282, 0.0
        %v315 = vadd.f32 %v283, 0.0
        %v316 = vadd.f32 %v284, 0.0
        %v317 = vadd.f32 %v285, 0.0
        %v318 = vadd.f32 %v286, 0.0
        %v319 = vadd.f32 %v287, 0.0
        %v320 = vadd.f32 %v288, 0.0
        %v321 = vadd.f32 %v289, 0.0
        %v322 = vadd.f32 %v290, 0.0
        %v323 = vadd.f32 %v291, 0.0
        %v324 = vadd.f32 %v292, 0.0
        %v325 = vadd.f32 %v293, 0.0
        %v326 = vadd.f32 %v294, 0.0
        %v327 = vadd.f32 %v295, 0.0
        %v328 = vlaneseq
        %v329 = vshrl.u32 %v328, 7
        %v330 = vsub.s32 0, %v329
        %v331 = vrot.slane %v189, %v330
        %v332 = vmul.f32 %v224, %v331
        %v333 = vmul.f32 %v225, %v331
        %v334 = vmul.f32 %v226, %v331
        %v335 = vmul.f32 %v227, %v331
        %v336 = vmul.f32 %v228, %v331
        %v337 = vmul.f32 %v229, %v331
        %v338 = vmul.f32 %v230, %v331
        %v339 = vmul.f32 %v231, %v331
        %v340 = vmul.f32 %v232, %v331
        %v341 = vmul.f32 %v233, %v331
        %v342 = vmul.f32 %v234, %v331
        %v343 = vmul.f32 %v235, %v331
        %v344 = vmul.f32 %v236, %v331
        %v345 = vmul.f32 %v237, %v331
        %v346 = vmul.f32 %v238, %v331
        %v347 = vmul.f32 %v239, %v331
        %v348 = vmul.f32 %v240, %v331
        %v349 = vmul.f32 %v241, %v331
        %v350 = vmul.f32 %v242, %v331
        %v351 = vmul.f32 %v243, %v331
        %v352 = vmul.f32 %v244, %v331
        %v353 = vmul.f32 %v245, %v331
        %v354 = vmul.f32 %v246, %v331
        %v355 = vmul.f32 %v247, %v331
        %v356 = vmul.f32 %v248, %v331
        %v357 = vmul.f32 %v249, %v331
        %v358 = vmul.f32 %v250, %v331
        %v359 = vmul.f32 %v251, %v331
        %v360 = vmul.f32 %v252, %v331
        %v361 = vmul.f32 %v253, %v331
        %v362 = vmul.f32 %v254, %v331
        %v363 = vmul.f32 %v255, %v331
        %v364 = vadd.f32 %v296, %v332
        %v365 = vadd.f32 %v297, %v333
        %v366 = vadd.f32 %v298, %v334
        %v367 = vadd.f32 %v299, %v335
        %v368 = vadd.f32 %v300, %v336
        %v369 = vadd.f32 %v301, %v337
        %v370 = vadd.f32 %v302, %v338
        %v371 = vadd.f32 %v303, %v339
        %v372 = vadd.f32 %v304, %v340
        %v373 = vadd.f32 %v305, %v341
        %v374 = vadd.f32 %v306, %v342
        %v375 = vadd.f32 %v307, %v343
        %v376 = vadd.f32 %v308, %v344
        %v377 = vadd.f32 %v309, %v345
        %v378 = vadd.f32 %v310, %v346
        %v379 = vadd.f32 %v311, %v347
        %v380 = vadd.f32 %v312, %v348
        %v381 = vadd.f32 %v313, %v349
        %v382 = vadd.f32 %v314, %v350
        %v383 = vadd.f32 %v315, %v351
        %v384 = vadd.f32 %v316, %v352
        %v385 = vadd.f32 %v317, %v353
        %v386 = vadd.f32 %v318, %v354
        %v387 = vadd.f32 %v319, %v355
        %v388 = vadd.f32 %v320, %v356
        %v389 = vadd.f32 %v321, %v357
        %v390 = vadd.f32 %v322, %v358
        %v391 = vadd.f32 %v323, %v359
        %v392 = vadd.f32 %v324, %v360
        %v393 = vadd.f32 %v325, %v361
        %v394 = vadd.f32 %v326, %v362
        %v395 = vadd.f32 %v327, %v363
        %v396 = vlaneseq
        %v397 = vshrl.u32 %v396, 7
        %v398 = vsub.s32 0, %v397
        %v399 = vrot.slane %v193, %v398
        %v400 = vmul.f32 %v228, %v399
        %v401 = vmul.f32 %v229, %v399
        %v402 = vmul.f32 %v230, %v399
        %v403 = vmul.f32 %v231, %v399
        %v404 = vmul.f32 %v232, %v399
        %v405 = vmul.f32 %v233, %v399
        %v406 = vmul.f32 %v234, %v399
        %v407 = vmul.f32 %v235, %v399
        %v408 = vmul.f32 %v236, %v399
        %v409 = vmul.f32 %v237, %v399
        %v410 = vmul.f32 %v238, %v399
        %v411 = vmul.f32 %v239, %v399
        %v412 = vmul.f32 %v240, %v399
        %v413 = vmul.f32 %v241, %v399
        %v414 = vmul.f32 %v242, %v399
        %v415 = vmul.f32 %v243, %v399
        %v416 = vmul.f32 %v244, %v399
        %v417 = vmul.f32 %v245, %v399
        %v418 = vmul.f32 %v246, %v399
        %v419 = vmul.f32 %v247, %v399
        %v420 = vmul.f32 %v248, %v399
        %v421 = vmul.f32 %v249, %v399
        %v422 = vmul.f32 %v250, %v399
        %v423 = vmul.f32 %v251, %v399
        %v424 = vmul.f32 %v252, %v399
        %v425 = vmul.f32 %v253, %v399
        %v426 = vmul.f32 %v254, %v399
        %v427 = vmul.f32 %v255, %v399
        %v428 = vmul.f32 %v256, %v399
        %v429 = vmul.f32 %v257, %v399
        %v430 = vmul.f32 %v258, %v399
        %v431 = vmul.f32 %v259, %v399
        %v432 = vadd.f32 %v364, %v400
        %v433 = vadd.f32 %v365, %v401
        %v434 = vadd.f32 %v366, %v402
        %v435 = vadd.f32 %v367, %v403
        %v436 = vadd.f32 %v368, %v404
        %v437 = vadd.f32 %v369, %v405
        %v438 = vadd.f32 %v370, %v406
        %v439 = vadd.f32 %v371, %v407
        %v440 = vadd.f32 %v372, %v408
        %v441 = vadd.f32 %v373, %v409
        %v442 = vadd.f32 %v374, %v410
        %v443 = vadd.f32 %v375, %v411
        %v444 = vadd.f32 %v376, %v412
        %v445 = vadd.f32 %v377, %v413
        %v446 = vadd.f32 %v378, %v414
        %v447 = vadd.f32 %v379, %v415
        %v448 = vadd.f32 %v380, %v416
        %v449 = vadd.f32 %v381, %v417
        %v450 = vadd.f32 %v382, %v418
        %v451 = vadd.f32 %v383, %v419
        %v452 = vadd.f32 %v384, %v420
        %v453 = vadd.f32 %v385, %v421
        %v454 = vadd.f32 %v386, %v422
        %v455 = vadd.f32 %v387, %v423
        %v456 = vadd.f32 %v388, %v424
        %v457 = vadd.f32 %v389, %v425
        %v458 = vadd.f32 %v390, %v426
        %v459 = vadd.f32 %v391, %v427
        %v460 = vadd.f32 %v392, %v428
        %v461 = vadd.f32 %v393, %v429
        %v462 = vadd.f32 %v394, %v430
        %v463 = vadd.f32 %v395, %v431
        %v464 = vld [vmem:[#allocation2 + $0x1] sm:$0xff]
        %v465 = vld [vmem:[#allocation2 + $0x9] sm:$0xff]
        %v466 = vld [vmem:[#allocation2 + $0x11] sm:$0xff]
        %v467 = vld [vmem:[#allocation2 + $0x19] sm:$0xff]
        %v468 = vld [vmem:[#allocation2 + $0x29] sm:$0xff]
        %v469 = vld [vmem:[#allocation2 + $0x31] sm:$0xff]
        %v470 = vld [vmem:[#allocation2 + $0x39] sm:$0xff]
        %v471 = vld [vmem:[#allocation2 + $0x41] sm:$0xff]
        %v472 = vld [vmem:[#allocation2 + $0x51] sm:$0xff]
        %v473 = vld [vmem:[#allocation2 + $0x59] sm:$0xff]
        %v474 = vld [vmem:[#allocation2 + $0x61] sm:$0xff]
        %v475 = vld [vmem:[#allocation2 + $0x69] sm:$0xff]
        %v476 = vld [vmem:[#allocation2 + $0x79] sm:$0xff]
        %v477 = vld [vmem:[#allocation2 + $0x81] sm:$0xff]
        %v478 = vld [vmem:[#allocation2 + $0x89] sm:$0xff]
        %v479 = vld [vmem:[#allocation2 + $0x91] sm:$0xff]
        %v480 = vld [vmem:[#allocation2 + $0xa1] sm:$0xff]
        %v481 = vld [vmem:[#allocation2 + $0xa9] sm:$0xff]
        %v482 = vld [vmem:[#allocation2 + $0xb1] sm:$0xff]
        %v483 = vld [vmem:[#allocation2 + $0xb9] sm:$0xff]
        %v484 = vld [vmem:[#allocation2 + $0xc9] sm:$0xff]
        %v485 = vld [vmem:[#allocation2 + $0xd1] sm:$0xff]
        %v486 = vld [vmem:[#allocation2 + $0xd9] sm:$0xff]
        %v487 = vld [vmem:[#allocation2 + $0xe1] sm:$0xff]
        %v488 = vld [vmem:[#allocation2 + $0xf1] sm:$0xff]
        %v489 = vld [vmem:[#allocation2 + $0xf9] sm:$0xff]
        %v490 = vld [vmem:[#allocation2 + $0x101] sm:$0xff]
        %v491 = vld [vmem:[#allocation2 + $0x109] sm:$0xff]
        %v492 = vld [vmem:[#allocation2 + $0x119] sm:$0xff]
        %v493 = vld [vmem:[#allocation2 + $0x121] sm:$0xff]
        %v494 = vld [vmem:[#allocation2 + $0x129] sm:$0xff]
        %v495 = vld [vmem:[#allocation2 + $0x131] sm:$0xff]
        %v496 = vld [vmem:[#allocation2 + $0x141] sm:$0xff]
        %v497 = vld [vmem:[#allocation2 + $0x149] sm:$0xff]
        %v498 = vld [vmem:[#allocation2 + $0x151] sm:$0xff]
        %v499 = vld [vmem:[#allocation2 + $0x159] sm:$0xff]
        %v500 = vld [vmem:[#allocation2 + $0x169] sm:$0xff]
        %v501 = vld [vmem:[#allocation2 + $0x171] sm:$0xff]
        %v502 = vld [vmem:[#allocation2 + $0x179] sm:$0xff]
        %v503 = vld [vmem:[#allocation2 + $0x181] sm:$0xff]
        %v504 = vlaneseq
        %v505 = vshrl.u32 %v504, 7
        %v506 = vsub.s32 0, %v505
        %v507 = vrot.slane %v186, %v506
        %v508 = vmul.f32 %v464, %v507
        %v509 = vmul.f32 %v465, %v507
        %v510 = vmul.f32 %v466, %v507
        %v511 = vmul.f32 %v467, %v507
        %v512 = vmul.f32 %v468, %v507
        %v513 = vmul.f32 %v469, %v507
        %v514 = vmul.f32 %v470, %v507
        %v515 = vmul.f32 %v471, %v507
        %v516 = vmul.f32 %v472, %v507
        %v517 = vmul.f32 %v473, %v507
        %v518 = vmul.f32 %v474, %v507
        %v519 = vmul.f32 %v475, %v507
        %v520 = vmul.f32 %v476, %v507
        %v521 = vmul.f32 %v477, %v507
        %v522 = vmul.f32 %v478, %v507
        %v523 = vmul.f32 %v479, %v507
        %v524 = vmul.f32 %v480, %v507
        %v525 = vmul.f32 %v481, %v507
        %v526 = vmul.f32 %v482, %v507
        %v527 = vmul.f32 %v483, %v507
        %v528 = vmul.f32 %v484, %v507
        %v529 = vmul.f32 %v485, %v507
        %v530 = vmul.f32 %v486, %v507
        %v531 = vmul.f32 %v487, %v507
        %v532 = vmul.f32 %v488, %v507
        %v533 = vmul.f32 %v489, %v507
        %v534 = vmul.f32 %v490, %v507
        %v535 = vmul.f32 %v491, %v507
        %v536 = vmul.f32 %v492, %v507
        %v537 = vmul.f32 %v493, %v507
        %v538 = vmul.f32 %v494, %v507
        %v539 = vmul.f32 %v495, %v507
        %v540 = vadd.f32 %v432, %v508
        %v541 = vadd.f32 %v433, %v509
        %v542 = vadd.f32 %v434, %v510
        %v543 = vadd.f32 %v435, %v511
        %v544 = vadd.f32 %v436, %v512
        %v545 = vadd.f32 %v437, %v513
        %v546 = vadd.f32 %v438, %v514
        %v547 = vadd.f32 %v439, %v515
        %v548 = vadd.f32 %v440, %v516
        %v549 = vadd.f32 %v441, %v517
        %v550 = vadd.f32 %v442, %v518
        %v551 = vadd.f32 %v443, %v519
        %v552 = vadd.f32 %v444, %v520
        %v553 = vadd.f32 %v445, %v521
        %v554 = vadd.f32 %v446, %v522
        %v555 = vadd.f32 %v447, %v523
        %v556 = vadd.f32 %v448, %v524
        %v557 = vadd.f32 %v449, %v525
        %v558 = vadd.f32 %v450, %v526
        %v559 = vadd.f32 %v451, %v527
        %v560 = vadd.f32 %v452, %v528
        %v561 = vadd.f32 %v453, %v529
        %v562 = vadd.f32 %v454, %v530
        %v563 = vadd.f32 %v455, %v531
        %v564 = vadd.f32 %v456, %v532
        %v565 = vadd.f32 %v457, %v533
        %v566 = vadd.f32 %v458, %v534
        %v567 = vadd.f32 %v459, %v535
        %v568 = vadd.f32 %v460, %v536
        %v569 = vadd.f32 %v461, %v537
        %v570 = vadd.f32 %v462, %v538
        %v571 = vadd.f32 %v463, %v539
        %v572 = vlaneseq
        %v573 = vshrl.u32 %v572, 7
        %v574 = vsub.s32 0, %v573
        %v575 = vrot.slane %v190, %v574
        %v576 = vmul.f32 %v468, %v575
        %v577 = vmul.f32 %v469, %v575
        %v578 = vmul.f32 %v470, %v575
        %v579 = vmul.f32 %v471, %v575
        %v580 = vmul.f32 %v472, %v575
        %v581 = vmul.f32 %v473, %v575
        %v582 = vmul.f32 %v474, %v575
        %v583 = vmul.f32 %v475, %v575
        %v584 = vmul.f32 %v476, %v575
        %v585 = vmul.f32 %v477, %v575
        %v586 = vmul.f32 %v478, %v575
        %v587 = vmul.f32 %v479, %v575
        %v588 = vmul.f32 %v480, %v575
        %v589 = vmul.f32 %v481, %v575
        %v590 = vmul.f32 %v482, %v575
        %v591 = vmul.f32 %v483, %v575
        %v592 = vmul.f32 %v484, %v575
        %v593 = vmul.f32 %v485, %v575
        %v594 = vmul.f32 %v486, %v575
        %v595 = vmul.f32 %v487, %v575
        %v596 = vmul.f32 %v488, %v575
        %v597 = vmul.f32 %v489, %v575
        %v598 = vmul.f32 %v490, %v575
        %v599 = vmul.f32 %v491, %v575
        %v600 = vmul.f32 %v492, %v575
        %v601 = vmul.f32 %v493, %v575
        %v602 = vmul.f32 %v494, %v575
        %v603 = vmul.f32 %v495, %v575
        %v604 = vmul.f32 %v496, %v575
        %v605 = vmul.f32 %v497, %v575
        %v606 = vmul.f32 %v498, %v575
        %v607 = vmul.f32 %v499, %v575
        %v608 = vadd.f32 %v540, %v576
        %v609 = vadd.f32 %v541, %v577
        %v610 = vadd.f32 %v542, %v578
        %v611 = vadd.f32 %v543, %v579
        %v612 = vadd.f32 %v544, %v580
        %v613 = vadd.f32 %v545, %v581
        %v614 = vadd.f32 %v546, %v582
        %v615 = vadd.f32 %v547, %v583
        %v616 = vadd.f32 %v548, %v584
        %v617 = vadd.f32 %v549, %v585
        %v618 = vadd.f32 %v550, %v586
        %v619 = vadd.f32 %v551, %v587
        %v620 = vadd.f32 %v552, %v588
        %v621 = vadd.f32 %v553, %v589
        %v622 = vadd.f32 %v554, %v590
        %v623 = vadd.f32 %v555, %v591
        %v624 = vadd.f32 %v556, %v592
        %v625 = vadd.f32 %v557, %v593
        %v626 = vadd.f32 %v558, %v594
        %v627 = vadd.f32 %v559, %v595
        %v628 = vadd.f32 %v560, %v596
        %v629 = vadd.f32 %v561, %v597
        %v630 = vadd.f32 %v562, %v598
        %v631 = vadd.f32 %v563, %v599
        %v632 = vadd.f32 %v564, %v600
        %v633 = vadd.f32 %v565, %v601
        %v634 = vadd.f32 %v566, %v602
        %v635 = vadd.f32 %v567, %v603
        %v636 = vadd.f32 %v568, %v604
        %v637 = vadd.f32 %v569, %v605
        %v638 = vadd.f32 %v570, %v606
        %v639 = vadd.f32 %v571, %v607
        %v640 = vlaneseq
        %v641 = vshrl.u32 %v640, 7
        %v642 = vsub.s32 0, %v641
        %v643 = vrot.slane %v194, %v642
        %v644 = vmul.f32 %v472, %v643
        %v645 = vmul.f32 %v473, %v643
        %v646 = vmul.f32 %v474, %v643
        %v647 = vmul.f32 %v475, %v643
        %v648 = vmul.f32 %v476, %v643
        %v649 = vmul.f32 %v477, %v643
        %v650 = vmul.f32 %v478, %v643
        %v651 = vmul.f32 %v479, %v643
        %v652 = vmul.f32 %v480, %v643
        %v653 = vmul.f32 %v481, %v643
        %v654 = vmul.f32 %v482, %v643
        %v655 = vmul.f32 %v483, %v643
        %v656 = vmul.f32 %v484, %v643
        %v657 = vmul.f32 %v485, %v643
        %v658 = vmul.f32 %v486, %v643
        %v659 = vmul.f32 %v487, %v643
        %v660 = vmul.f32 %v488, %v643
        %v661 = vmul.f32 %v489, %v643
        %v662 = vmul.f32 %v490, %v643
        %v663 = vmul.f32 %v491, %v643
        %v664 = vmul.f32 %v492, %v643
        %v665 = vmul.f32 %v493, %v643
        %v666 = vmul.f32 %v494, %v643
        %v667 = vmul.f32 %v495, %v643
        %v668 = vmul.f32 %v496, %v643
        %v669 = vmul.f32 %v497, %v643
        %v670 = vmul.f32 %v498, %v643
        %v671 = vmul.f32 %v499, %v643
        %v672 = vmul.f32 %v500, %v643
        %v673 = vmul.f32 %v501, %v643
        %v674 = vmul.f32 %v502, %v643
        %v675 = vmul.f32 %v503, %v643
        %v676 = vadd.f32 %v608, %v644
        %v677 = vadd.f32 %v609, %v645
        %v678 = vadd.f32 %v610, %v646
        %v679 = vadd.f32 %v611, %v647
        %v680 = vadd.f32 %v612, %v648
        %v681 = vadd.f32 %v613, %v649
        %v682 = vadd.f32 %v614, %v650
        %v683 = vadd.f32 %v615, %v651
        %v684 = vadd.f32 %v616, %v652
        %v685 = vadd.f32 %v617, %v653
        %v686 = vadd.f32 %v618, %v654
        %v687 = vadd.f32 %v619, %v655
        %v688 = vadd.f32 %v620, %v656
        %v689 = vadd.f32 %v621, %v657
        %v690 = vadd.f32 %v622, %v658
        %v691 = vadd.f32 %v623, %v659
        %v692 = vadd.f32 %v624, %v660
        %v693 = vadd.f32 %v625, %v661
        %v694 = vadd.f32 %v626, %v662
        %v695 = vadd.f32 %v627, %v663
        %v696 = vadd.f32 %v628, %v664
        %v697 = vadd.f32 %v629, %v665
        %v698 = vadd.f32 %v630, %v666
        %v699 = vadd.f32 %v631, %v667
        %v700 = vadd.f32 %v632, %v668
        %v701 = vadd.f32 %v633, %v669
        %v702 = vadd.f32 %v634, %v670
        %v703 = vadd.f32 %v635, %v671
        %v704 = vadd.f32 %v636, %v672
        %v705 = vadd.f32 %v637, %v673
        %v706 = vadd.f32 %v638, %v674
        %v707 = vadd.f32 %v639, %v675
        %v708 = vld [vmem:[#allocation2 + $0x2] sm:$0xff]
        %v709 = vld [vmem:[#allocation2 + $0xa] sm:$0xff]
        %v710 = vld [vmem:[#allocation2 + $0x12] sm:$0xff]
        %v711 = vld [vmem:[#allocation2 + $0x1a] sm:$0xff]
        %v712 = vld [vmem:[#allocation2 + $0x2a] sm:$0xff]
        %v713 = vld [vmem:[#allocation2 + $0x32] sm:$0xff]
        %v714 = vld [vmem:[#allocation2 + $0x3a] sm:$0xff]
        %v715 = vld [vmem:[#allocation2 + $0x42] sm:$0xff]
        %v716 = vld [vmem:[#allocation2 + $0x52] sm:$0xff]
        %v717 = vld [vmem:[#allocation2 + $0x5a] sm:$0xff]
        %v718 = vld [vmem:[#allocation2 + $0x62] sm:$0xff]
        %v719 = vld [vmem:[#allocation2 + $0x6a] sm:$0xff]
        %v720 = vld [vmem:[#allocation2 + $0x7a] sm:$0xff]
        %v721 = vld [vmem:[#allocation2 + $0x82] sm:$0xff]
        %v722 = vld [vmem:[#allocation2 + $0x8a] sm:$0xff]
        %v723 = vld [vmem:[#allocation2 + $0x92] sm:$0xff]
        %v724 = vld [vmem:[#allocation2 + $0xa2] sm:$0xff]
        %v725 = vld [vmem:[#allocation2 + $0xaa] sm:$0xff]
        %v726 = vld [vmem:[#allocation2 + $0xb2] sm:$0xff]
        %v727 = vld [vmem:[#allocation2 + $0xba] sm:$0xff]
        %v728 = vld [vmem:[#allocation2 + $0xca] sm:$0xff]
        %v729 = vld [vmem:[#allocation2 + $0xd2] sm:$0xff]
        %v730 = vld [vmem:[#allocation2 + $0xda] sm:$0xff]
        %v731 = vld [vmem:[#allocation2 + $0xe2] sm:$0xff]
        %v732 = vld [vmem:[#allocation2 + $0xf2] sm:$0xff]
        %v733 = vld [vmem:[#allocation2 + $0xfa] sm:$0xff]
        %v734 = vld [vmem:[#allocation2 + $0x102] sm:$0xff]
        %v735 = vld [vmem:[#allocation2 + $0x10a] sm:$0xff]
        %v736 = vld [vmem:[#allocation2 + $0x11a] sm:$0xff]
        %v737 = vld [vmem:[#allocation2 + $0x122] sm:$0xff]
        %v738 = vld [vmem:[#allocation2 + $0x12a] sm:$0xff]
        %v739 = vld [vmem:[#allocation2 + $0x132] sm:$0xff]
        %v740 = vld [vmem:[#allocation2 + $0x142] sm:$0xff]
        %v741 = vld [vmem:[#allocation2 + $0x14a] sm:$0xff]
        %v742 = vld [vmem:[#allocation2 + $0x152] sm:$0xff]
        %v743 = vld [vmem:[#allocation2 + $0x15a] sm:$0xff]
        %v744 = vld [vmem:[#allocation2 + $0x16a] sm:$0xff]
        %v745 = vld [vmem:[#allocation2 + $0x172] sm:$0xff]
        %v746 = vld [vmem:[#allocation2 + $0x17a] sm:$0xff]
        %v747 = vld [vmem:[#allocation2 + $0x182] sm:$0xff]
        %v748 = vlaneseq
        %v749 = vshrl.u32 %v748, 7
        %v750 = vsub.s32 0, %v749
        %v751 = vrot.slane %v187, %v750
        %v752 = vmul.f32 %v708, %v751
        %v753 = vmul.f32 %v709, %v751
        %v754 = vmul.f32 %v710, %v751
        %v755 = vmul.f32 %v711, %v751
        %v756 = vmul.f32 %v712, %v751
        %v757 = vmul.f32 %v713, %v751
        %v758 = vmul.f32 %v714, %v751
        %v759 = vmul.f32 %v715, %v751
        %v760 = vmul.f32 %v716, %v751
        %v761 = vmul.f32 %v717, %v751
        %v762 = vmul.f32 %v718, %v751
        %v763 = vmul.f32 %v719, %v751
        %v764 = vmul.f32 %v720, %v751
        %v765 = vmul.f32 %v721, %v751
        %v766 = vmul.f32 %v722, %v751
        %v767 = vmul.f32 %v723, %v751
        %v768 = vmul.f32 %v724, %v751
        %v769 = vmul.f32 %v725, %v751
        %v770 = vmul.f32 %v726, %v751
        %v771 = vmul.f32 %v727, %v751
        %v772 = vmul.f32 %v728, %v751
        %v773 = vmul.f32 %v729, %v751
        %v774 = vmul.f32 %v730, %v751
        %v775 = vmul.f32 %v731, %v751
        %v776 = vmul.f32 %v732, %v751
        %v777 = vmul.f32 %v733, %v751
        %v778 = vmul.f32 %v734, %v751
        %v779 = vmul.f32 %v735, %v751
        %v780 = vmul.f32 %v736, %v751
        %v781 = vmul.f32 %v737, %v751
        %v782 = vmul.f32 %v738, %v751
        %v783 = vmul.f32 %v739, %v751
        %v784 = vadd.f32 %v676, %v752
        %v785 = vadd.f32 %v677, %v753
        %v786 = vadd.f32 %v678, %v754
        %v787 = vadd.f32 %v679, %v755
        %v788 = vadd.f32 %v680, %v756
        %v789 = vadd.f32 %v681, %v757
        %v790 = vadd.f32 %v682, %v758
        %v791 = vadd.f32 %v683, %v759
        %v792 = vadd.f32 %v684, %v760
        %v793 = vadd.f32 %v685, %v761
        %v794 = vadd.f32 %v686, %v762
        %v795 = vadd.f32 %v687, %v763
        %v796 = vadd.f32 %v688, %v764
        %v797 = vadd.f32 %v689, %v765
        %v798 = vadd.f32 %v690, %v766
        %v799 = vadd.f32 %v691, %v767
        %v800 = vadd.f32 %v692, %v768
        %v801 = vadd.f32 %v693, %v769
        %v802 = vadd.f32 %v694, %v770
        %v803 = vadd.f32 %v695, %v771
        %v804 = vadd.f32 %v696, %v772
        %v805 = vadd.f32 %v697, %v773
        %v806 = vadd.f32 %v698, %v774
        %v807 = vadd.f32 %v699, %v775
        %v808 = vadd.f32 %v700, %v776
        %v809 = vadd.f32 %v701, %v777
        %v810 = vadd.f32 %v702, %v778
        %v811 = vadd.f32 %v703, %v779
        %v812 = vadd.f32 %v704, %v780
        %v813 = vadd.f32 %v705, %v781
        %v814 = vadd.f32 %v706, %v782
        %v815 = vadd.f32 %v707, %v783
        %v816 = vlaneseq
        %v817 = vshrl.u32 %v816, 7
        %v818 = vsub.s32 0, %v817
        %v819 = vrot.slane %v191, %v818
        %v820 = vmul.f32 %v712, %v819
        %v821 = vmul.f32 %v713, %v819
        %v822 = vmul.f32 %v714, %v819
        %v823 = vmul.f32 %v715, %v819
        %v824 = vmul.f32 %v716, %v819
        %v825 = vmul.f32 %v717, %v819
        %v826 = vmul.f32 %v718, %v819
        %v827 = vmul.f32 %v719, %v819
        %v828 = vmul.f32 %v720, %v819
        %v829 = vmul.f32 %v721, %v819
        %v830 = vmul.f32 %v722, %v819
        %v831 = vmul.f32 %v723, %v819
        %v832 = vmul.f32 %v724, %v819
        %v833 = vmul.f32 %v725, %v819
        %v834 = vmul.f32 %v726, %v819
        %v835 = vmul.f32 %v727, %v819
        %v836 = vmul.f32 %v728, %v819
        %v837 = vmul.f32 %v729, %v819
        %v838 = vmul.f32 %v730, %v819
        %v839 = vmul.f32 %v731, %v819
        %v840 = vmul.f32 %v732, %v819
        %v841 = vmul.f32 %v733, %v819
        %v842 = vmul.f32 %v734, %v819
        %v843 = vmul.f32 %v735, %v819
        %v844 = vmul.f32 %v736, %v819
        %v845 = vmul.f32 %v737, %v819
        %v846 = vmul.f32 %v738, %v819
        %v847 = vmul.f32 %v739, %v819
        %v848 = vmul.f32 %v740, %v819
        %v849 = vmul.f32 %v741, %v819
        %v850 = vmul.f32 %v742, %v819
        %v851 = vmul.f32 %v743, %v819
        %v852 = vadd.f32 %v784, %v820
        %v853 = vadd.f32 %v785, %v821
        %v854 = vadd.f32 %v786, %v822
        %v855 = vadd.f32 %v787, %v823
        %v856 = vadd.f32 %v788, %v824
        %v857 = vadd.f32 %v789, %v825
        %v858 = vadd.f32 %v790, %v826
        %v859 = vadd.f32 %v791, %v827
        %v860 = vadd.f32 %v792, %v828
        %v861 = vadd.f32 %v793, %v829
        %v862 = vadd.f32 %v794, %v830
        %v863 = vadd.f32 %v795, %v831
        %v864 = vadd.f32 %v796, %v832
        %v865 = vadd.f32 %v797, %v833
        %v866 = vadd.f32 %v798, %v834
        %v867 = vadd.f32 %v799, %v835
        %v868 = vadd.f32 %v800, %v836
        %v869 = vadd.f32 %v801, %v837
        %v870 = vadd.f32 %v802, %v838
        %v871 = vadd.f32 %v803, %v839
        %v872 = vadd.f32 %v804, %v840
        %v873 = vadd.f32 %v805, %v841
        %v874 = vadd.f32 %v806, %v842
        %v875 = vadd.f32 %v807, %v843
        %v876 = vadd.f32 %v808, %v844
        %v877 = vadd.f32 %v809, %v845
        %v878 = vadd.f32 %v810, %v846
        %v879 = vadd.f32 %v811, %v847
        %v880 = vadd.f32 %v812, %v848
        %v881 = vadd.f32 %v813, %v849
        %v882 = vadd.f32 %v814, %v850
        %v883 = vadd.f32 %v815, %v851
        %v884 = vlaneseq
        %v885 = vshrl.u32 %v884, 7
        %v886 = vsub.s32 0, %v885
        %v887 = vrot.slane %v195, %v886
        %v888 = vmul.f32 %v716, %v887
        %v889 = vmul.f32 %v717, %v887
        %v890 = vmul.f32 %v718, %v887
        %v891 = vmul.f32 %v719, %v887
        %v892 = vmul.f32 %v720, %v887
        %v893 = vmul.f32 %v721, %v887
        %v894 = vmul.f32 %v722, %v887
        %v895 = vmul.f32 %v723, %v887
        %v896 = vmul.f32 %v724, %v887
        %v897 = vmul.f32 %v725, %v887
        %v898 = vmul.f32 %v726, %v887
        %v899 = vmul.f32 %v727, %v887
        %v900 = vmul.f32 %v728, %v887
        %v901 = vmul.f32 %v729, %v887
        %v902 = vmul.f32 %v730, %v887
        %v903 = vmul.f32 %v731, %v887
        %v904 = vmul.f32 %v732, %v887
        %v905 = vmul.f32 %v733, %v887
        %v906 = vmul.f32 %v734, %v887
        %v907 = vmul.f32 %v735, %v887
        %v908 = vmul.f32 %v736, %v887
        %v909 = vmul.f32 %v737, %v887
        %v910 = vmul.f32 %v738, %v887
        %v911 = vmul.f32 %v739, %v887
        %v912 = vmul.f32 %v740, %v887
        %v913 = vmul.f32 %v741, %v887
        %v914 = vmul.f32 %v742, %v887
        %v915 = vmul.f32 %v743, %v887
        %v916 = vmul.f32 %v744, %v887
        %v917 = vmul.f32 %v745, %v887
        %v918 = vmul.f32 %v746, %v887
        %v919 = vmul.f32 %v747, %v887
        %v920 = vadd.f32 %v852, %v888
        %v921 = vadd.f32 %v853, %v889
        %v922 = vadd.f32 %v854, %v890
        %v923 = vadd.f32 %v855, %v891
        %v924 = vadd.f32 %v856, %v892
        %v925 = vadd.f32 %v857, %v893
        %v926 = vadd.f32 %v858, %v894
        %v927 = vadd.f32 %v859, %v895
        %v928 = vadd.f32 %v860, %v896
        %v929 = vadd.f32 %v861, %v897
        %v930 = vadd.f32 %v862, %v898
        %v931 = vadd.f32 %v863, %v899
        %v932 = vadd.f32 %v864, %v900
        %v933 = vadd.f32 %v865, %v901
        %v934 = vadd.f32 %v866, %v902
        %v935 = vadd.f32 %v867, %v903
        %v936 = vadd.f32 %v868, %v904
        %v937 = vadd.f32 %v869, %v905
        %v938 = vadd.f32 %v870, %v906
        %v939 = vadd.f32 %v871, %v907
        %v940 = vadd.f32 %v872, %v908
        %v941 = vadd.f32 %v873, %v909
        %v942 = vadd.f32 %v874, %v910
        %v943 = vadd.f32 %v875, %v911
        %v944 = vadd.f32 %v876, %v912
        %v945 = vadd.f32 %v877, %v913
        %v946 = vadd.f32 %v878, %v914
        %v947 = vadd.f32 %v879, %v915
        %v948 = vadd.f32 %v880, %v916
        %v949 = vadd.f32 %v881, %v917
        %v950 = vadd.f32 %v882, %v918
        %v951 = vadd.f32 %v883, %v919
        %v952 = vmax.f32 %v920, 0.0
        %v953 = vmax.f32 %v921, 0.0
        %v954 = vmax.f32 %v922, 0.0
        %v955 = vmax.f32 %v923, 0.0
        %v956 = vmax.f32 %v924, 0.0
        %v957 = vmax.f32 %v925, 0.0
        %v958 = vmax.f32 %v926, 0.0
        %v959 = vmax.f32 %v927, 0.0
        %v960 = vmax.f32 %v928, 0.0
        %v961 = vmax.f32 %v929, 0.0
        %v962 = vmax.f32 %v930, 0.0
        %v963 = vmax.f32 %v931, 0.0
        %v964 = vmax.f32 %v932, 0.0
        %v965 = vmax.f32 %v933, 0.0
        %v966 = vmax.f32 %v934, 0.0
        %v967 = vmax.f32 %v935, 0.0
        %v968 = vmax.f32 %v936, 0.0
        %v969 = vmax.f32 %v937, 0.0
        %v970 = vmax.f32 %v938, 0.0
        %v971 = vmax.f32 %v939, 0.0
        %v972 = vmax.f32 %v940, 0.0
        %v973 = vmax.f32 %v941, 0.0
        %v974 = vmax.f32 %v942, 0.0
        %v975 = vmax.f32 %v943, 0.0
        %v976 = vmax.f32 %v944, 0.0
        %v977 = vmax.f32 %v945, 0.0
        %v978 = vmax.f32 %v946, 0.0
        %v979 = vmax.f32 %v947, 0.0
        %v980 = vmax.f32 %v948, 0.0
        %v981 = vmax.f32 %v949, 0.0
        %v982 = vmax.f32 %v950, 0.0
        %v983 = vmax.f32 %v951, 0.0
        %v984 = vld [vmem:[#allocation7] sm:$0xff]
        %v985 = vld [vmem:[#allocation7 + $0x8] sm:$0xff]
        %v986 = vld [vmem:[#allocation7 + $0x10] sm:$0xff]
        %v987 = vld [vmem:[#allocation7 + $0x18] sm:$0xff]
        %v988 = vld [vmem:[#allocation7 + $0x20] sm:$0xff]
        %v989 = vld [vmem:[#allocation7 + $0x28] sm:$0xff]
        %v990 = vld [vmem:[#allocation7 + $0x30] sm:$0xff]
        %v991 = vld [vmem:[#allocation7 + $0x38] sm:$0xff]
        %v992 = vld [vmem:[#allocation7 + $0x40] sm:$0xff]
        %v993 = vld [vmem:[#allocation7 + $0x48] sm:$0xff]
        %v994 = vld [vmem:[#allocation7 + $0x50] sm:$0xff]
        %v995 = vld [vmem:[#allocation7 + $0x58] sm:$0xff]
        %v996 = vld [vmem:[#allocation7 + $0x60] sm:$0xff]
        %v997 = vld [vmem:[#allocation7 + $0x68] sm:$0xff]
        %v998 = vld [vmem:[#allocation7 + $0x70] sm:$0xff]
        %v999 = vld [vmem:[#allocation7 + $0x78] sm:$0xff]
        %v1000 = vld [vmem:[#allocation7 + $0x80] sm:$0xff]
        %v1001 = vld [vmem:[#allocation7 + $0x88] sm:$0xff]
        %v1002 = vld [vmem:[#allocation7 + $0x90] sm:$0xff]
        %v1003 = vld [vmem:[#allocation7 + $0x98] sm:$0xff]
        %v1004 = vld [vmem:[#allocation7 + $0xa0] sm:$0xff]
        %v1005 = vld [vmem:[#allocation7 + $0xa8] sm:$0xff]
        %v1006 = vld [vmem:[#allocation7 + $0xb0] sm:$0xff]
        %v1007 = vld [vmem:[#allocation7 + $0xb8] sm:$0xff]
        %v1008 = vld [vmem:[#allocation7 + $0xc0] sm:$0xff]
        %v1009 = vld [vmem:[#allocation7 + $0xc8] sm:$0xff]
        %v1010 = vld [vmem:[#allocation7 + $0xd0] sm:$0xff]
        %v1011 = vld [vmem:[#allocation7 + $0xd8] sm:$0xff]
        %v1012 = vld [vmem:[#allocation7 + $0xe0] sm:$0xff]
        %v1013 = vld [vmem:[#allocation7 + $0xe8] sm:$0xff]
        %v1014 = vld [vmem:[#allocation7 + $0xf0] sm:$0xff]
        %v1015 = vld [vmem:[#allocation7 + $0xf8] sm:$0xff]
        %1016 = vmatprep.subr.mxu0 %v985
        %1017 = vmatpush1.msra.mxu0 %v984
        %1018 = vmatprep.subr.mxu0 %v987
        %1019 = vmatpush1.msra.mxu0 %v986
        %1020 = vmatprep.subr.mxu0 %v989
        %1021 = vmatpush1.msra.mxu0 %v988
        %1022 = vmatprep.subr.mxu0 %v991
        %1023 = vmatpush1.msra.mxu0 %v990
        %1024 = vmatprep.subr.mxu0 %v993
        %1025 = vmatpush1.msra.mxu0 %v992
        %1026 = vmatprep.subr.mxu0 %v995
        %1027 = vmatpush1.msra.mxu0 %v994
        %1028 = vmatprep.subr.mxu0 %v997
        %1029 = vmatpush1.msra.mxu0 %v996
        %1030 = vmatprep.subr.mxu0 %v999
        %1031 = vmatpush1.msra.mxu0 %v998
        %1032 = vmatprep.subr.mxu0 %v1001
        %1033 = vmatpush1.msra.mxu0 %v1000
        %1034 = vmatprep.subr.mxu0 %v1003
        %1035 = vmatpush1.msra.mxu0 %v1002
        %1036 = vmatprep.subr.mxu0 %v1005
        %1037 = vmatpush1.msra.mxu0 %v1004
        %1038 = vmatprep.subr.mxu0 %v1007
        %1039 = vmatpush1.msra.mxu0 %v1006
        %1040 = vmatprep.subr.mxu0 %v1009
        %1041 = vmatpush1.msra.mxu0 %v1008
        %1042 = vmatprep.subr.mxu0 %v1011
        %1043 = vmatpush1.msra.mxu0 %v1010
        %1044 = vmatprep.subr.mxu0 %v1013
        %1045 = vmatpush1.msra.mxu0 %v1012
        %1046 = vmatprep.subr.mxu0 %v1015
        %1047 = vmatpush1.msra.mxu0 %v1014
        %1048 = vmatprep.subr.mxu0 0.0
        %1049 = vmatpush1.msra.mxu0 0.0
        %1050 = vmatprep.subr.mxu0 0.0
        %1051 = vmatpush1.msra.mxu0 0.0
        %1052 = vmatprep.subr.mxu0 0.0
        %1053 = vmatpush1.msra.mxu0 0.0
        %1054 = vmatprep.subr.mxu0 0.0
        %1055 = vmatpush1.msra.mxu0 0.0
        %1056 = vmatprep.subr.mxu0 0.0
        %1057 = vmatpush1.msra.mxu0 0.0
        %1058 = vmatprep.subr.mxu0 0.0
        %1059 = vmatpush1.msra.mxu0 0.0
        %1060 = vmatprep.subr.mxu0 0.0
        %1061 = vmatpush1.msra.mxu0 0.0
        %1062 = vmatprep.subr.mxu0 0.0
        %1063 = vmatpush1.msra.mxu0 0.0
        %1064 = vmatprep.subr.mxu0 0.0
        %1065 = vmatpush1.msra.mxu0 0.0
        %1066 = vmatprep.subr.mxu0 0.0
        %1067 = vmatpush1.msra.mxu0 0.0
        %1068 = vmatprep.subr.mxu0 0.0
        %1069 = vmatpush1.msra.mxu0 0.0
        %1070 = vmatprep.subr.mxu0 0.0
        %1071 = vmatpush1.msra.mxu0 0.0
        %1072 = vmatprep.subr.mxu0 0.0
        %1073 = vmatpush1.msra.mxu0 0.0
        %1074 = vmatprep.subr.mxu0 0.0
        %1075 = vmatpush1.msra.mxu0 0.0
        %1076 = vmatprep.subr.mxu0 0.0
        %1077 = vmatpush1.msra.mxu0 0.0
        %1078 = vmatprep.subr.mxu0 0.0
        %1079 = vmatpush1.msra.mxu0 0.0
        %1080 = vmatprep.mubr.f32.mxu0 0.0
        %1081 = vmatmul.mubr.f32.gmra.mrb[0].mxu0 %v952
        %v1082 = vpop.f32.mrb[0].mxu0
        %v1083 = vadd.f32 0.0, %v1082
        %v1084 = vpop.f32.mrb[0].mxu0
        %v1085 = vadd.f32 0.0, %v1084
        %1086 = vmatprep.mubr.f32.mxu0 0.0
        %1087 = vmatmul.mubr.f32.gmra.mrb[0].mxu0 %v953
        %v1088 = vpop.f32.mrb[0].mxu0
        %v1089 = vadd.f32 0.0, %v1088
        %v1090 = vpop.f32.mrb[0].mxu0
        %v1091 = vadd.f32 0.0, %v1090
        %1092 = vmatprep.mubr.f32.mxu0 0.0
        %1093 = vmatmul.mubr.f32.gmra.mrb[0].mxu0 %v954
        %v1094 = vpop.f32.mrb[0].mxu0
        %v1095 = vadd.f32 0.0, %v1094
        %v1096 = vpop.f32.mrb[0].mxu0
        %v1097 = vadd.f32 0.0, %v1096
        %1098 = vmatprep.mubr.f32.mxu0 0.0
        %1099 = vmatmul.mubr.f32.gmra.mrb[0].mxu0 %v955
        %v1100 = vpop.f32.mrb[0].mxu0
        %v1101 = vadd.f32 0.0, %v1100
        %v1102 = vpop.f32.mrb[0].mxu0
        %v1103 = vadd.f32 0.0, %v1102
        %1104 = vmatprep.mubr.f32.mxu0 0.0
        %1105 = vmatmul.mubr.f32.gmra.mrb[0].mxu0 %v956
        %v1106 = vpop.f32.mrb[0].mxu0
        %v1107 = vadd.f32 0.0, %v1106
        %v1108 = vpop.f32.mrb[0].mxu0
        %v1109 = vadd.f32 0.0, %v1108
        %1110 = vmatprep.mubr.f32.mxu0 0.0
        %1111 = vmatmul.mubr.f32.gmra.mrb[0].mxu0 %v957
        %v1112 = vpop.f32.mrb[0].mxu0
        %v1113 = vadd.f32 0.0, %v1112
        %v1114 = vpop.f32.mrb[0].mxu0
        %v1115 = vadd.f32 0.0, %v1114
        %1116 = vmatprep.mubr.f32.mxu0 0.0
        %1117 = vmatmul.mubr.f32.gmra.mrb[0].mxu0 %v958
        %v1118 = vpop.f32.mrb[0].mxu0
        %v1119 = vadd.f32 0.0, %v1118
        %v1120 = vpop.f32.mrb[0].mxu0
        %v1121 = vadd.f32 0.0, %v1120
        %1122 = vmatprep.mubr.f32.mxu0 0.0
        %1123 = vmatmul.mubr.f32.gmra.mrb[0].mxu0 %v959
        %v1124 = vpop.f32.mrb[0].mxu0
        %v1125 = vadd.f32 0.0, %v1124
        %v1126 = vpop.f32.mrb[0].mxu0
        %v1127 = vadd.f32 0.0, %v1126
        %1128 = vmatprep.mubr.f32.mxu0 0.0
        %1129 = vmatmul.mubr.f32.gmra.mrb[0].mxu0 %v960
        %v1130 = vpop.f32.mrb[0].mxu0
        %v1131 = vadd.f32 0.0, %v1130
        %v1132 = vpop.f32.mrb[0].mxu0
        %v1133 = vadd.f32 0.0, %v1132
        %1134 = vmatprep.mubr.f32.mxu0 0.0
        %1135 = vmatmul.mubr.f32.gmra.mrb[0].mxu0 %v961
        %v1136 = vpop.f32.mrb[0].mxu0
        %v1137 = vadd.f32 0.0, %v1136
        %v1138 = vpop.f32.mrb[0].mxu0
        %v1139 = vadd.f32 0.0, %v1138
        %1140 = vmatprep.mubr.f32.mxu0 0.0
        %1141 = vmatmul.mubr.f32.gmra.mrb[0].mxu0 %v962
        %v1142 = vpop.f32.mrb[0].mxu0
        %v1143 = vadd.f32 0.0, %v1142
        %v1144 = vpop.f32.mrb[0].mxu0
        %v1145 = vadd.f32 0.0, %v1144
        %1146 = vmatprep.mubr.f32.mxu0 0.0
        %1147 = vmatmul.mubr.f32.gmra.mrb[0].mxu0 %v963
        %v1148 = vpop.f32.mrb[0].mxu0
        %v1149 = vadd.f32 0.0, %v1148
        %v1150 = vpop.f32.mrb[0].mxu0
        %v1151 = vadd.f32 0.0, %v1150
        %1152 = vmatprep.mubr.f32.mxu0 0.0
        %1153 = vmatmul.mubr.f32.gmra.mrb[0].mxu0 %v964
        %v1154 = vpop.f32.mrb[0].mxu0
        %v1155 = vadd.f32 0.0, %v1154
        %v1156 = vpop.f32.mrb[0].mxu0
        %v1157 = vadd.f32 0.0, %v1156
        %1158 = vmatprep.mubr.f32.mxu0 0.0
        %1159 = vmatmul.mubr.f32.gmra.mrb[0].mxu0 %v965
        %v1160 = vpop.f32.mrb[0].mxu0
        %v1161 = vadd.f32 0.0, %v1160
        %v1162 = vpop.f32.mrb[0].mxu0
        %v1163 = vadd.f32 0.0, %v1162
        %1164 = vmatprep.mubr.f32.mxu0 0.0
        %1165 = vmatmul.mubr.f32.gmra.mrb[0].mxu0 %v966
        %v1166 = vpop.f32.mrb[0].mxu0
        %v1167 = vadd.f32 0.0, %v1166
        %v1168 = vpop.f32.mrb[0].mxu0
        %v1169 = vadd.f32 0.0, %v1168
        %1170 = vmatprep.mubr.f32.mxu0 0.0
        %1171 = vmatmul.mubr.f32.gmra.mrb[0].mxu0 %v967
        %v1172 = vpop.f32.mrb[0].mxu0
        %v1173 = vadd.f32 0.0, %v1172
        %v1174 = vpop.f32.mrb[0].mxu0
        %v1175 = vadd.f32 0.0, %v1174
        %1176 = vmatprep.mubr.f32.mxu0 0.0
        %1177 = vmatmul.mubr.f32.gmra.mrb[0].mxu0 %v968
        %v1178 = vpop.f32.mrb[0].mxu0
        %v1179 = vadd.f32 0.0, %v1178
        %v1180 = vpop.f32.mrb[0].mxu0
        %v1181 = vadd.f32 0.0, %v1180
        %1182 = vmatprep.mubr.f32.mxu0 0.0
        %1183 = vmatmul.mubr.f32.gmra.mrb[0].mxu0 %v969
        %v1184 = vpop.f32.mrb[0].mxu0
        %v1185 = vadd.f32 0.0, %v1184
        %v1186 = vpop.f32.mrb[0].mxu0
        %v1187 = vadd.f32 0.0, %v1186
        %1188 = vmatprep.mubr.f32.mxu0 0.0
        %1189 = vmatmul.mubr.f32.gmra.mrb[0].mxu0 %v970
        %v1190 = vpop.f32.mrb[0].mxu0
        %v1191 = vadd.f32 0.0, %v1190
        %v1192 = vpop.f32.mrb[0].mxu0
        %v1193 = vadd.f32 0.0, %v1192
        %1194 = vmatprep.mubr.f32.mxu0 0.0
        %1195 = vmatmul.mubr.f32.gmra.mrb[0].mxu0 %v971
        %v1196 = vpop.f32.mrb[0].mxu0
        %v1197 = vadd.f32 0.0, %v1196
        %v1198 = vpop.f32.mrb[0].mxu0
        %v1199 = vadd.f32 0.0, %v1198
        %1200 = vmatprep.mubr.f32.mxu0 0.0
        %1201 = vmatmul.mubr.f32.gmra.mrb[0].mxu0 %v972
        %v1202 = vpop.f32.mrb[0].mxu0
        %v1203 = vadd.f32 0.0, %v1202
        %v1204 = vpop.f32.mrb[0].mxu0
        %v1205 = vadd.f32 0.0, %v1204
        %1206 = vmatprep.mubr.f32.mxu0 0.0
        %1207 = vmatmul.mubr.f32.gmra.mrb[0].mxu0 %v973
        %v1208 = vpop.f32.mrb[0].mxu0
        %v1209 = vadd.f32 0.0, %v1208
        %v1210 = vpop.f32.mrb[0].mxu0
        %v1211 = vadd.f32 0.0, %v1210
        %1212 = vmatprep.mubr.f32.mxu0 0.0
        %1213 = vmatmul.mubr.f32.gmra.mrb[0].mxu0 %v974
        %v1214 = vpop.f32.mrb[0].mxu0
        %v1215 = vadd.f32 0.0, %v1214
        %v1216 = vpop.f32.mrb[0].mxu0
        %v1217 = vadd.f32 0.0, %v1216
        %1218 = vmatprep.mubr.f32.mxu0 0.0
        %1219 = vmatmul.mubr.f32.gmra.mrb[0].mxu0 %v975
        %v1220 = vpop.f32.mrb[0].mxu0
        %v1221 = vadd.f32 0.0, %v1220
        %v1222 = vpop.f32.mrb[0].mxu0
        %v1223 = vadd.f32 0.0, %v1222
        %1224 = vmatprep.mubr.f32.mxu0 0.0
        %1225 = vmatmul.mubr.f32.gmra.mrb[0].mxu0 %v976
        %v1226 = vpop.f32.mrb[0].mxu0
        %v1227 = vadd.f32 0.0, %v1226
        %v1228 = vpop.f32.mrb[0].mxu0
        %v1229 = vadd.f32 0.0, %v1228
        %1230 = vmatprep.mubr.f32.mxu0 0.0
        %1231 = vmatmul.mubr.f32.gmra.mrb[0].mxu0 %v977
        %v1232 = vpop.f32.mrb[0].mxu0
        %v1233 = vadd.f32 0.0, %v1232
        %v1234 = vpop.f32.mrb[0].mxu0
        %v1235 = vadd.f32 0.0, %v1234
        %1236 = vmatprep.mubr.f32.mxu0 0.0
        %1237 = vmatmul.mubr.f32.gmra.mrb[0].mxu0 %v978
        %v1238 = vpop.f32.mrb[0].mxu0
        %v1239 = vadd.f32 0.0, %v1238
        %v1240 = vpop.f32.mrb[0].mxu0
        %v1241 = vadd.f32 0.0, %v1240
        %1242 = vmatprep.mubr.f32.mxu0 0.0
        %1243 = vmatmul.mubr.f32.gmra.mrb[0].mxu0 %v979
        %v1244 = vpop.f32.mrb[0].mxu0
        %v1245 = vadd.f32 0.0, %v1244
        %v1246 = vpop.f32.mrb[0].mxu0
        %v1247 = vadd.f32 0.0, %v1246
        %1248 = vmatprep.mubr.f32.mxu0 0.0
        %1249 = vmatmul.mubr.f32.gmra.mrb[0].mxu0 %v980
        %v1250 = vpop.f32.mrb[0].mxu0
        %v1251 = vadd.f32 0.0, %v1250
        %v1252 = vpop.f32.mrb[0].mxu0
        %v1253 = vadd.f32 0.0, %v1252
        %1254 = vmatprep.mubr.f32.mxu0 0.0
        %1255 = vmatmul.mubr.f32.gmra.mrb[0].mxu0 %v981
        %v1256 = vpop.f32.mrb[0].mxu0
        %v1257 = vadd.f32 0.0, %v1256
        %v1258 = vpop.f32.mrb[0].mxu0
        %v1259 = vadd.f32 0.0, %v1258
        %1260 = vmatprep.mubr.f32.mxu0 0.0
        %1261 = vmatmul.mubr.f32.gmra.mrb[0].mxu0 %v982
        %v1262 = vpop.f32.mrb[0].mxu0
        %v1263 = vadd.f32 0.0, %v1262
        %v1264 = vpop.f32.mrb[0].mxu0
        %v1265 = vadd.f32 0.0, %v1264
        %1266 = vmatprep.mubr.f32.mxu0 0.0
        %1267 = vmatmul.mubr.f32.gmra.mrb[0].mxu0 %v983
        %v1268 = vpop.f32.mrb[0].mxu0
        %v1269 = vadd.f32 0.0, %v1268
        %v1270 = vpop.f32.mrb[0].mxu0
        %v1271 = vadd.f32 0.0, %v1270
        %1272 = vdwg.mxu0
        %v1273 = vmax.f32 %v1083, 0.0
        %v1274 = vmax.f32 %v1085, 0.0
        %v1275 = vmax.f32 %v1089, 0.0
        %v1276 = vmax.f32 %v1091, 0.0
        %v1277 = vmax.f32 %v1095, 0.0
        %v1278 = vmax.f32 %v1097, 0.0
        %v1279 = vmax.f32 %v1101, 0.0
        %v1280 = vmax.f32 %v1103, 0.0
        %v1281 = vmax.f32 %v1107, 0.0
        %v1282 = vmax.f32 %v1109, 0.0
        %v1283 = vmax.f32 %v1113, 0.0
        %v1284 = vmax.f32 %v1115, 0.0
        %v1285 = vmax.f32 %v1119, 0.0
        %v1286 = vmax.f32 %v1121, 0.0
        %v1287 = vmax.f32 %v1125, 0.0
        %v1288 = vmax.f32 %v1127, 0.0
        %v1289 = vmax.f32 %v1131, 0.0
        %v1290 = vmax.f32 %v1133, 0.0
        %v1291 = vmax.f32 %v1137, 0.0
        %v1292 = vmax.f32 %v1139, 0.0
        %v1293 = vmax.f32 %v1143, 0.0
        %v1294 = vmax.f32 %v1145, 0.0
        %v1295 = vmax.f32 %v1149, 0.0
        %v1296 = vmax.f32 %v1151, 0.0
        %v1297 = vmax.f32 %v1155, 0.0
        %v1298 = vmax.f32 %v1157, 0.0
        %v1299 = vmax.f32 %v1161, 0.0
        %v1300 = vmax.f32 %v1163, 0.0
        %v1301 = vmax.f32 %v1167, 0.0
        %v1302 = vmax.f32 %v1169, 0.0
        %v1303 = vmax.f32 %v1173, 0.0
        %v1304 = vmax.f32 %v1175, 0.0
        %v1305 = vmax.f32 %v1179, 0.0
        %v1306 = vmax.f32 %v1181, 0.0
        %v1307 = vmax.f32 %v1185, 0.0
        %v1308 = vmax.f32 %v1187, 0.0
        %v1309 = vmax.f32 %v1191, 0.0
        %v1310 = vmax.f32 %v1193, 0.0
        %v1311 = vmax.f32 %v1197, 0.0
        %v1312 = vmax.f32 %v1199, 0.0
        %v1313 = vmax.f32 %v1203, 0.0
        %v1314 = vmax.f32 %v1205, 0.0
        %v1315 = vmax.f32 %v1209, 0.0
        %v1316 = vmax.f32 %v1211, 0.0
        %v1317 = vmax.f32 %v1215, 0.0
        %v1318 = vmax.f32 %v1217, 0.0
        %v1319 = vmax.f32 %v1221, 0.0
        %v1320 = vmax.f32 %v1223, 0.0
        %v1321 = vmax.f32 %v1227, 0.0
        %v1322 = vmax.f32 %v1229, 0.0
        %v1323 = vmax.f32 %v1233, 0.0
        %v1324 = vmax.f32 %v1235, 0.0
        %v1325 = vmax.f32 %v1239, 0.0
        %v1326 = vmax.f32 %v1241, 0.0
        %v1327 = vmax.f32 %v1245, 0.0
        %v1328 = vmax.f32 %v1247, 0.0
        %v1329 = vmax.f32 %v1251, 0.0
        %v1330 = vmax.f32 %v1253, 0.0
        %v1331 = vmax.f32 %v1257, 0.0
        %v1332 = vmax.f32 %v1259, 0.0
        %v1333 = vmax.f32 %v1263, 0.0
        %v1334 = vmax.f32 %v1265, 0.0
        %v1335 = vmax.f32 %v1269, 0.0
        %v1336 = vmax.f32 %v1271, 0.0
        %1337 = vst [vmem:[%s166] sm:$0xff] %v1273
        %1338 = vst [vmem:[%s166 + $0x8] sm:$0xff] %v1274
        %1339 = vst [vmem:[%s166 + $0x10] sm:$0xff] %v1275
        %1340 = vst [vmem:[%s166 + $0x18] sm:$0xff] %v1276
        %1341 = vst [vmem:[%s166 + $0x20] sm:$0xff] %v1277
        %1342 = vst [vmem:[%s166 + $0x28] sm:$0xff] %v1278
        %1343 = vst [vmem:[%s166 + $0x30] sm:$0xff] %v1279
        %1344 = vst [vmem:[%s166 + $0x38] sm:$0xff] %v1280
        %1345 = vst [vmem:[%s166 + $0x40] sm:$0xff] %v1281
        %1346 = vst [vmem:[%s166 + $0x48] sm:$0xff] %v1282
        %1347 = vst [vmem:[%s166 + $0x50] sm:$0xff] %v1283
        %1348 = vst [vmem:[%s166 + $0x58] sm:$0xff] %v1284
        %1349 = vst [vmem:[%s166 + $0x60] sm:$0xff] %v1285
        %1350 = vst [vmem:[%s166 + $0x68] sm:$0xff] %v1286
        %1351 = vst [vmem:[%s166 + $0x70] sm:$0xff] %v1287
        %1352 = vst [vmem:[%s166 + $0x78] sm:$0xff] %v1288
        %1353 = vst [vmem:[%s166 + $0x80] sm:$0xff] %v1289
        %1354 = vst [vmem:[%s166 + $0x88] sm:$0xff] %v1290
        %1355 = vst [vmem:[%s166 + $0x90] sm:$0xff] %v1291
        %1356 = vst [vmem:[%s166 + $0x98] sm:$0xff] %v1292
        %1357 = vst [vmem:[%s166 + $0xa0] sm:$0xff] %v1293
        %1358 = vst [vmem:[%s166 + $0xa8] sm:$0xff] %v1294
        %1359 = vst [vmem:[%s166 + $0xb0] sm:$0xff] %v1295
        %1360 = vst [vmem:[%s166 + $0xb8] sm:$0xff] %v1296
        %1361 = vst [vmem:[%s166 + $0xc0] sm:$0xff] %v1297
        %1362 = vst [vmem:[%s166 + $0xc8] sm:$0xff] %v1298
        %1363 = vst [vmem:[%s166 + $0xd0] sm:$0xff] %v1299
        %1364 = vst [vmem:[%s166 + $0xd8] sm:$0xff] %v1300
        %1365 = vst [vmem:[%s166 + $0xe0] sm:$0xff] %v1301
        %1366 = vst [vmem:[%s166 + $0xe8] sm:$0xff] %v1302
        %1367 = vst [vmem:[%s166 + $0xf0] sm:$0xff] %v1303
        %1368 = vst [vmem:[%s166 + $0xf8] sm:$0xff] %v1304
        %1369 = vst [vmem:[%s166 + $0x100] sm:$0xff] %v1305
        %1370 = vst [vmem:[%s166 + $0x108] sm:$0xff] %v1306
        %1371 = vst [vmem:[%s166 + $0x110] sm:$0xff] %v1307
        %1372 = vst [vmem:[%s166 + $0x118] sm:$0xff] %v1308
        %1373 = vst [vmem:[%s166 + $0x120] sm:$0xff] %v1309
        %1374 = vst [vmem:[%s166 + $0x128] sm:$0xff] %v1310
        %1375 = vst [vmem:[%s166 + $0x130] sm:$0xff] %v1311
        %1376 = vst [vmem:[%s166 + $0x138] sm:$0xff] %v1312
        %1377 = vst [vmem:[%s166 + $0x140] sm:$0xff] %v1313
        %1378 = vst [vmem:[%s166 + $0x148] sm:$0xff] %v1314
        %1379 = vst [vmem:[%s166 + $0x150] sm:$0xff] %v1315
        %1380 = vst [vmem:[%s166 + $0x158] sm:$0xff] %v1316
        %1381 = vst [vmem:[%s166 + $0x160] sm:$0xff] %v1317
        %1382 = vst [vmem:[%s166 + $0x168] sm:$0xff] %v1318
        %1383 = vst [vmem:[%s166 + $0x170] sm:$0xff] %v1319
        %1384 = vst [vmem:[%s166 + $0x178] sm:$0xff] %v1320
        %1385 = vst [vmem:[%s166 + $0x180] sm:$0xff] %v1321
        %1386 = vst [vmem:[%s166 + $0x188] sm:$0xff] %v1322
        %1387 = vst [vmem:[%s166 + $0x190] sm:$0xff] %v1323
        %1388 = vst [vmem:[%s166 + $0x198] sm:$0xff] %v1324
        %1389 = vst [vmem:[%s166 + $0x1a0] sm:$0xff] %v1325
        %1390 = vst [vmem:[%s166 + $0x1a8] sm:$0xff] %v1326
        %1391 = vst [vmem:[%s166 + $0x1b0] sm:$0xff] %v1327
        %1392 = vst [vmem:[%s166 + $0x1b8] sm:$0xff] %v1328
        %1393 = vst [vmem:[%s166 + $0x1c0] sm:$0xff] %v1329
        %1394 = vst [vmem:[%s166 + $0x1c8] sm:$0xff] %v1330
        %1395 = vst [vmem:[%s166 + $0x1d0] sm:$0xff] %v1331
        %1396 = vst [vmem:[%s166 + $0x1d8] sm:$0xff] %v1332
        %1397 = vst [vmem:[%s166 + $0x1e0] sm:$0xff] %v1333
        %1398 = vst [vmem:[%s166 + $0x1e8] sm:$0xff] %v1334
        %1399 = vst [vmem:[%s166 + $0x1f0] sm:$0xff] %v1335
        %1400 = vst [vmem:[%s166 + $0x1f8] sm:$0xff] %v1336
        %s1401 = sshll.u32 %s197, 4
        %1402 = dma.done %s208, %s1401
        %v1403 = vld [vmem:[%s207] sm:$0xff]
        %v1404 = vld [vmem:[%s207 + $0x8] sm:$0xff]
        %v1405 = vld [vmem:[%s207 + $0x10] sm:$0xff]
        %v1406 = vld [vmem:[%s207 + $0x18] sm:$0xff]
        %v1407 = vld [vmem:[%s207 + $0x28] sm:$0xff]
        %v1408 = vld [vmem:[%s207 + $0x30] sm:$0xff]
        %v1409 = vld [vmem:[%s207 + $0x38] sm:$0xff]
        %v1410 = vld [vmem:[%s207 + $0x40] sm:$0xff]
        %v1411 = vld [vmem:[%s207 + $0x50] sm:$0xff]
        %v1412 = vld [vmem:[%s207 + $0x58] sm:$0xff]
        %v1413 = vld [vmem:[%s207 + $0x60] sm:$0xff]
        %v1414 = vld [vmem:[%s207 + $0x68] sm:$0xff]
        %v1415 = vld [vmem:[%s207 + $0x78] sm:$0xff]
        %v1416 = vld [vmem:[%s207 + $0x80] sm:$0xff]
        %v1417 = vld [vmem:[%s207 + $0x88] sm:$0xff]
        %v1418 = vld [vmem:[%s207 + $0x90] sm:$0xff]
        %v1419 = vld [vmem:[%s207 + $0xa0] sm:$0xff]
        %v1420 = vld [vmem:[%s207 + $0xa8] sm:$0xff]
        %v1421 = vld [vmem:[%s207 + $0xb0] sm:$0xff]
        %v1422 = vld [vmem:[%s207 + $0xb8] sm:$0xff]
        %v1423 = vld [vmem:[%s207 + $0xc8] sm:$0xff]
        %v1424 = vld [vmem:[%s207 + $0xd0] sm:$0xff]
        %v1425 = vld [vmem:[%s207 + $0xd8] sm:$0xff]
        %v1426 = vld [vmem:[%s207 + $0xe0] sm:$0xff]
        %v1427 = vld [vmem:[%s207 + $0xf0] sm:$0xff]
        %v1428 = vld [vmem:[%s207 + $0xf8] sm:$0xff]
        %v1429 = vld [vmem:[%s207 + $0x100] sm:$0xff]
        %v1430 = vld [vmem:[%s207 + $0x108] sm:$0xff]
        %v1431 = vld [vmem:[%s207 + $0x118] sm:$0xff]
        %v1432 = vld [vmem:[%s207 + $0x120] sm:$0xff]
        %v1433 = vld [vmem:[%s207 + $0x128] sm:$0xff]
        %v1434 = vld [vmem:[%s207 + $0x130] sm:$0xff]
        %v1435 = vld [vmem:[%s207 + $0x140] sm:$0xff]
        %v1436 = vld [vmem:[%s207 + $0x148] sm:$0xff]
        %v1437 = vld [vmem:[%s207 + $0x150] sm:$0xff]
        %v1438 = vld [vmem:[%s207 + $0x158] sm:$0xff]
        %v1439 = vld [vmem:[%s207 + $0x168] sm:$0xff]
        %v1440 = vld [vmem:[%s207 + $0x170] sm:$0xff]
        %v1441 = vld [vmem:[%s207 + $0x178] sm:$0xff]
        %v1442 = vld [vmem:[%s207 + $0x180] sm:$0xff]
        %v1443 = vmul.f32 %v1403, %v263
        %v1444 = vmul.f32 %v1404, %v263
        %v1445 = vmul.f32 %v1405, %v263
        %v1446 = vmul.f32 %v1406, %v263
        %v1447 = vmul.f32 %v1407, %v263
        %v1448 = vmul.f32 %v1408, %v263
        %v1449 = vmul.f32 %v1409, %v263
        %v1450 = vmul.f32 %v1410, %v263
        %v1451 = vmul.f32 %v1411, %v263
        %v1452 = vmul.f32 %v1412, %v263
        %v1453 = vmul.f32 %v1413, %v263
        %v1454 = vmul.f32 %v1414, %v263
        %v1455 = vmul.f32 %v1415, %v263
        %v1456 = vmul.f32 %v1416, %v263
        %v1457 = vmul.f32 %v1417, %v263
        %v1458 = vmul.f32 %v1418, %v263
        %v1459 = vmul.f32 %v1419, %v263
        %v1460 = vmul.f32 %v1420, %v263
        %v1461 = vmul.f32 %v1421, %v263
        %v1462 = vmul.f32 %v1422, %v263
        %v1463 = vmul.f32 %v1423, %v263
        %v1464 = vmul.f32 %v1424, %v263
        %v1465 = vmul.f32 %v1425, %v263
        %v1466 = vmul.f32 %v1426, %v263
        %v1467 = vmul.f32 %v1427, %v263
        %v1468 = vmul.f32 %v1428, %v263
        %v1469 = vmul.f32 %v1429, %v263
        %v1470 = vmul.f32 %v1430, %v263
        %v1471 = vmul.f32 %v1431, %v263
        %v1472 = vmul.f32 %v1432, %v263
        %v1473 = vmul.f32 %v1433, %v263
        %v1474 = vmul.f32 %v1434, %v263
        %v1475 = vadd.f32 %v1443, 0.0
        %v1476 = vadd.f32 %v1444, 0.0
        %v1477 = vadd.f32 %v1445, 0.0
        %v1478 = vadd.f32 %v1446, 0.0
        %v1479 = vadd.f32 %v1447, 0.0
        %v1480 = vadd.f32 %v1448, 0.0
        %v1481 = vadd.f32 %v1449, 0.0
        %v1482 = vadd.f32 %v1450, 0.0
        %v1483 = vadd.f32 %v1451, 0.0
        %v1484 = vadd.f32 %v1452, 0.0
        %v1485 = vadd.f32 %v1453, 0.0
        %v1486 = vadd.f32 %v1454, 0.0
        %v1487 = vadd.f32 %v1455, 0.0
        %v1488 = vadd.f32 %v1456, 0.0
        %v1489 = vadd.f32 %v1457, 0.0
        %v1490 = vadd.f32 %v1458, 0.0
        %v1491 = vadd.f32 %v1459, 0.0
        %v1492 = vadd.f32 %v1460, 0.0
        %v1493 = vadd.f32 %v1461, 0.0
        %v1494 = vadd.f32 %v1462, 0.0
        %v1495 = vadd.f32 %v1463, 0.0
        %v1496 = vadd.f32 %v1464, 0.0
        %v1497 = vadd.f32 %v1465, 0.0
        %v1498 = vadd.f32 %v1466, 0.0
        %v1499 = vadd.f32 %v1467, 0.0
        %v1500 = vadd.f32 %v1468, 0.0
        %v1501 = vadd.f32 %v1469, 0.0
        %v1502 = vadd.f32 %v1470, 0.0
        %v1503 = vadd.f32 %v1471, 0.0
        %v1504 = vadd.f32 %v1472, 0.0
        %v1505 = vadd.f32 %v1473, 0.0
        %v1506 = vadd.f32 %v1474, 0.0
        %v1507 = vmul.f32 %v1407, %v331
        %v1508 = vmul.f32 %v1408, %v331
        %v1509 = vmul.f32 %v1409, %v331
        %v1510 = vmul.f32 %v1410, %v331
        %v1511 = vmul.f32 %v1411, %v331
        %v1512 = vmul.f32 %v1412, %v331
        %v1513 = vmul.f32 %v1413, %v331
        %v1514 = vmul.f32 %v1414, %v331
        %v1515 = vmul.f32 %v1415, %v331
        %v1516 = vmul.f32 %v1416, %v331
        %v1517 = vmul.f32 %v1417, %v331
        %v1518 = vmul.f32 %v1418, %v331
        %v1519 = vmul.f32 %v1419, %v331
        %v1520 = vmul.f32 %v1420, %v331
        %v1521 = vmul.f32 %v1421, %v331
        %v1522 = vmul.f32 %v1422, %v331
        %v1523 = vmul.f32 %v1423, %v331
        %v1524 = vmul.f32 %v1424, %v331
        %v1525 = vmul.f32 %v1425, %v331
        %v1526 = vmul.f32 %v1426, %v331
        %v1527 = vmul.f32 %v1427, %v331
        %v1528 = vmul.f32 %v1428, %v331
        %v1529 = vmul.f32 %v1429, %v331
        %v1530 = vmul.f32 %v1430, %v331
        %v1531 = vmul.f32 %v1431, %v331
        %v1532 = vmul.f32 %v1432, %v331
        %v1533 = vmul.f32 %v1433, %v331
        %v1534 = vmul.f32 %v1434, %v331
        %v1535 = vmul.f32 %v1435, %v331
        %v1536 = vmul.f32 %v1436, %v331
        %v1537 = vmul.f32 %v1437, %v331
        %v1538 = vmul.f32 %v1438, %v331
        %v1539 = vadd.f32 %v1475, %v1507
        %v1540 = vadd.f32 %v1476, %v1508
        %v1541 = vadd.f32 %v1477, %v1509
        %v1542 = vadd.f32 %v1478, %v1510
        %v1543 = vadd.f32 %v1479, %v1511
        %v1544 = vadd.f32 %v1480, %v1512
        %v1545 = vadd.f32 %v1481, %v1513
        %v1546 = vadd.f32 %v1482, %v1514
        %v1547 = vadd.f32 %v1483, %v1515
        %v1548 = vadd.f32 %v1484, %v1516
        %v1549 = vadd.f32 %v1485, %v1517
        %v1550 = vadd.f32 %v1486, %v1518
        %v1551 = vadd.f32 %v1487, %v1519
        %v1552 = vadd.f32 %v1488, %v1520
        %v1553 = vadd.f32 %v1489, %v1521
        %v1554 = vadd.f32 %v1490, %v1522
        %v1555 = vadd.f32 %v1491, %v1523
        %v1556 = vadd.f32 %v1492, %v1524
        %v1557 = vadd.f32 %v1493, %v1525
        %v1558 = vadd.f32 %v1494, %v1526
        %v1559 = vadd.f32 %v1495, %v1527
        %v1560 = vadd.f32 %v1496, %v1528
        %v1561 = vadd.f32 %v1497, %v1529
        %v1562 = vadd.f32 %v1498, %v1530
        %v1563 = vadd.f32 %v1499, %v1531
        %v1564 = vadd.f32 %v1500, %v1532
        %v1565 = vadd.f32 %v1501, %v1533
        %v1566 = vadd.f32 %v1502, %v1534
        %v1567 = vadd.f32 %v1503, %v1535
        %v1568 = vadd.f32 %v1504, %v1536
        %v1569 = vadd.f32 %v1505, %v1537
        %v1570 = vadd.f32 %v1506, %v1538
        %v1571 = vmul.f32 %v1411, %v399
        %v1572 = vmul.f32 %v1412, %v399
        %v1573 = vmul.f32 %v1413, %v399
        %v1574 = vmul.f32 %v1414, %v399
        %v1575 = vmul.f32 %v1415, %v399
        %v1576 = vmul.f32 %v1416, %v399
        %v1577 = vmul.f32 %v1417, %v399
        %v1578 = vmul.f32 %v1418, %v399
        %v1579 = vmul.f32 %v1419, %v399
        %v1580 = vmul.f32 %v1420, %v399
        %v1581 = vmul.f32 %v1421, %v399
        %v1582 = vmul.f32 %v1422, %v399
        %v1583 = vmul.f32 %v1423, %v399
        %v1584 = vmul.f32 %v1424, %v399
        %v1585 = vmul.f32 %v1425, %v399
        %v1586 = vmul.f32 %v1426, %v399
        %v1587 = vmul.f32 %v1427, %v399
        %v1588 = vmul.f32 %v1428, %v399
        %v1589 = vmul.f32 %v1429, %v399
        %v1590 = vmul.f32 %v1430, %v399
        %v1591 = vmul.f32 %v1431, %v399
        %v1592 = vmul.f32 %v1432, %v399
        %v1593 = vmul.f32 %v1433, %v399
        %v1594 = vmul.f32 %v1434, %v399
        %v1595 = vmul.f32 %v1435, %v399
        %v1596 = vmul.f32 %v1436, %v399
        %v1597 = vmul.f32 %v1437, %v399
        %v1598 = vmul.f32 %v1438, %v399
        %v1599 = vmul.f32 %v1439, %v399
        %v1600 = vmul.f32 %v1440, %v399
        %v1601 = vmul.f32 %v1441, %v399
        %v1602 = vmul.f32 %v1442, %v399
        %v1603 = vadd.f32 %v1539, %v1571
        %v1604 = vadd.f32 %v1540, %v1572
        %v1605 = vadd.f32 %v1541, %v1573
        %v1606 = vadd.f32 %v1542, %v1574
        %v1607 = vadd.f32 %v1543, %v1575
        %v1608 = vadd.f32 %v1544, %v1576
        %v1609 = vadd.f32 %v1545, %v1577
        %v1610 = vadd.f32 %v1546, %v1578
        %v1611 = vadd.f32 %v1547, %v1579
        %v1612 = vadd.f32 %v1548, %v1580
        %v1613 = vadd.f32 %v1549, %v1581
        %v1614 = vadd.f32 %v1550, %v1582
        %v1615 = vadd.f32 %v1551, %v1583
        %v1616 = vadd.f32 %v1552, %v1584
        %v1617 = vadd.f32 %v1553, %v1585
        %v1618 = vadd.f32 %v1554, %v1586
        %v1619 = vadd.f32 %v1555, %v1587
        %v1620 = vadd.f32 %v1556, %v1588
        %v1621 = vadd.f32 %v1557, %v1589
        %v1622 = vadd.f32 %v1558, %v1590
        %v1623 = vadd.f32 %v1559, %v1591
        %v1624 = vadd.f32 %v1560, %v1592
        %v1625 = vadd.f32 %v1561, %v1593
        %v1626 = vadd.f32 %v1562, %v1594
        %v1627 = vadd.f32 %v1563, %v1595
        %v1628 = vadd.f32 %v1564, %v1596
        %v1629 = vadd.f32 %v1565, %v1597
        %v1630 = vadd.f32 %v1566, %v1598
        %v1631 = vadd.f32 %v1567, %v1599
        %v1632 = vadd.f32 %v1568, %v1600
        %v1633 = vadd.f32 %v1569, %v1601
        %v1634 = vadd.f32 %v1570, %v1602
        %v1635 = vld [vmem:[%s207 + $0x1] sm:$0xff]
        %v1636 = vld [vmem:[%s207 + $0x9] sm:$0xff]
        %v1637 = vld [vmem:[%s207 + $0x11] sm:$0xff]
        %v1638 = vld [vmem:[%s207 + $0x19] sm:$0xff]
        %v1639 = vld [vmem:[%s207 + $0x29] sm:$0xff]
        %v1640 = vld [vmem:[%s207 + $0x31] sm:$0xff]
        %v1641 = vld [vmem:[%s207 + $0x39] sm:$0xff]
        %v1642 = vld [vmem:[%s207 + $0x41] sm:$0xff]
        %v1643 = vld [vmem:[%s207 + $0x51] sm:$0xff]
        %v1644 = vld [vmem:[%s207 + $0x59] sm:$0xff]
        %v1645 = vld [vmem:[%s207 + $0x61] sm:$0xff]
        %v1646 = vld [vmem:[%s207 + $0x69] sm:$0xff]
        %v1647 = vld [vmem:[%s207 + $0x79] sm:$0xff]
        %v1648 = vld [vmem:[%s207 + $0x81] sm:$0xff]
        %v1649 = vld [vmem:[%s207 + $0x89] sm:$0xff]
        %v1650 = vld [vmem:[%s207 + $0x91] sm:$0xff]
        %v1651 = vld [vmem:[%s207 + $0xa1] sm:$0xff]
        %v1652 = vld [vmem:[%s207 + $0xa9] sm:$0xff]
        %v1653 = vld [vmem:[%s207 + $0xb1] sm:$0xff]
        %v1654 = vld [vmem:[%s207 + $0xb9] sm:$0xff]
        %v1655 = vld [vmem:[%s207 + $0xc9] sm:$0xff]
        %v1656 = vld [vmem:[%s207 + $0xd1] sm:$0xff]
        %v1657 = vld [vmem:[%s207 + $0xd9] sm:$0xff]
        %v1658 = vld [vmem:[%s207 + $0xe1] sm:$0xff]
        %v1659 = vld [vmem:[%s207 + $0xf1] sm:$0xff]
        %v1660 = vld [vmem:[%s207 + $0xf9] sm:$0xff]
        %v1661 = vld [vmem:[%s207 + $0x101] sm:$0xff]
        %v1662 = vld [vmem:[%s207 + $0x109] sm:$0xff]
        %v1663 = vld [vmem:[%s207 + $0x119] sm:$0xff]
        %v1664 = vld [vmem:[%s207 + $0x121] sm:$0xff]
        %v1665 = vld [vmem:[%s207 + $0x129] sm:$0xff]
        %v1666 = vld [vmem:[%s207 + $0x131] sm:$0xff]
        %v1667 = vld [vmem:[%s207 + $0x141] sm:$0xff]
        %v1668 = vld [vmem:[%s207 + $0x149] sm:$0xff]
        %v1669 = vld [vmem:[%s207 + $0x151] sm:$0xff]
        %v1670 = vld [vmem:[%s207 + $0x159] sm:$0xff]
        %v1671 = vld [vmem:[%s207 + $0x169] sm:$0xff]
        %v1672 = vld [vmem:[%s207 + $0x171] sm:$0xff]
        %v1673 = vld [vmem:[%s207 + $0x179] sm:$0xff]
        %v1674 = vld [vmem:[%s207 + $0x181] sm:$0xff]
        %v1675 = vmul.f32 %v1635, %v507
        %v1676 = vmul.f32 %v1636, %v507
        %v1677 = vmul.f32 %v1637, %v507
        %v1678 = vmul.f32 %v1638, %v507
        %v1679 = vmul.f32 %v1639, %v507
        %v1680 = vmul.f32 %v1640, %v507
        %v1681 = vmul.f32 %v1641, %v507
        %v1682 = vmul.f32 %v1642, %v507
        %v1683 = vmul.f32 %v1643, %v507
        %v1684 = vmul.f32 %v1644, %v507
        %v1685 = vmul.f32 %v1645, %v507
        %v1686 = vmul.f32 %v1646, %v507
        %v1687 = vmul.f32 %v1647, %v507
        %v1688 = vmul.f32 %v1648, %v507
        %v1689 = vmul.f32 %v1649, %v507
        %v1690 = vmul.f32 %v1650, %v507
        %v1691 = vmul.f32 %v1651, %v507
        %v1692 = vmul.f32 %v1652, %v507
        %v1693 = vmul.f32 %v1653, %v507
        %v1694 = vmul.f32 %v1654, %v507
        %v1695 = vmul.f32 %v1655, %v507
        %v1696 = vmul.f32 %v1656, %v507
        %v1697 = vmul.f32 %v1657, %v507
        %v1698 = vmul.f32 %v1658, %v507
        %v1699 = vmul.f32 %v1659, %v507
        %v1700 = vmul.f32 %v1660, %v507
        %v1701 = vmul.f32 %v1661, %v507
        %v1702 = vmul.f32 %v1662, %v507
        %v1703 = vmul.f32 %v1663, %v507
        %v1704 = vmul.f32 %v1664, %v507
        %v1705 = vmul.f32 %v1665, %v507
        %v1706 = vmul.f32 %v1666, %v507
        %v1707 = vadd.f32 %v1603, %v1675
        %v1708 = vadd.f32 %v1604, %v1676
        %v1709 = vadd.f32 %v1605, %v1677
        %v1710 = vadd.f32 %v1606, %v1678
        %v1711 = vadd.f32 %v1607, %v1679
        %v1712 = vadd.f32 %v1608, %v1680
        %v1713 = vadd.f32 %v1609, %v1681
        %v1714 = vadd.f32 %v1610, %v1682
        %v1715 = vadd.f32 %v1611, %v1683
        %v1716 = vadd.f32 %v1612, %v1684
        %v1717 = vadd.f32 %v1613, %v1685
        %v1718 = vadd.f32 %v1614, %v1686
        %v1719 = vadd.f32 %v1615, %v1687
        %v1720 = vadd.f32 %v1616, %v1688
        %v1721 = vadd.f32 %v1617, %v1689
        %v1722 = vadd.f32 %v1618, %v1690
        %v1723 = vadd.f32 %v1619, %v1691
        %v1724 = vadd.f32 %v1620, %v1692
        %v1725 = vadd.f32 %v1621, %v1693
        %v1726 = vadd.f32 %v1622, %v1694
        %v1727 = vadd.f32 %v1623, %v1695
        %v1728 = vadd.f32 %v1624, %v1696
        %v1729 = vadd.f32 %v1625, %v1697
        %v1730 = vadd.f32 %v1626, %v1698
        %v1731 = vadd.f32 %v1627, %v1699
        %v1732 = vadd.f32 %v1628, %v1700
        %v1733 = vadd.f32 %v1629, %v1701
        %v1734 = vadd.f32 %v1630, %v1702
        %v1735 = vadd.f32 %v1631, %v1703
        %v1736 = vadd.f32 %v1632, %v1704
        %v1737 = vadd.f32 %v1633, %v1705
        %v1738 = vadd.f32 %v1634, %v1706
        %v1739 = vmul.f32 %v1639, %v575
        %v1740 = vmul.f32 %v1640, %v575
        %v1741 = vmul.f32 %v1641, %v575
        %v1742 = vmul.f32 %v1642, %v575
        %v1743 = vmul.f32 %v1643, %v575
        %v1744 = vmul.f32 %v1644, %v575
        %v1745 = vmul.f32 %v1645, %v575
        %v1746 = vmul.f32 %v1646, %v575
        %v1747 = vmul.f32 %v1647, %v575
        %v1748 = vmul.f32 %v1648, %v575
        %v1749 = vmul.f32 %v1649, %v575
        %v1750 = vmul.f32 %v1650, %v575
        %v1751 = vmul.f32 %v1651, %v575
        %v1752 = vmul.f32 %v1652, %v575
        %v1753 = vmul.f32 %v1653, %v575
        %v1754 = vmul.f32 %v1654, %v575
        %v1755 = vmul.f32 %v1655, %v575
        %v1756 = vmul.f32 %v1656, %v575
        %v1757 = vmul.f32 %v1657, %v575
        %v1758 = vmul.f32 %v1658, %v575
        %v1759 = vmul.f32 %v1659, %v575
        %v1760 = vmul.f32 %v1660, %v575
        %v1761 = vmul.f32 %v1661, %v575
        %v1762 = vmul.f32 %v1662, %v575
        %v1763 = vmul.f32 %v1663, %v575
        %v1764 = vmul.f32 %v1664, %v575
        %v1765 = vmul.f32 %v1665, %v575
        %v1766 = vmul.f32 %v1666, %v575
        %v1767 = vmul.f32 %v1667, %v575
        %v1768 = vmul.f32 %v1668, %v575
        %v1769 = vmul.f32 %v1669, %v575
        %v1770 = vmul.f32 %v1670, %v575
        %v1771 = vadd.f32 %v1707, %v1739
        %v1772 = vadd.f32 %v1708, %v1740
        %v1773 = vadd.f32 %v1709, %v1741
        %v1774 = vadd.f32 %v1710, %v1742
        %v1775 = vadd.f32 %v1711, %v1743
        %v1776 = vadd.f32 %v1712, %v1744
        %v1777 = vadd.f32 %v1713, %v1745
        %v1778 = vadd.f32 %v1714, %v1746
        %v1779 = vadd.f32 %v1715, %v1747
        %v1780 = vadd.f32 %v1716, %v1748
        %v1781 = vadd.f32 %v1717, %v1749
        %v1782 = vadd.f32 %v1718, %v1750
        %v1783 = vadd.f32 %v1719, %v1751
        %v1784 = vadd.f32 %v1720, %v1752
        %v1785 = vadd.f32 %v1721, %v1753
        %v1786 = vadd.f32 %v1722, %v1754
        %v1787 = vadd.f32 %v1723, %v1755
        %v1788 = vadd.f32 %v1724, %v1756
        %v1789 = vadd.f32 %v1725, %v1757
        %v1790 = vadd.f32 %v1726, %v1758
        %v1791 = vadd.f32 %v1727, %v1759
        %v1792 = vadd.f32 %v1728, %v1760
        %v1793 = vadd.f32 %v1729, %v1761
        %v1794 = vadd.f32 %v1730, %v1762
        %v1795 = vadd.f32 %v1731, %v1763
        %v1796 = vadd.f32 %v1732, %v1764
        %v1797 = vadd.f32 %v1733, %v1765
        %v1798 = vadd.f32 %v1734, %v1766
        %v1799 = vadd.f32 %v1735, %v1767
        %v1800 = vadd.f32 %v1736, %v1768
        %v1801 = vadd.f32 %v1737, %v1769
        %v1802 = vadd.f32 %v1738, %v1770
        %v1803 = vmul.f32 %v1643, %v643
        %v1804 = vmul.f32 %v1644, %v643
        %v1805 = vmul.f32 %v1645, %v643
        %v1806 = vmul.f32 %v1646, %v643
        %v1807 = vmul.f32 %v1647, %v643
        %v1808 = vmul.f32 %v1648, %v643
        %v1809 = vmul.f32 %v1649, %v643
        %v1810 = vmul.f32 %v1650, %v643
        %v1811 = vmul.f32 %v1651, %v643
        %v1812 = vmul.f32 %v1652, %v643
        %v1813 = vmul.f32 %v1653, %v643
        %v1814 = vmul.f32 %v1654, %v643
        %v1815 = vmul.f32 %v1655, %v643
        %v1816 = vmul.f32 %v1656, %v643
        %v1817 = vmul.f32 %v1657, %v643
        %v1818 = vmul.f32 %v1658, %v643
        %v1819 = vmul.f32 %v1659, %v643
        %v1820 = vmul.f32 %v1660, %v643
        %v1821 = vmul.f32 %v1661, %v643
        %v1822 = vmul.f32 %v1662, %v643
        %v1823 = vmul.f32 %v1663, %v643
        %v1824 = vmul.f32 %v1664, %v643
        %v1825 = vmul.f32 %v1665, %v643
        %v1826 = vmul.f32 %v1666, %v643
        %v1827 = vmul.f32 %v1667, %v643
        %v1828 = vmul.f32 %v1668, %v643
        %v1829 = vmul.f32 %v1669, %v643
        %v1830 = vmul.f32 %v1670, %v643
        %v1831 = vmul.f32 %v1671, %v643
        %v1832 = vmul.f32 %v1672, %v643
        %v1833 = vmul.f32 %v1673, %v643
        %v1834 = vmul.f32 %v1674, %v643
        %v1835 = vadd.f32 %v1771, %v1803
        %v1836 = vadd.f32 %v1772, %v1804
        %v1837 = vadd.f32 %v1773, %v1805
        %v1838 = vadd.f32 %v1774, %v1806
        %v1839 = vadd.f32 %v1775, %v1807
        %v1840 = vadd.f32 %v1776, %v1808
        %v1841 = vadd.f32 %v1777, %v1809
        %v1842 = vadd.f32 %v1778, %v1810
        %v1843 = vadd.f32 %v1779, %v1811
        %v1844 = vadd.f32 %v1780, %v1812
        %v1845 = vadd.f32 %v1781, %v1813
        %v1846 = vadd.f32 %v1782, %v1814
        %v1847 = vadd.f32 %v1783, %v1815
        %v1848 = vadd.f32 %v1784, %v1816
        %v1849 = vadd.f32 %v1785, %v1817
        %v1850 = vadd.f32 %v1786, %v1818
        %v1851 = vadd.f32 %v1787, %v1819
        %v1852 = vadd.f32 %v1788, %v1820
        %v1853 = vadd.f32 %v1789, %v1821
        %v1854 = vadd.f32 %v1790, %v1822
        %v1855 = vadd.f32 %v1791, %v1823
        %v1856 = vadd.f32 %v1792, %v1824
        %v1857 = vadd.f32 %v1793, %v1825
        %v1858 = vadd.f32 %v1794, %v1826
        %v1859 = vadd.f32 %v1795, %v1827
        %v1860 = vadd.f32 %v1796, %v1828
        %v1861 = vadd.f32 %v1797, %v1829
        %v1862 = vadd.f32 %v1798, %v1830
        %v1863 = vadd.f32 %v1799, %v1831
        %v1864 = vadd.f32 %v1800, %v1832
        %v1865 = vadd.f32 %v1801, %v1833
        %v1866 = vadd.f32 %v1802, %v1834
        %v1867 = vld [vmem:[%s207 + $0x2] sm:$0xff]
        %v1868 = vld [vmem:[%s207 + $0xa] sm:$0xff]
        %v1869 = vld [vmem:[%s207 + $0x12] sm:$0xff]
        %v1870 = vld [vmem:[%s207 + $0x1a] sm:$0xff]
        %v1871 = vld [vmem:[%s207 + $0x2a] sm:$0xff]
        %v1872 = vld [vmem:[%s207 + $0x32] sm:$0xff]
        %v1873 = vld [vmem:[%s207 + $0x3a] sm:$0xff]
        %v1874 = vld [vmem:[%s207 + $0x42] sm:$0xff]
        %v1875 = vld [vmem:[%s207 + $0x52] sm:$0xff]
        %v1876 = vld [vmem:[%s207 + $0x5a] sm:$0xff]
        %v1877 = vld [vmem:[%s207 + $0x62] sm:$0xff]
        %v1878 = vld [vmem:[%s207 + $0x6a] sm:$0xff]
        %v1879 = vld [vmem:[%s207 + $0x7a] sm:$0xff]
        %v1880 = vld [vmem:[%s207 + $0x82] sm:$0xff]
        %v1881 = vld [vmem:[%s207 + $0x8a] sm:$0xff]
        %v1882 = vld [vmem:[%s207 + $0x92] sm:$0xff]
        %v1883 = vld [vmem:[%s207 + $0xa2] sm:$0xff]
        %v1884 = vld [vmem:[%s207 + $0xaa] sm:$0xff]
        %v1885 = vld [vmem:[%s207 + $0xb2] sm:$0xff]
        %v1886 = vld [vmem:[%s207 + $0xba] sm:$0xff]
        %v1887 = vld [vmem:[%s207 + $0xca] sm:$0xff]
        %v1888 = vld [vmem:[%s207 + $0xd2] sm:$0xff]
        %v1889 = vld [vmem:[%s207 + $0xda] sm:$0xff]
        %v1890 = vld [vmem:[%s207 + $0xe2] sm:$0xff]
        %v1891 = vld [vmem:[%s207 + $0xf2] sm:$0xff]
        %v1892 = vld [vmem:[%s207 + $0xfa] sm:$0xff]
        %v1893 = vld [vmem:[%s207 + $0x102] sm:$0xff]
        %v1894 = vld [vmem:[%s207 + $0x10a] sm:$0xff]
        %v1895 = vld [vmem:[%s207 + $0x11a] sm:$0xff]
        %v1896 = vld [vmem:[%s207 + $0x122] sm:$0xff]
        %v1897 = vld [vmem:[%s207 + $0x12a] sm:$0xff]
        %v1898 = vld [vmem:[%s207 + $0x132] sm:$0xff]
        %v1899 = vld [vmem:[%s207 + $0x142] sm:$0xff]
        %v1900 = vld [vmem:[%s207 + $0x14a] sm:$0xff]
        %v1901 = vld [vmem:[%s207 + $0x152] sm:$0xff]
        %v1902 = vld [vmem:[%s207 + $0x15a] sm:$0xff]
        %v1903 = vld [vmem:[%s207 + $0x16a] sm:$0xff]
        %v1904 = vld [vmem:[%s207 + $0x172] sm:$0xff]
        %v1905 = vld [vmem:[%s207 + $0x17a] sm:$0xff]
        %v1906 = vld [vmem:[%s207 + $0x182] sm:$0xff]
        %v1907 = vmul.f32 %v1867, %v751
        %v1908 = vmul.f32 %v1868, %v751
        %v1909 = vmul.f32 %v1869, %v751
        %v1910 = vmul.f32 %v1870, %v751
        %v1911 = vmul.f32 %v1871, %v751
        %v1912 = vmul.f32 %v1872, %v751
        %v1913 = vmul.f32 %v1873, %v751
        %v1914 = vmul.f32 %v1874, %v751
        %v1915 = vmul.f32 %v1875, %v751
        %v1916 = vmul.f32 %v1876, %v751
        %v1917 = vmul.f32 %v1877, %v751
        %v1918 = vmul.f32 %v1878, %v751
        %v1919 = vmul.f32 %v1879, %v751
        %v1920 = vmul.f32 %v1880, %v751
        %v1921 = vmul.f32 %v1881, %v751
        %v1922 = vmul.f32 %v1882, %v751
        %v1923 = vmul.f32 %v1883, %v751
        %v1924 = vmul.f32 %v1884, %v751
        %v1925 = vmul.f32 %v1885, %v751
        %v1926 = vmul.f32 %v1886, %v751
        %v1927 = vmul.f32 %v1887, %v751
        %v1928 = vmul.f32 %v1888, %v751
        %v1929 = vmul.f32 %v1889, %v751
        %v1930 = vmul.f32 %v1890, %v751
        %v1931 = vmul.f32 %v1891, %v751
        %v1932 = vmul.f32 %v1892, %v751
        %v1933 = vmul.f32 %v1893, %v751
        %v1934 = vmul.f32 %v1894, %v751
        %v1935 = vmul.f32 %v1895, %v751
        %v1936 = vmul.f32 %v1896, %v751
        %v1937 = vmul.f32 %v1897, %v751
        %v1938 = vmul.f32 %v1898, %v751
        %v1939 = vadd.f32 %v1835, %v1907
        %v1940 = vadd.f32 %v1836, %v1908
        %v1941 = vadd.f32 %v1837, %v1909
        %v1942 = vadd.f32 %v1838, %v1910
        %v1943 = vadd.f32 %v1839, %v1911
        %v1944 = vadd.f32 %v1840, %v1912
        %v1945 = vadd.f32 %v1841, %v1913
        %v1946 = vadd.f32 %v1842, %v1914
        %v1947 = vadd.f32 %v1843, %v1915
        %v1948 = vadd.f32 %v1844, %v1916
        %v1949 = vadd.f32 %v1845, %v1917
        %v1950 = vadd.f32 %v1846, %v1918
        %v1951 = vadd.f32 %v1847, %v1919
        %v1952 = vadd.f32 %v1848, %v1920
        %v1953 = vadd.f32 %v1849, %v1921
        %v1954 = vadd.f32 %v1850, %v1922
        %v1955 = vadd.f32 %v1851, %v1923
        %v1956 = vadd.f32 %v1852, %v1924
        %v1957 = vadd.f32 %v1853, %v1925
        %v1958 = vadd.f32 %v1854, %v1926
        %v1959 = vadd.f32 %v1855, %v1927
        %v1960 = vadd.f32 %v1856, %v1928
        %v1961 = vadd.f32 %v1857, %v1929
        %v1962 = vadd.f32 %v1858, %v1930
        %v1963 = vadd.f32 %v1859, %v1931
        %v1964 = vadd.f32 %v1860, %v1932
        %v1965 = vadd.f32 %v1861, %v1933
        %v1966 = vadd.f32 %v1862, %v1934
        %v1967 = vadd.f32 %v1863, %v1935
        %v1968 = vadd.f32 %v1864, %v1936
        %v1969 = vadd.f32 %v1865, %v1937
        %v1970 = vadd.f32 %v1866, %v1938
        %v1971 = vmul.f32 %v1871, %v819
        %v1972 = vmul.f32 %v1872, %v819
        %v1973 = vmul.f32 %v1873, %v819
        %v1974 = vmul.f32 %v1874, %v819
        %v1975 = vmul.f32 %v1875, %v819
        %v1976 = vmul.f32 %v1876, %v819
        %v1977 = vmul.f32 %v1877, %v819
        %v1978 = vmul.f32 %v1878, %v819
        %v1979 = vmul.f32 %v1879, %v819
        %v1980 = vmul.f32 %v1880, %v819
        %v1981 = vmul.f32 %v1881, %v819
        %v1982 = vmul.f32 %v1882, %v819
        %v1983 = vmul.f32 %v1883, %v819
        %v1984 = vmul.f32 %v1884, %v819
        %v1985 = vmul.f32 %v1885, %v819
        %v1986 = vmul.f32 %v1886, %v819
        %v1987 = vmul.f32 %v1887, %v819
        %v1988 = vmul.f32 %v1888, %v819
        %v1989 = vmul.f32 %v1889, %v819
        %v1990 = vmul.f32 %v1890, %v819
        %v1991 = vmul.f32 %v1891, %v819
        %v1992 = vmul.f32 %v1892, %v819
        %v1993 = vmul.f32 %v1893, %v819
        %v1994 = vmul.f32 %v1894, %v819
        %v1995 = vmul.f32 %v1895, %v819
        %v1996 = vmul.f32 %v1896, %v819
        %v1997 = vmul.f32 %v1897, %v819
        %v1998 = vmul.f32 %v1898, %v819
        %v1999 = vmul.f32 %v1899, %v819
        %v2000 = vmul.f32 %v1900, %v819
        %v2001 = vmul.f32 %v1901, %v819
        %v2002 = vmul.f32 %v1902, %v819
        %v2003 = vadd.f32 %v1939, %v1971
        %v2004 = vadd.f32 %v1940, %v1972
        %v2005 = vadd.f32 %v1941, %v1973
        %v2006 = vadd.f32 %v1942, %v1974
        %v2007 = vadd.f32 %v1943, %v1975
        %v2008 = vadd.f32 %v1944, %v1976
        %v2009 = vadd.f32 %v1945, %v1977
        %v2010 = vadd.f32 %v1946, %v1978
        %v2011 = vadd.f32 %v1947, %v1979
        %v2012 = vadd.f32 %v1948, %v1980
        %v2013 = vadd.f32 %v1949, %v1981
        %v2014 = vadd.f32 %v1950, %v1982
        %v2015 = vadd.f32 %v1951, %v1983
        %v2016 = vadd.f32 %v1952, %v1984
        %v2017 = vadd.f32 %v1953, %v1985
        %v2018 = vadd.f32 %v1954, %v1986
        %v2019 = vadd.f32 %v1955, %v1987
        %v2020 = vadd.f32 %v1956, %v1988
        %v2021 = vadd.f32 %v1957, %v1989
        %v2022 = vadd.f32 %v1958, %v1990
        %v2023 = vadd.f32 %v1959, %v1991
        %v2024 = vadd.f32 %v1960, %v1992
        %v2025 = vadd.f32 %v1961, %v1993
        %v2026 = vadd.f32 %v1962, %v1994
        %v2027 = vadd.f32 %v1963, %v1995
        %v2028 = vadd.f32 %v1964, %v1996
        %v2029 = vadd.f32 %v1965, %v1997
        %v2030 = vadd.f32 %v1966, %v1998
        %v2031 = vadd.f32 %v1967, %v1999
        %v2032 = vadd.f32 %v1968, %v2000
        %v2033 = vadd.f32 %v1969, %v2001
        %v2034 = vadd.f32 %v1970, %v2002
        %v2035 = vmul.f32 %v1875, %v887
        %v2036 = vmul.f32 %v1876, %v887
        %v2037 = vmul.f32 %v1877, %v887
        %v2038 = vmul.f32 %v1878, %v887
        %v2039 = vmul.f32 %v1879, %v887
        %v2040 = vmul.f32 %v1880, %v887
        %v2041 = vmul.f32 %v1881, %v887
        %v2042 = vmul.f32 %v1882, %v887
        %v2043 = vmul.f32 %v1883, %v887
        %v2044 = vmul.f32 %v1884, %v887
        %v2045 = vmul.f32 %v1885, %v887
        %v2046 = vmul.f32 %v1886, %v887
        %v2047 = vmul.f32 %v1887, %v887
        %v2048 = vmul.f32 %v1888, %v887
        %v2049 = vmul.f32 %v1889, %v887
        %v2050 = vmul.f32 %v1890, %v887
        %v2051 = vmul.f32 %v1891, %v887
        %v2052 = vmul.f32 %v1892, %v887
        %v2053 = vmul.f32 %v1893, %v887
        %v2054 = vmul.f32 %v1894, %v887
        %v2055 = vmul.f32 %v1895, %v887
        %v2056 = vmul.f32 %v1896, %v887
        %v2057 = vmul.f32 %v1897, %v887
        %v2058 = vmul.f32 %v1898, %v887
        %v2059 = vmul.f32 %v1899, %v887
        %v2060 = vmul.f32 %v1900, %v887
        %v2061 = vmul.f32 %v1901, %v887
        %v2062 = vmul.f32 %v1902, %v887
        %v2063 = vmul.f32 %v1903, %v887
        %v2064 = vmul.f32 %v1904, %v887
        %v2065 = vmul.f32 %v1905, %v887
        %v2066 = vmul.f32 %v1906, %v887
        %v2067 = vadd.f32 %v2003, %v2035
        %v2068 = vadd.f32 %v2004, %v2036
        %v2069 = vadd.f32 %v2005, %v2037
        %v2070 = vadd.f32 %v2006, %v2038
        %v2071 = vadd.f32 %v2007, %v2039
        %v2072 = vadd.f32 %v2008, %v2040
        %v2073 = vadd.f32 %v2009, %v2041
        %v2074 = vadd.f32 %v2010, %v2042
        %v2075 = vadd.f32 %v2011, %v2043
        %v2076 = vadd.f32 %v2012, %v2044
        %v2077 = vadd.f32 %v2013, %v2045
        %v2078 = vadd.f32 %v2014, %v2046
        %v2079 = vadd.f32 %v2015, %v2047
        %v2080 = vadd.f32 %v2016, %v2048
        %v2081 = vadd.f32 %v2017, %v2049
        %v2082 = vadd.f32 %v2018, %v2050
        %v2083 = vadd.f32 %v2019, %v2051
        %v2084 = vadd.f32 %v2020, %v2052
        %v2085 = vadd.f32 %v2021, %v2053
        %v2086 = vadd.f32 %v2022, %v2054
        %v2087 = vadd.f32 %v2023, %v2055
        %v2088 = vadd.f32 %v2024, %v2056
        %v2089 = vadd.f32 %v2025, %v2057
        %v2090 = vadd.f32 %v2026, %v2058
        %v2091 = vadd.f32 %v2027, %v2059
        %v2092 = vadd.f32 %v2028, %v2060
        %v2093 = vadd.f32 %v2029, %v2061
        %v2094 = vadd.f32 %v2030, %v2062
        %v2095 = vadd.f32 %v2031, %v2063
        %v2096 = vadd.f32 %v2032, %v2064
        %v2097 = vadd.f32 %v2033, %v2065
        %v2098 = vadd.f32 %v2034, %v2066
        %v2099 = vmax.f32 %v2067, 0.0
        %v2100 = vmax.f32 %v2068, 0.0
        %v2101 = vmax.f32 %v2069, 0.0
        %v2102 = vmax.f32 %v2070, 0.0
        %v2103 = vmax.f32 %v2071, 0.0
        %v2104 = vmax.f32 %v2072, 0.0
        %v2105 = vmax.f32 %v2073, 0.0
        %v2106 = vmax.f32 %v2074, 0.0
        %v2107 = vmax.f32 %v2075, 0.0
        %v2108 = vmax.f32 %v2076, 0.0
        %v2109 = vmax.f32 %v2077, 0.0
        %v2110 = vmax.f32 %v2078, 0.0
        %v2111 = vmax.f32 %v2079, 0.0
        %v2112 = vmax.f32 %v2080, 0.0
        %v2113 = vmax.f32 %v2081, 0.0
        %v2114 = vmax.f32 %v2082, 0.0
        %v2115 = vmax.f32 %v2083, 0.0
        %v2116 = vmax.f32 %v2084, 0.0
        %v2117 = vmax.f32 %v2085, 0.0
        %v2118 = vmax.f32 %v2086, 0.0
        %v2119 = vmax.f32 %v2087, 0.0
        %v2120 = vmax.f32 %v2088, 0.0
        %v2121 = vmax.f32 %v2089, 0.0
        %v2122 = vmax.f32 %v2090, 0.0
        %v2123 = vmax.f32 %v2091, 0.0
        %v2124 = vmax.f32 %v2092, 0.0
        %v2125 = vmax.f32 %v2093, 0.0
        %v2126 = vmax.f32 %v2094, 0.0
        %v2127 = vmax.f32 %v2095, 0.0
        %v2128 = vmax.f32 %v2096, 0.0
        %v2129 = vmax.f32 %v2097, 0.0
        %v2130 = vmax.f32 %v2098, 0.0
        %v2131 = vld [vmem:[#allocation7] sm:$0xff]
        %v2132 = vld [vmem:[#allocation7 + $0x8] sm:$0xff]
        %v2133 = vld [vmem:[#allocation7 + $0x10] sm:$0xff]
        %v2134 = vld [vmem:[#allocation7 + $0x18] sm:$0xff]
        %v2135 = vld [vmem:[#allocation7 + $0x20] sm:$0xff]
        %v2136 = vld [vmem:[#allocation7 + $0x28] sm:$0xff]
        %v2137 = vld [vmem:[#allocation7 + $0x30] sm:$0xff]
        %v2138 = vld [vmem:[#allocation7 + $0x38] sm:$0xff]
        %v2139 = vld [vmem:[#allocation7 + $0x40] sm:$0xff]
        %v2140 = vld [vmem:[#allocation7 + $0x48] sm:$0xff]
        %v2141 = vld [vmem:[#allocation7 + $0x50] sm:$0xff]
        %v2142 = vld [vmem:[#allocation7 + $0x58] sm:$0xff]
        %v2143 = vld [vmem:[#allocation7 + $0x60] sm:$0xff]
        %v2144 = vld [vmem:[#allocation7 + $0x68] sm:$0xff]
        %v2145 = vld [vmem:[#allocation7 + $0x70] sm:$0xff]
        %v2146 = vld [vmem:[#allocation7 + $0x78] sm:$0xff]
        %v2147 = vld [vmem:[#allocation7 + $0x80] sm:$0xff]
        %v2148 = vld [vmem:[#allocation7 + $0x88] sm:$0xff]
        %v2149 = vld [vmem:[#allocation7 + $0x90] sm:$0xff]
        %v2150 = vld [vmem:[#allocation7 + $0x98] sm:$0xff]
        %v2151 = vld [vmem:[#allocation7 + $0xa0] sm:$0xff]
        %v2152 = vld [vmem:[#allocation7 + $0xa8] sm:$0xff]
        %v2153 = vld [vmem:[#allocation7 + $0xb0] sm:$0xff]
        %v2154 = vld [vmem:[#allocation7 + $0xb8] sm:$0xff]
        %v2155 = vld [vmem:[#allocation7 + $0xc0] sm:$0xff]
        %v2156 = vld [vmem:[#allocation7 + $0xc8] sm:$0xff]
        %v2157 = vld [vmem:[#allocation7 + $0xd0] sm:$0xff]
        %v2158 = vld [vmem:[#allocation7 + $0xd8] sm:$0xff]
        %v2159 = vld [vmem:[#allocation7 + $0xe0] sm:$0xff]
        %v2160 = vld [vmem:[#allocation7 + $0xe8] sm:$0xff]
        %v2161 = vld [vmem:[#allocation7 + $0xf0] sm:$0xff]
        %v2162 = vld [vmem:[#allocation7 + $0xf8] sm:$0xff]
        %2163 = vmatprep.subr.mxu0 %v2132
        %2164 = vmatpush1.msra.mxu0 %v2131
        %2165 = vmatprep.subr.mxu0 %v2134
        %2166 = vmatpush1.msra.mxu0 %v2133
        %2167 = vmatprep.subr.mxu0 %v2136
        %2168 = vmatpush1.msra.mxu0 %v2135
        %2169 = vmatprep.subr.mxu0 %v2138
        %2170 = vmatpush1.msra.mxu0 %v2137
        %2171 = vmatprep.subr.mxu0 %v2140
        %2172 = vmatpush1.msra.mxu0 %v2139
        %2173 = vmatprep.subr.mxu0 %v2142
        %2174 = vmatpush1.msra.mxu0 %v2141
        %2175 = vmatprep.subr.mxu0 %v2144
        %2176 = vmatpush1.msra.mxu0 %v2143
        %2177 = vmatprep.subr.mxu0 %v2146
        %2178 = vmatpush1.msra.mxu0 %v2145
        %2179 = vmatprep.subr.mxu0 %v2148
        %2180 = vmatpush1.msra.mxu0 %v2147
        %2181 = vmatprep.subr.mxu0 %v2150
        %2182 = vmatpush1.msra.mxu0 %v2149
        %2183 = vmatprep.subr.mxu0 %v2152
        %2184 = vmatpush1.msra.mxu0 %v2151
        %2185 = vmatprep.subr.mxu0 %v2154
        %2186 = vmatpush1.msra.mxu0 %v2153
        %2187 = vmatprep.subr.mxu0 %v2156
        %2188 = vmatpush1.msra.mxu0 %v2155
        %2189 = vmatprep.subr.mxu0 %v2158
        %2190 = vmatpush1.msra.mxu0 %v2157
        %2191 = vmatprep.subr.mxu0 %v2160
        %2192 = vmatpush1.msra.mxu0 %v2159
        %2193 = vmatprep.subr.mxu0 %v2162
        %2194 = vmatpush1.msra.mxu0 %v2161
        %2195 = vmatprep.subr.mxu0 0.0
        %2196 = vmatpush1.msra.mxu0 0.0
        %2197 = vmatprep.subr.mxu0 0.0
        %2198 = vmatpush1.msra.mxu0 0.0
        %2199 = vmatprep.subr.mxu0 0.0
        %2200 = vmatpush1.msra.mxu0 0.0
        %2201 = vmatprep.subr.mxu0 0.0
        %2202 = vmatpush1.msra.mxu0 0.0
        %2203 = vmatprep.subr.mxu0 0.0
        %2204 = vmatpush1.msra.mxu0 0.0
        %2205 = vmatprep.subr.mxu0 0.0
        %2206 = vmatpush1.msra.mxu0 0.0
        %2207 = vmatprep.subr.mxu0 0.0
        %2208 = vmatpush1.msra.mxu0 0.0
        %2209 = vmatprep.subr.mxu0 0.0
        %2210 = vmatpush1.msra.mxu0 0.0
        %2211 = vmatprep.subr.mxu0 0.0
        %2212 = vmatpush1.msra.mxu0 0.0
        %2213 = vmatprep.subr.mxu0 0.0
        %2214 = vmatpush1.msra.mxu0 0.0
        %2215 = vmatprep.subr.mxu0 0.0
        %2216 = vmatpush1.msra.mxu0 0.0
        %2217 = vmatprep.subr.mxu0 0.0
        %2218 = vmatpush1.msra.mxu0 0.0
        %2219 = vmatprep.subr.mxu0 0.0
        %2220 = vmatpush1.msra.mxu0 0.0
        %2221 = vmatprep.subr.mxu0 0.0
        %2222 = vmatpush1.msra.mxu0 0.0
        %2223 = vmatprep.subr.mxu0 0.0
        %2224 = vmatpush1.msra.mxu0 0.0
        %2225 = vmatprep.subr.mxu0 0.0
        %2226 = vmatpush1.msra.mxu0 0.0
        %2227 = vmatprep.mubr.f32.mxu0 0.0
        %2228 = vmatmul.mubr.f32.gmra.mrb[0].mxu0 %v2099
        %v2229 = vpop.f32.mrb[0].mxu0
        %v2230 = vadd.f32 0.0, %v2229
        %v2231 = vpop.f32.mrb[0].mxu0
        %v2232 = vadd.f32 0.0, %v2231
        %2233 = vmatprep.mubr.f32.mxu0 0.0
        %2234 = vmatmul.mubr.f32.gmra.mrb[0].mxu0 %v2100
        %v2235 = vpop.f32.mrb[0].mxu0
        %v2236 = vadd.f32 0.0, %v2235
        %v2237 = vpop.f32.mrb[0].mxu0
        %v2238 = vadd.f32 0.0, %v2237
        %2239 = vmatprep.mubr.f32.mxu0 0.0
        %2240 = vmatmul.mubr.f32.gmra.mrb[0].mxu0 %v2101
        %v2241 = vpop.f32.mrb[0].mxu0
        %v2242 = vadd.f32 0.0, %v2241
        %v2243 = vpop.f32.mrb[0].mxu0
        %v2244 = vadd.f32 0.0, %v2243
        %2245 = vmatprep.mubr.f32.mxu0 0.0
        %2246 = vmatmul.mubr.f32.gmra.mrb[0].mxu0 %v2102
        %v2247 = vpop.f32.mrb[0].mxu0
        %v2248 = vadd.f32 0.0, %v2247
        %v2249 = vpop.f32.mrb[0].mxu0
        %v2250 = vadd.f32 0.0, %v2249
        %2251 = vmatprep.mubr.f32.mxu0 0.0
        %2252 = vmatmul.mubr.f32.gmra.mrb[0].mxu0 %v2103
        %v2253 = vpop.f32.mrb[0].mxu0
        %v2254 = vadd.f32 0.0, %v2253
        %v2255 = vpop.f32.mrb[0].mxu0
        %v2256 = vadd.f32 0.0, %v2255
        %2257 = vmatprep.mubr.f32.mxu0 0.0
        %2258 = vmatmul.mubr.f32.gmra.mrb[0].mxu0 %v2104
        %v2259 = vpop.f32.mrb[0].mxu0
        %v2260 = vadd.f32 0.0, %v2259
        %v2261 = vpop.f32.mrb[0].mxu0
        %v2262 = vadd.f32 0.0, %v2261
        %2263 = vmatprep.mubr.f32.mxu0 0.0
        %2264 = vmatmul.mubr.f32.gmra.mrb[0].mxu0 %v2105
        %v2265 = vpop.f32.mrb[0].mxu0
        %v2266 = vadd.f32 0.0, %v2265
        %v2267 = vpop.f32.mrb[0].mxu0
        %v2268 = vadd.f32 0.0, %v2267
        %2269 = vmatprep.mubr.f32.mxu0 0.0
        %2270 = vmatmul.mubr.f32.gmra.mrb[0].mxu0 %v2106
        %v2271 = vpop.f32.mrb[0].mxu0
        %v2272 = vadd.f32 0.0, %v2271
        %v2273 = vpop.f32.mrb[0].mxu0
        %v2274 = vadd.f32 0.0, %v2273
        %2275 = vmatprep.mubr.f32.mxu0 0.0
        %2276 = vmatmul.mubr.f32.gmra.mrb[0].mxu0 %v2107
        %v2277 = vpop.f32.mrb[0].mxu0
        %v2278 = vadd.f32 0.0, %v2277
        %v2279 = vpop.f32.mrb[0].mxu0
        %v2280 = vadd.f32 0.0, %v2279
        %2281 = vmatprep.mubr.f32.mxu0 0.0
        %2282 = vmatmul.mubr.f32.gmra.mrb[0].mxu0 %v2108
        %v2283 = vpop.f32.mrb[0].mxu0
        %v2284 = vadd.f32 0.0, %v2283
        %v2285 = vpop.f32.mrb[0].mxu0
        %v2286 = vadd.f32 0.0, %v2285
        %2287 = vmatprep.mubr.f32.mxu0 0.0
        %2288 = vmatmul.mubr.f32.gmra.mrb[0].mxu0 %v2109
        %v2289 = vpop.f32.mrb[0].mxu0
        %v2290 = vadd.f32 0.0, %v2289
        %v2291 = vpop.f32.mrb[0].mxu0
        %v2292 = vadd.f32 0.0, %v2291
        %2293 = vmatprep.mubr.f32.mxu0 0.0
        %2294 = vmatmul.mubr.f32.gmra.mrb[0].mxu0 %v2110
        %v2295 = vpop.f32.mrb[0].mxu0
        %v2296 = vadd.f32 0.0, %v2295
        %v2297 = vpop.f32.mrb[0].mxu0
        %v2298 = vadd.f32 0.0, %v2297
        %2299 = vmatprep.mubr.f32.mxu0 0.0
        %2300 = vmatmul.mubr.f32.gmra.mrb[0].mxu0 %v2111
        %v2301 = vpop.f32.mrb[0].mxu0
        %v2302 = vadd.f32 0.0, %v2301
        %v2303 = vpop.f32.mrb[0].mxu0
        %v2304 = vadd.f32 0.0, %v2303
        %2305 = vmatprep.mubr.f32.mxu0 0.0
        %2306 = vmatmul.mubr.f32.gmra.mrb[0].mxu0 %v2112
        %v2307 = vpop.f32.mrb[0].mxu0
        %v2308 = vadd.f32 0.0, %v2307
        %v2309 = vpop.f32.mrb[0].mxu0
        %v2310 = vadd.f32 0.0, %v2309
        %2311 = vmatprep.mubr.f32.mxu0 0.0
        %2312 = vmatmul.mubr.f32.gmra.mrb[0].mxu0 %v2113
        %v2313 = vpop.f32.mrb[0].mxu0
        %v2314 = vadd.f32 0.0, %v2313
        %v2315 = vpop.f32.mrb[0].mxu0
        %v2316 = vadd.f32 0.0, %v2315
        %2317 = vmatprep.mubr.f32.mxu0 0.0
        %2318 = vmatmul.mubr.f32.gmra.mrb[0].mxu0 %v2114
        %v2319 = vpop.f32.mrb[0].mxu0
        %v2320 = vadd.f32 0.0, %v2319
        %v2321 = vpop.f32.mrb[0].mxu0
        %v2322 = vadd.f32 0.0, %v2321
        %2323 = vmatprep.mubr.f32.mxu0 0.0
        %2324 = vmatmul.mubr.f32.gmra.mrb[0].mxu0 %v2115
        %v2325 = vpop.f32.mrb[0].mxu0
        %v2326 = vadd.f32 0.0, %v2325
        %v2327 = vpop.f32.mrb[0].mxu0
        %v2328 = vadd.f32 0.0, %v2327
        %2329 = vmatprep.mubr.f32.mxu0 0.0
        %2330 = vmatmul.mubr.f32.gmra.mrb[0].mxu0 %v2116
        %v2331 = vpop.f32.mrb[0].mxu0
        %v2332 = vadd.f32 0.0, %v2331
        %v2333 = vpop.f32.mrb[0].mxu0
        %v2334 = vadd.f32 0.0, %v2333
        %2335 = vmatprep.mubr.f32.mxu0 0.0
        %2336 = vmatmul.mubr.f32.gmra.mrb[0].mxu0 %v2117
        %v2337 = vpop.f32.mrb[0].mxu0
        %v2338 = vadd.f32 0.0, %v2337
        %v2339 = vpop.f32.mrb[0].mxu0
        %v2340 = vadd.f32 0.0, %v2339
        %2341 = vmatprep.mubr.f32.mxu0 0.0
        %2342 = vmatmul.mubr.f32.gmra.mrb[0].mxu0 %v2118
        %v2343 = vpop.f32.mrb[0].mxu0
        %v2344 = vadd.f32 0.0, %v2343
        %v2345 = vpop.f32.mrb[0].mxu0
        %v2346 = vadd.f32 0.0, %v2345
        %2347 = vmatprep.mubr.f32.mxu0 0.0
        %2348 = vmatmul.mubr.f32.gmra.mrb[0].mxu0 %v2119
        %v2349 = vpop.f32.mrb[0].mxu0
        %v2350 = vadd.f32 0.0, %v2349
        %v2351 = vpop.f32.mrb[0].mxu0
        %v2352 = vadd.f32 0.0, %v2351
        %2353 = vmatprep.mubr.f32.mxu0 0.0
        %2354 = vmatmul.mubr.f32.gmra.mrb[0].mxu0 %v2120
        %v2355 = vpop.f32.mrb[0].mxu0
        %v2356 = vadd.f32 0.0, %v2355
        %v2357 = vpop.f32.mrb[0].mxu0
        %v2358 = vadd.f32 0.0, %v2357
        %2359 = vmatprep.mubr.f32.mxu0 0.0
        %2360 = vmatmul.mubr.f32.gmra.mrb[0].mxu0 %v2121
        %v2361 = vpop.f32.mrb[0].mxu0
        %v2362 = vadd.f32 0.0, %v2361
        %v2363 = vpop.f32.mrb[0].mxu0
        %v2364 = vadd.f32 0.0, %v2363
        %2365 = vmatprep.mubr.f32.mxu0 0.0
        %2366 = vmatmul.mubr.f32.gmra.mrb[0].mxu0 %v2122
        %v2367 = vpop.f32.mrb[0].mxu0
        %v2368 = vadd.f32 0.0, %v2367
        %v2369 = vpop.f32.mrb[0].mxu0
        %v2370 = vadd.f32 0.0, %v2369
        %2371 = vmatprep.mubr.f32.mxu0 0.0
        %2372 = vmatmul.mubr.f32.gmra.mrb[0].mxu0 %v2123
        %v2373 = vpop.f32.mrb[0].mxu0
        %v2374 = vadd.f32 0.0, %v2373
        %v2375 = vpop.f32.mrb[0].mxu0
        %v2376 = vadd.f32 0.0, %v2375
        %2377 = vmatprep.mubr.f32.mxu0 0.0
        %2378 = vmatmul.mubr.f32.gmra.mrb[0].mxu0 %v2124
        %v2379 = vpop.f32.mrb[0].mxu0
        %v2380 = vadd.f32 0.0, %v2379
        %v2381 = vpop.f32.mrb[0].mxu0
        %v2382 = vadd.f32 0.0, %v2381
        %2383 = vmatprep.mubr.f32.mxu0 0.0
        %2384 = vmatmul.mubr.f32.gmra.mrb[0].mxu0 %v2125
        %v2385 = vpop.f32.mrb[0].mxu0
        %v2386 = vadd.f32 0.0, %v2385
        %v2387 = vpop.f32.mrb[0].mxu0
        %v2388 = vadd.f32 0.0, %v2387
        %2389 = vmatprep.mubr.f32.mxu0 0.0
        %2390 = vmatmul.mubr.f32.gmra.mrb[0].mxu0 %v2126
        %v2391 = vpop.f32.mrb[0].mxu0
        %v2392 = vadd.f32 0.0, %v2391
        %v2393 = vpop.f32.mrb[0].mxu0
        %v2394 = vadd.f32 0.0, %v2393
        %2395 = vmatprep.mubr.f32.mxu0 0.0
        %2396 = vmatmul.mubr.f32.gmra.mrb[0].mxu0 %v2127
        %v2397 = vpop.f32.mrb[0].mxu0
        %v2398 = vadd.f32 0.0, %v2397
        %v2399 = vpop.f32.mrb[0].mxu0
        %v2400 = vadd.f32 0.0, %v2399
        %2401 = vmatprep.mubr.f32.mxu0 0.0
        %2402 = vmatmul.mubr.f32.gmra.mrb[0].mxu0 %v2128
        %v2403 = vpop.f32.mrb[0].mxu0
        %v2404 = vadd.f32 0.0, %v2403
        %v2405 = vpop.f32.mrb[0].mxu0
        %v2406 = vadd.f32 0.0, %v2405
        %2407 = vmatprep.mubr.f32.mxu0 0.0
        %2408 = vmatmul.mubr.f32.gmra.mrb[0].mxu0 %v2129
        %v2409 = vpop.f32.mrb[0].mxu0
        %v2410 = vadd.f32 0.0, %v2409
        %v2411 = vpop.f32.mrb[0].mxu0
        %v2412 = vadd.f32 0.0, %v2411
        %2413 = vmatprep.mubr.f32.mxu0 0.0
        %2414 = vmatmul.mubr.f32.gmra.mrb[0].mxu0 %v2130
        %v2415 = vpop.f32.mrb[0].mxu0
        %v2416 = vadd.f32 0.0, %v2415
        %v2417 = vpop.f32.mrb[0].mxu0
        %v2418 = vadd.f32 0.0, %v2417
        %2419 = vdwg.mxu0
        %v2420 = vmax.f32 %v2230, 0.0
        %v2421 = vmax.f32 %v2232, 0.0
        %v2422 = vmax.f32 %v2236, 0.0
        %v2423 = vmax.f32 %v2238, 0.0
        %v2424 = vmax.f32 %v2242, 0.0
        %v2425 = vmax.f32 %v2244, 0.0
        %v2426 = vmax.f32 %v2248, 0.0
        %v2427 = vmax.f32 %v2250, 0.0
        %v2428 = vmax.f32 %v2254, 0.0
        %v2429 = vmax.f32 %v2256, 0.0
        %v2430 = vmax.f32 %v2260, 0.0
        %v2431 = vmax.f32 %v2262, 0.0
        %v2432 = vmax.f32 %v2266, 0.0
        %v2433 = vmax.f32 %v2268, 0.0
        %v2434 = vmax.f32 %v2272, 0.0
        %v2435 = vmax.f32 %v2274, 0.0
        %v2436 = vmax.f32 %v2278, 0.0
        %v2437 = vmax.f32 %v2280, 0.0
        %v2438 = vmax.f32 %v2284, 0.0
        %v2439 = vmax.f32 %v2286, 0.0
        %v2440 = vmax.f32 %v2290, 0.0
        %v2441 = vmax.f32 %v2292, 0.0
        %v2442 = vmax.f32 %v2296, 0.0
        %v2443 = vmax.f32 %v2298, 0.0
        %v2444 = vmax.f32 %v2302, 0.0
        %v2445 = vmax.f32 %v2304, 0.0
        %v2446 = vmax.f32 %v2308, 0.0
        %v2447 = vmax.f32 %v2310, 0.0
        %v2448 = vmax.f32 %v2314, 0.0
        %v2449 = vmax.f32 %v2316, 0.0
        %v2450 = vmax.f32 %v2320, 0.0
        %v2451 = vmax.f32 %v2322, 0.0
        %v2452 = vmax.f32 %v2326, 0.0
        %v2453 = vmax.f32 %v2328, 0.0
        %v2454 = vmax.f32 %v2332, 0.0
        %v2455 = vmax.f32 %v2334, 0.0
        %v2456 = vmax.f32 %v2338, 0.0
        %v2457 = vmax.f32 %v2340, 0.0
        %v2458 = vmax.f32 %v2344, 0.0
        %v2459 = vmax.f32 %v2346, 0.0
        %v2460 = vmax.f32 %v2350, 0.0
        %v2461 = vmax.f32 %v2352, 0.0
        %v2462 = vmax.f32 %v2356, 0.0
        %v2463 = vmax.f32 %v2358, 0.0
        %v2464 = vmax.f32 %v2362, 0.0
        %v2465 = vmax.f32 %v2364, 0.0
        %v2466 = vmax.f32 %v2368, 0.0
        %v2467 = vmax.f32 %v2370, 0.0
        %v2468 = vmax.f32 %v2374, 0.0
        %v2469 = vmax.f32 %v2376, 0.0
        %v2470 = vmax.f32 %v2380, 0.0
        %v2471 = vmax.f32 %v2382, 0.0
        %v2472 = vmax.f32 %v2386, 0.0
        %v2473 = vmax.f32 %v2388, 0.0
        %v2474 = vmax.f32 %v2392, 0.0
        %v2475 = vmax.f32 %v2394, 0.0
        %v2476 = vmax.f32 %v2398, 0.0
        %v2477 = vmax.f32 %v2400, 0.0
        %v2478 = vmax.f32 %v2404, 0.0
        %v2479 = vmax.f32 %v2406, 0.0
        %v2480 = vmax.f32 %v2410, 0.0
        %v2481 = vmax.f32 %v2412, 0.0
        %v2482 = vmax.f32 %v2416, 0.0
        %v2483 = vmax.f32 %v2418, 0.0
        %s2484 = scalar_lea.vmem %s166, 512 [#allocation9]
        %2485 = vst [vmem:[%s2484] sm:$0xff] %v2420
        %2486 = vst [vmem:[%s2484 + $0x8] sm:$0xff] %v2421
        %2487 = vst [vmem:[%s2484 + $0x10] sm:$0xff] %v2422
        %2488 = vst [vmem:[%s2484 + $0x18] sm:$0xff] %v2423
        %2489 = vst [vmem:[%s2484 + $0x20] sm:$0xff] %v2424
        %2490 = vst [vmem:[%s2484 + $0x28] sm:$0xff] %v2425
        %2491 = vst [vmem:[%s2484 + $0x30] sm:$0xff] %v2426
        %2492 = vst [vmem:[%s2484 + $0x38] sm:$0xff] %v2427
        %2493 = vst [vmem:[%s2484 + $0x40] sm:$0xff] %v2428
        %2494 = vst [vmem:[%s2484 + $0x48] sm:$0xff] %v2429
        %2495 = vst [vmem:[%s2484 + $0x50] sm:$0xff] %v2430
        %2496 = vst [vmem:[%s2484 + $0x58] sm:$0xff] %v2431
        %2497 = vst [vmem:[%s2484 + $0x60] sm:$0xff] %v2432
        %2498 = vst [vmem:[%s2484 + $0x68] sm:$0xff] %v2433
        %2499 = vst [vmem:[%s2484 + $0x70] sm:$0xff] %v2434
        %2500 = vst [vmem:[%s2484 + $0x78] sm:$0xff] %v2435
        %2501 = vst [vmem:[%s2484 + $0x80] sm:$0xff] %v2436
        %2502 = vst [vmem:[%s2484 + $0x88] sm:$0xff] %v2437
        %2503 = vst [vmem:[%s2484 + $0x90] sm:$0xff] %v2438
        %2504 = vst [vmem:[%s2484 + $0x98] sm:$0xff] %v2439
        %2505 = vst [vmem:[%s2484 + $0xa0] sm:$0xff] %v2440
        %2506 = vst [vmem:[%s2484 + $0xa8] sm:$0xff] %v2441
        %2507 = vst [vmem:[%s2484 + $0xb0] sm:$0xff] %v2442
        %2508 = vst [vmem:[%s2484 + $0xb8] sm:$0xff] %v2443
        %2509 = vst [vmem:[%s2484 + $0xc0] sm:$0xff] %v2444
        %2510 = vst [vmem:[%s2484 + $0xc8] sm:$0xff] %v2445
        %2511 = vst [vmem:[%s2484 + $0xd0] sm:$0xff] %v2446
        %2512 = vst [vmem:[%s2484 + $0xd8] sm:$0xff] %v2447
        %2513 = vst [vmem:[%s2484 + $0xe0] sm:$0xff] %v2448
        %2514 = vst [vmem:[%s2484 + $0xe8] sm:$0xff] %v2449
        %2515 = vst [vmem:[%s2484 + $0xf0] sm:$0xff] %v2450
        %2516 = vst [vmem:[%s2484 + $0xf8] sm:$0xff] %v2451
        %2517 = vst [vmem:[%s2484 + $0x100] sm:$0xff] %v2452
        %2518 = vst [vmem:[%s2484 + $0x108] sm:$0xff] %v2453
        %2519 = vst [vmem:[%s2484 + $0x110] sm:$0xff] %v2454
        %2520 = vst [vmem:[%s2484 + $0x118] sm:$0xff] %v2455
        %2521 = vst [vmem:[%s2484 + $0x120] sm:$0xff] %v2456
        %2522 = vst [vmem:[%s2484 + $0x128] sm:$0xff] %v2457
        %2523 = vst [vmem:[%s2484 + $0x130] sm:$0xff] %v2458
        %2524 = vst [vmem:[%s2484 + $0x138] sm:$0xff] %v2459
        %2525 = vst [vmem:[%s2484 + $0x140] sm:$0xff] %v2460
        %2526 = vst [vmem:[%s2484 + $0x148] sm:$0xff] %v2461
        %2527 = vst [vmem:[%s2484 + $0x150] sm:$0xff] %v2462
        %2528 = vst [vmem:[%s2484 + $0x158] sm:$0xff] %v2463
        %2529 = vst [vmem:[%s2484 + $0x160] sm:$0xff] %v2464
        %2530 = vst [vmem:[%s2484 + $0x168] sm:$0xff] %v2465
        %2531 = vst [vmem:[%s2484 + $0x170] sm:$0xff] %v2466
        %2532 = vst [vmem:[%s2484 + $0x178] sm:$0xff] %v2467
        %2533 = vst [vmem:[%s2484 + $0x180] sm:$0xff] %v2468
        %2534 = vst [vmem:[%s2484 + $0x188] sm:$0xff] %v2469
        %2535 = vst [vmem:[%s2484 + $0x190] sm:$0xff] %v2470
        %2536 = vst [vmem:[%s2484 + $0x198] sm:$0xff] %v2471
        %2537 = vst [vmem:[%s2484 + $0x1a0] sm:$0xff] %v2472
        %2538 = vst [vmem:[%s2484 + $0x1a8] sm:$0xff] %v2473
        %2539 = vst [vmem:[%s2484 + $0x1b0] sm:$0xff] %v2474
        %2540 = vst [vmem:[%s2484 + $0x1b8] sm:$0xff] %v2475
        %2541 = vst [vmem:[%s2484 + $0x1c0] sm:$0xff] %v2476
        %2542 = vst [vmem:[%s2484 + $0x1c8] sm:$0xff] %v2477
        %2543 = vst [vmem:[%s2484 + $0x1d0] sm:$0xff] %v2478
        %2544 = vst [vmem:[%s2484 + $0x1d8] sm:$0xff] %v2479
        %2545 = vst [vmem:[%s2484 + $0x1e0] sm:$0xff] %v2480
        %2546 = vst [vmem:[%s2484 + $0x1e8] sm:$0xff] %v2481
        %2547 = vst [vmem:[%s2484 + $0x1f0] sm:$0xff] %v2482
        %2548 = vst [vmem:[%s2484 + $0x1f8] sm:$0xff] %v2483
        %s2549 = sand.u32 %s83, 1
        %s2550 = scalar_lea.sflag [#allocation6], %s2549
        %s2551 = sand.u32 %s83, 1
        %s2552 = smul.addr %s2551, 1024
        %s2553 = scalar_lea.vmem [#allocation9], %s2552
        // Predicated region
        $region45: #{tpu_custom_call.1} parent=27 // pred_check
          %p2554 = pneg %p93
        $region46: #{tpu_custom_call.1} parent=27 // pred_check_branch
          %2556 = sbr.rel (%p2554) target = $region48
        $region47: #{tpu_custom_call.1} parent=27 // pred_region
          %s2557 = smul.u32 16, %s24
          %s2559 = ssub.s32 16384, 16384
          %2560 = vsyncadd %s2550, %s2559
          %s2561 = smul.addr %s2557, 8
          %s2562 = smul.addr %s23, 256
          %s2563 = sadd.s32 %s2561, %s2562
          %s2564 = smul.addr %s2563, 128
          %s2565 = scalar_lea.hbm %s3, %s2564
          %s2566 = sshll.u32 %s2553, 4
          %s2567 = int_to_ptr.vmem [resolvable:$true] %s2566
          %2572 = dma.vmem_to_hbm [thread:$0]  %s2567, 16384, %s2565, %s2550, 256, 256, 16
        $region48: #{tpu_custom_call.1} parent=27 // pred_fallthru
          _
      $region28: #{tpu_custom_call.1} parent=5 // pred_fallthru
        _
      %p2573 = scmp.le.s32.totalorder 2, %s14
      // Predicated region
      $region49: #{tpu_custom_call.1} parent=5 // pred_check
        %p2574 = pneg %p2573
      $region50: #{tpu_custom_call.1} parent=5 // pred_check_branch
        %2576 = sbr.rel (%p2574) target = $region52
      $region51: #{tpu_custom_call.1} parent=5 // pred_region
        %s2577 = ssub.s32 %s14, 2
        // Predicated region
        $region53: #{tpu_custom_call.1} parent=51 // pred_check
          %p2578 = pneg %p99
        $region54: #{tpu_custom_call.1} parent=51 // pred_check_branch
          %2580 = sbr.rel (%p2578) target = $region56
        $region55: #{tpu_custom_call.1} parent=51 // pred_region
          %s2581 = sand.u32 %s84, 1
          %s2582 = scalar_lea.sflag [#allocation6], %s2581
          %s2583 = sand.u32 %s84, 1
          %s2584 = smul.addr %s2583, 1024
          %s2585 = scalar_lea.vmem [#allocation9], %s2584
          %2586 = dma.done %s2582, 16384
        $region56: #{tpu_custom_call.1} parent=51 // pred_fallthru
          _
      $region52: #{tpu_custom_call.1} parent=5 // pred_fallthru
        _
    $region6: #{tpu_custom_call.1} parent=1 // loop_footer
      %s18 = sadd.s32 1, %s14
    $region7: #{tpu_custom_call.1} parent=1 // loop_footer_branch
      %13 = sbr.rel target = $region3
    $region8: #{tpu_custom_call.1} parent=1 // loop_exit
      _
    %2587 = vsyncpa [#allocation5], 1
    %s2588 = scalar_lea.sflag [#allocation5], 1
    %2589 = vsyncpa %s2588, 1
    %2590 = vsyncpa [#allocation8], 1
    %2591 = vsyncpa [#allocation6], 1
    %s2592 = scalar_lea.sflag [#allocation6], 1
    %2593 = vsyncpa %s2592, 1
  %2594 = vsyncmov [#allocation3]
  %s2595 = vpop.sfrf %2594
  %p2596 = scmp.eq.s32.totalorder %s2595, 0
  %p2597 = pneg %p2596
  %2599 = shalt.err (%p2597)
  %s2600 = scalar_lea.sflag [#allocation3], 1
  %2601 = vsyncmov %s2600
  %s2602 = vpop.sfrf %2601
  %p2603 = scmp.eq.s32.totalorder %s2602, 0
  %p2604 = pneg %p2603
  %2606 = shalt.err (%p2604)

</llo_original>
